<compile_context>
chip_gen: v7x
topology: tpu7x:2x2x1
jax: 0.10.0
libtpu: 0.0.40
codegen_flags: <defaults>
</compile_context>

<pallas_src>
import functools
import math

import jax
import jax.numpy as jnp
from jax.experimental import pallas as pl
from jax.experimental.pallas import tpu as pltpu


# Row indices into the packed (15, D) bias / LayerNorm parameter table.
_BQ_S, _BK_S, _BV_S, _BO_S = 0, 1, 2, 3
_BQ_C, _BK_C, _BV_C, _BO_C = 4, 5, 6, 7
_G1, _B1, _G2, _B2 = 8, 9, 10, 11
_BF2, _G3, _B3 = 12, 13, 14


def _add_layernorm(x, y, g, b):
    """Residual add + LayerNorm over last dim in f32 (eps=1e-5, PyTorch default)."""
    z = x + y
    mu = jnp.mean(z, axis=-1, keepdims=True)
    var = jnp.mean(jnp.square(z - mu), axis=-1, keepdims=True)
    return (z - mu) * jax.lax.rsqrt(var + 1e-5) * g + b


# ----------------------------- fused decoder kernel -----------------------------

def decoder_layer_kernel(x_ref, enc_ref,
                         wqkv_ref, wo_s_ref, wq_c_ref, wkv_c_ref, wo_c_ref,
                         w1_ref, w2_ref, pvec_ref, bf1_ref,
                         o_ref, ctx_ref, *, num_heads, batch, s_tgt, s_src):
    d = x_ref.shape[-1]
    dk = d // num_heads
    scale = 1.0 / math.sqrt(dk)

    def prow(i):                       # (1, D) row of the packed bias/LN table
        return pvec_ref[i:i + 1, :]

    def bf(a):                         # bf16 operands for the MXU, f32 accumulation
        return a.astype(jnp.bfloat16)

    def mha(q, k, v, wo_ref, bo, sk):
        """Multi-head attention. q: (B*s_tgt, D) f32; k, v: (B*sk, D) f32."""
        qb, kb, vb = bf(q), bf(k), bf(v)
        for b in range(batch):                      # static unroll, B is small
            q_b = qb[b * s_tgt:(b + 1) * s_tgt]
            k_b = kb[b * sk:(b + 1) * sk]
            v_b = vb[b * sk:(b + 1) * sk]
            for h in range(num_heads):              # static unroll, H is small
                lo = h * dk
                # scores = q_h @ k_h^T via dot_general contracting the lane dims
                # (no XLU transpose); bf16 inputs, f32 accumulation.
                s = jax.lax.dot_general(
                    q_b[:, lo:lo + dk], k_b[:, lo:lo + dk],
                    (((1,), (1,)), ((), ())),
                    preferred_element_type=jnp.float32) * scale
                m = jnp.max(s, axis=-1, keepdims=True)
                p = jnp.exp(s - m)
                p = p * pl.reciprocal(jnp.sum(p, axis=-1, keepdims=True),
                                      approx=True)
                # Store this head's context at its lane offset (pure store);
                # the output projection is done once, full depth, below.
                ctx_ref[b * s_tgt:(b + 1) * s_tgt, lo:lo + dk] = jnp.dot(
                    bf(p), v_b[:, lo:lo + dk],
                    preferred_element_type=jnp.float32)
        # Single (B*s_tgt, D) @ (D, D) output projection (full MXU depth K = D).
        return jnp.dot(bf(ctx_ref[...]), wo_ref[...],
                       preferred_element_type=jnp.float32) + bo

    x = x_ref[...]          # (B*S, D) f32 residual path stays in f32
    enc = enc_ref[...]      # (B*T, D) f32

    # ---- self attention: fused QKV projection + attn + out-proj + add + LN1 ----
    qkv = jnp.dot(bf(x), wqkv_ref[...], preferred_element_type=jnp.float32)
    sa = mha(qkv[:, :d] + prow(_BQ_S),
             qkv[:, d:2 * d] + prow(_BK_S),
             qkv[:, 2 * d:] + prow(_BV_S),
             wo_s_ref, prow(_BO_S), s_tgt)
    x = _add_layernorm(x, sa, prow(_G1), prow(_B1))

    # ---- cross attention: fused KV projection + attn + out-proj + add + LN2 ----
    qc = jnp.dot(bf(x), wq_c_ref[...], preferred_element_type=jnp.float32) + prow(_BQ_C)
    kv = jnp.dot(bf(enc), wkv_c_ref[...], preferred_element_type=jnp.float32)
    ca = mha(qc, kv[:, :d] + prow(_BK_C), kv[:, d:] + prow(_BV_C),
             wo_c_ref, prow(_BO_C), s_src)
    x = _add_layernorm(x, ca, prow(_G2), prow(_B2))

    # ---- feed forward: linear -> relu -> linear + add + LN3 ----
    h1 = jnp.maximum(
        jnp.dot(bf(x), w1_ref[...], preferred_element_type=jnp.float32)
        + bf1_ref[...], 0.0)
    ff = jnp.dot(bf(h1), w2_ref[...], preferred_element_type=jnp.float32) + prow(_BF2)
    x = _add_layernorm(x, ff, prow(_G3), prow(_B3))

    o_ref[...] = x.astype(o_ref.dtype)


# ----------------------------- wrapper -----------------------------

def decoder_layer(params, x, enc_output, num_heads):
    b, s, d = x.shape
    t = enc_output.shape[1]
    f = params["ff_w1"].shape[1]
    sa, ca = params["self_attn"], params["cross_attn"]
    wdt = jnp.bfloat16

    # Fuse Q/K/V weights into one (D, 3D) matmul, cross K/V into one (D, 2D),
    # and cast all weights to bf16 (halves DMA bytes + VMEM; f32 accumulation
    # happens on the MXU via preferred_element_type).
    wqkv = jnp.concatenate([sa["wq"], sa["wk"], sa["wv"]], axis=1).astype(wdt)
    wkv_c = jnp.concatenate([ca["wk"], ca["wv"]], axis=1).astype(wdt)

    # Pack the 15 tiny (D,) bias / LayerNorm vectors into one table (f32).
    pvec = jnp.stack([
        sa["bq"], sa["bk"], sa["bv"], sa["bo"],
        ca["bq"], ca["bk"], ca["bv"], ca["bo"],
        params["ln1_g"], params["ln1_b"],
        params["ln2_g"], params["ln2_b"],
        params["ff_b2"], params["ln3_g"], params["ln3_b"],
    ], axis=0)

    args = (
        x.reshape(b * s, d),                 # rows flattened: M = B*S per matmul
        enc_output.reshape(b * t, d),
        wqkv, sa["wo"].astype(wdt), ca["wq"].astype(wdt), wkv_c,
        ca["wo"].astype(wdt),
        params["ff_w1"].astype(wdt), params["ff_w2"].astype(wdt),
        pvec, params["ff_b1"].reshape(1, f),
    )

    # Single invocation (no grid): at these shapes a batch grid is pure loop
    # overhead on the single-TC v5e/v6e.  At realistic sizes, tile B*S rows per
    # grid step ("parallel"), mark weight specs pl.Buffered(1), and stream d_ff
    # with an "arbitrary" reduction axis + VMEM accumulator to fit v7x's 64 MiB.
    out = pl.pallas_call(
        functools.partial(decoder_layer_kernel, num_heads=num_heads,
                          batch=b, s_tgt=s, s_src=t),
        in_specs=[pl.BlockSpec(memory_space=pltpu.MemorySpace.VMEM)
                  for _ in args],
        out_specs=pl.BlockSpec(memory_space=pltpu.MemorySpace.VMEM),
        out_shape=jax.ShapeDtypeStruct((b * s, d), x.dtype),
        scratch_shapes=[pltpu.VMEM((b * s, d), jnp.float32)],   # attn context
        compiler_params=pltpu.CompilerParams(
            vmem_limit_bytes=32 * 1024 * 1024),
    )(*args)
    return out.reshape(b, s, d)


# ----------------------------- pure-JAX reference -----------------------------

def decoder_layer_ref(params, x, enc, num_heads):
    def mha(p, q_in, kv_in):
        bb, sq, dd = q_in.shape
        sk = kv_in.shape[1]
        dk = dd // num_heads
        q = (q_in @ p["wq"] + p["bq"]).reshape(bb, sq, num_heads, dk).transpose(0, 2, 1, 3)
        k = (kv_in @ p["wk"] + p["bk"]).reshape(bb, sk, num_heads, dk).transpose(0, 2, 1, 3)
        v = (kv_in @ p["wv"] + p["bv"]).reshape(bb, sk, num_heads, dk).transpose(0, 2, 1, 3)
        sc = jnp.einsum("bhqd,bhkd->bhqk", q, k) / math.sqrt(dk)
        a = jax.nn.softmax(sc, axis=-1)
        o = jnp.einsum("bhqk,bhkd->bhqd", a, v).transpose(0, 2, 1, 3).reshape(bb, sq, dd)
        return o @ p["wo"] + p["bo"]

    def ln(z, g, b):
        mu = z.mean(-1, keepdims=True)
        var = ((z - mu) ** 2).mean(-1, keepdims=True)
        return (z - mu) / jnp.sqrt(var + 1e-5) * g + b

    h = ln(x + mha(params["self_attn"], x, x), params["ln1_g"], params["ln1_b"])
    h = ln(h + mha(params["cross_attn"], h, enc), params["ln2_g"], params["ln2_b"])
    ff = jnp.maximum(h @ params["ff_w1"] + params["ff_b1"], 0.0) @ params["ff_w2"] + params["ff_b2"]
    return ln(h + ff, params["ln3_g"], params["ln3_b"])


# ----------------------------- parameter init -----------------------------

def init_mha_params(key, d_model):
    ks = jax.random.split(key, 8)
    w = 0.02
    return {
        "wq": w * jax.random.normal(ks[0], (d_model, d_model), jnp.float32),
        "bq": w * jax.random.normal(ks[1], (d_model,), jnp.float32),
        "wk": w * jax.random.normal(ks[2], (d_model, d_model), jnp.float32),
        "bk": w * jax.random.normal(ks[3], (d_model,), jnp.float32),
        "wv": w * jax.random.normal(ks[4], (d_model, d_model), jnp.float32),
        "bv": w * jax.random.normal(ks[5], (d_model,), jnp.float32),
        "wo": w * jax.random.normal(ks[6], (d_model, d_model), jnp.float32),
        "bo": w * jax.random.normal(ks[7], (d_model,), jnp.float32),
    }


def init_decoder_params(key, d_model, d_ff):
    ks = jax.random.split(key, 12)
    w = 0.02
    return {
        "self_attn": init_mha_params(ks[0], d_model),
        "cross_attn": init_mha_params(ks[1], d_model),
        "ff_w1": w * jax.random.normal(ks[2], (d_model, d_ff), jnp.float32),
        "ff_b1": w * jax.random.normal(ks[3], (d_ff,), jnp.float32),
        "ff_w2": w * jax.random.normal(ks[4], (d_ff, d_model), jnp.float32),
        "ff_b2": w * jax.random.normal(ks[5], (d_model,), jnp.float32),
        "ln1_g": 1.0 + 0.05 * jax.random.normal(ks[6], (d_model,), jnp.float32),
        "ln1_b": 0.05 * jax.random.normal(ks[7], (d_model,), jnp.float32),
        "ln2_g": 1.0 + 0.05 * jax.random.normal(ks[8], (d_model,), jnp.float32),
        "ln2_b": 0.05 * jax.random.normal(ks[9], (d_model,), jnp.float32),
        "ln3_g": 1.0 + 0.05 * jax.random.normal(ks[10], (d_model,), jnp.float32),
        "ln3_b": 0.05 * jax.random.normal(ks[11], (d_model,), jnp.float32),
    }


# ----------------------------- main -----------------------------

if __name__ == "__main__":
    B, S_TGT, S_SRC = 2, 8, 16
    D_MODEL, NUM_HEADS, D_FF = 128, 4, 256     # lane-dense (D = 128) last dim

    root = jax.random.PRNGKey(0)
    kx, ke, kp = jax.random.split(root, 3)
    x = jax.random.normal(kx, (B, S_TGT, D_MODEL), jnp.float32)
    enc_output = jax.random.normal(ke, (B, S_SRC, D_MODEL), jnp.float32)
    params = init_decoder_params(kp, D_MODEL, D_FF)

    out = jax.jit(lambda p, a, b: decoder_layer(p, a, b, NUM_HEADS))(
        params, x, enc_output)
    jax.block_until_ready(out)
    assert out.shape == (B, S_TGT, D_MODEL)

    ref = decoder_layer_ref(params, x, enc_output, NUM_HEADS)
    assert bool(jnp.allclose(out, ref, rtol=2e-2, atol=2e-2)), "mismatch vs reference"

    print("KERNEL_OK")
</pallas_src>

<mosaic_0001>
module attributes {stable_mosaic.version = 11 : i64} {
  func.func @decoder_layer_kernel(%arg0: memref<16x128xf32, #tpu.memory_space<vmem>>, %arg1: memref<32x128xf32, #tpu.memory_space<vmem>>, %arg2: memref<128x384xbf16, #tpu.memory_space<vmem>>, %arg3: memref<128x128xbf16, #tpu.memory_space<vmem>>, %arg4: memref<128x128xbf16, #tpu.memory_space<vmem>>, %arg5: memref<128x256xbf16, #tpu.memory_space<vmem>>, %arg6: memref<128x128xbf16, #tpu.memory_space<vmem>>, %arg7: memref<128x256xbf16, #tpu.memory_space<vmem>>, %arg8: memref<256x128xbf16, #tpu.memory_space<vmem>>, %arg9: memref<15x128xf32, #tpu.memory_space<vmem>>, %arg10: memref<1x256xf32, #tpu.memory_space<vmem>>, %arg11: memref<16x128xf32, #tpu.memory_space<vmem>>, %arg12: memref<16x128xf32, #tpu.memory_space<vmem>>) attributes {dimension_semantics = [], scalar_prefetch = 0 : i64, scratch_operands = 1 : i64, tpu.core_type = #tpu.core_type<tc>} {
    %c0 = arith.constant 0 : index
    %c0_0 = arith.constant 0 : index
    %0 = vector.load %arg0[%c0, %c0_0] : memref<16x128xf32, #tpu.memory_space<vmem>>, vector<16x128xf32>
    %c0_1 = arith.constant 0 : index
    %c0_2 = arith.constant 0 : index
    %1 = vector.load %arg1[%c0_1, %c0_2] : memref<32x128xf32, #tpu.memory_space<vmem>>, vector<32x128xf32>
    %2 = arith.truncf %0 : vector<16x128xf32> to vector<16x128xbf16>
    %c0_3 = arith.constant 0 : index
    %c0_4 = arith.constant 0 : index
    %3 = vector.load %arg2[%c0_3, %c0_4] : memref<128x384xbf16, #tpu.memory_space<vmem>>, vector<128x384xbf16>
    %cst = arith.constant dense<0.000000e+00> : vector<16x384xf32>
    %4 = tpu.matmul %2, %3, %cst {dimension_numbers = #tpu.dot_dimension_numbers<[1], [0], [0], [1], [0, 0, 1, 1], [], []>} : vector<16x128xbf16>, vector<128x384xbf16>, vector<16x384xf32> -> vector<16x384xf32>
    %5 = vector.extract_strided_slice %4 {offsets = [0, 0], sizes = [16, 128], strides = [1, 1]} : vector<16x384xf32> to vector<16x128xf32>
    %c0_5 = arith.constant 0 : index
    %c0_6 = arith.constant 0 : index
    %6 = vector.load %arg9[%c0_5, %c0_6] : memref<15x128xf32, #tpu.memory_space<vmem>>, vector<1x128xf32>
    %7 = vector.broadcast %6 : vector<1x128xf32> to vector<16x128xf32>
    %8 = arith.addf %5, %7 : vector<16x128xf32>
    %9 = vector.extract_strided_slice %4 {offsets = [0, 128], sizes = [16, 128], strides = [1, 1]} : vector<16x384xf32> to vector<16x128xf32>
    %c1 = arith.constant 1 : index
    %c0_7 = arith.constant 0 : index
    %10 = vector.load %arg9[%c1, %c0_7] : memref<15x128xf32, #tpu.memory_space<vmem>>, vector<1x128xf32>
    %11 = vector.broadcast %10 : vector<1x128xf32> to vector<16x128xf32>
    %12 = arith.addf %9, %11 : vector<16x128xf32>
    %13 = vector.extract_strided_slice %4 {offsets = [0, 256], sizes = [16, 128], strides = [1, 1]} : vector<16x384xf32> to vector<16x128xf32>
    %c2 = arith.constant 2 : index
    %c0_8 = arith.constant 0 : index
    %14 = vector.load %arg9[%c2, %c0_8] : memref<15x128xf32, #tpu.memory_space<vmem>>, vector<1x128xf32>
    %15 = vector.broadcast %14 : vector<1x128xf32> to vector<16x128xf32>
    %16 = arith.addf %13, %15 : vector<16x128xf32>
    %c3 = arith.constant 3 : index
    %c0_9 = arith.constant 0 : index
    %17 = vector.load %arg9[%c3, %c0_9] : memref<15x128xf32, #tpu.memory_space<vmem>>, vector<1x128xf32>
    %18 = arith.truncf %8 : vector<16x128xf32> to vector<16x128xbf16>
    %19 = arith.truncf %12 : vector<16x128xf32> to vector<16x128xbf16>
    %20 = arith.truncf %16 : vector<16x128xf32> to vector<16x128xbf16>
    %21 = vector.extract_strided_slice %18 {offsets = [0, 0], sizes = [8, 128], strides = [1, 1]} : vector<16x128xbf16> to vector<8x128xbf16>
    %22 = vector.extract_strided_slice %19 {offsets = [0, 0], sizes = [8, 128], strides = [1, 1]} : vector<16x128xbf16> to vector<8x128xbf16>
    %23 = vector.extract_strided_slice %20 {offsets = [0, 0], sizes = [8, 128], strides = [1, 1]} : vector<16x128xbf16> to vector<8x128xbf16>
    %24 = vector.extract_strided_slice %21 {offsets = [0, 0], sizes = [8, 32], strides = [1, 1]} : vector<8x128xbf16> to vector<8x32xbf16>
    %25 = vector.extract_strided_slice %22 {offsets = [0, 0], sizes = [8, 32], strides = [1, 1]} : vector<8x128xbf16> to vector<8x32xbf16>
    %cst_10 = arith.constant dense<0.000000e+00> : vector<8x8xf32>
    %26 = tpu.matmul %24, %25, %cst_10 {dimension_numbers = #tpu.dot_dimension_numbers<[1], [1], [0], [0], [0, 0, 1, 0], [], []>} : vector<8x32xbf16>, vector<8x32xbf16>, vector<8x8xf32> -> vector<8x8xf32>
    %cst_11 = arith.constant 0.176776692 : f32
    %27 = vector.broadcast %cst_11 : f32 to vector<8x8xf32>
    %28 = arith.mulf %26, %27 : vector<8x8xf32>
    %cst_12 = arith.constant dense<0xFF800000> : vector<8xf32>
    %29 = vector.multi_reduction <maximumf>, %28, %cst_12 [1] : vector<8x8xf32> to vector<8xf32>
    %30 = vector.shape_cast %29 : vector<8xf32> to vector<8x1xf32>
    %31 = vector.broadcast %30 : vector<8x1xf32> to vector<8x8xf32>
    %32 = arith.subf %28, %31 : vector<8x8xf32>
    %33 = math.exp %32 : vector<8x8xf32>
    %cst_13 = arith.constant dense<0.000000e+00> : vector<8xf32>
    %34 = vector.multi_reduction <add>, %33, %cst_13 [1] : vector<8x8xf32> to vector<8xf32>
    %35 = vector.shape_cast %34 : vector<8xf32> to vector<8x1xf32>
    %36 = tpu.reciprocal %35 {approx = true} : vector<8x1xf32> -> vector<8x1xf32>
    %37 = vector.broadcast %36 : vector<8x1xf32> to vector<8x8xf32>
    %38 = arith.mulf %33, %37 : vector<8x8xf32>
    %39 = arith.truncf %38 : vector<8x8xf32> to vector<8x8xbf16>
    %40 = vector.extract_strided_slice %23 {offsets = [0, 0], sizes = [8, 32], strides = [1, 1]} : vector<8x128xbf16> to vector<8x32xbf16>
    %cst_14 = arith.constant dense<0.000000e+00> : vector<8x32xf32>
    %41 = tpu.matmul %39, %40, %cst_14 {dimension_numbers = #tpu.dot_dimension_numbers<[1], [0], [0], [1], [0, 0, 1, 1], [], []>} : vector<8x8xbf16>, vector<8x32xbf16>, vector<8x32xf32> -> vector<8x32xf32>
    %c0_15 = arith.constant 0 : index
    %c0_16 = arith.constant 0 : index
    %42 = vector.load %arg12[%c0_15, %c0_16] : memref<16x128xf32, #tpu.memory_space<vmem>>, vector<8x32xf32>
    tpu.vector_store %arg12[%c0_15, %c0_16], %41 {strides = array<i32>} : memref<16x128xf32, #tpu.memory_space<vmem>>, vector<8x32xf32>,
    %43 = vector.extract_strided_slice %21 {offsets = [0, 32], sizes = [8, 32], strides = [1, 1]} : vector<8x128xbf16> to vector<8x32xbf16>
    %44 = vector.extract_strided_slice %22 {offsets = [0, 32], sizes = [8, 32], strides = [1, 1]} : vector<8x128xbf16> to vector<8x32xbf16>
    %cst_17 = arith.constant dense<0.000000e+00> : vector<8x8xf32>
    %45 = tpu.matmul %43, %44, %cst_17 {dimension_numbers = #tpu.dot_dimension_numbers<[1], [1], [0], [0], [0, 0, 1, 0], [], []>} : vector<8x32xbf16>, vector<8x32xbf16>, vector<8x8xf32> -> vector<8x8xf32>
    %cst_18 = arith.constant 0.176776692 : f32
    %46 = vector.broadcast %cst_18 : f32 to vector<8x8xf32>
    %47 = arith.mulf %45, %46 : vector<8x8xf32>
    %cst_19 = arith.constant dense<0xFF800000> : vector<8xf32>
    %48 = vector.multi_reduction <maximumf>, %47, %cst_19 [1] : vector<8x8xf32> to vector<8xf32>
    %49 = vector.shape_cast %48 : vector<8xf32> to vector<8x1xf32>
    %50 = vector.broadcast %49 : vector<8x1xf32> to vector<8x8xf32>
    %51 = arith.subf %47, %50 : vector<8x8xf32>
    %52 = math.exp %51 : vector<8x8xf32>
    %cst_20 = arith.constant dense<0.000000e+00> : vector<8xf32>
    %53 = vector.multi_reduction <add>, %52, %cst_20 [1] : vector<8x8xf32> to vector<8xf32>
    %54 = vector.shape_cast %53 : vector<8xf32> to vector<8x1xf32>
    %55 = tpu.reciprocal %54 {approx = true} : vector<8x1xf32> -> vector<8x1xf32>
    %56 = vector.broadcast %55 : vector<8x1xf32> to vector<8x8xf32>
    %57 = arith.mulf %52, %56 : vector<8x8xf32>
    %58 = arith.truncf %57 : vector<8x8xf32> to vector<8x8xbf16>
    %59 = vector.extract_strided_slice %23 {offsets = [0, 32], sizes = [8, 32], strides = [1, 1]} : vector<8x128xbf16> to vector<8x32xbf16>
    %cst_21 = arith.constant dense<0.000000e+00> : vector<8x32xf32>
    %60 = tpu.matmul %58, %59, %cst_21 {dimension_numbers = #tpu.dot_dimension_numbers<[1], [0], [0], [1], [0, 0, 1, 1], [], []>} : vector<8x8xbf16>, vector<8x32xbf16>, vector<8x32xf32> -> vector<8x32xf32>
    %c0_22 = arith.constant 0 : index
    %c32 = arith.constant 32 : index
    %61 = vector.load %arg12[%c0_22, %c32] : memref<16x128xf32, #tpu.memory_space<vmem>>, vector<8x32xf32>
    tpu.vector_store %arg12[%c0_22, %c32], %60 {strides = array<i32>} : memref<16x128xf32, #tpu.memory_space<vmem>>, vector<8x32xf32>,
    %62 = vector.extract_strided_slice %21 {offsets = [0, 64], sizes = [8, 32], strides = [1, 1]} : vector<8x128xbf16> to vector<8x32xbf16>
    %63 = vector.extract_strided_slice %22 {offsets = [0, 64], sizes = [8, 32], strides = [1, 1]} : vector<8x128xbf16> to vector<8x32xbf16>
    %cst_23 = arith.constant dense<0.000000e+00> : vector<8x8xf32>
    %64 = tpu.matmul %62, %63, %cst_23 {dimension_numbers = #tpu.dot_dimension_numbers<[1], [1], [0], [0], [0, 0, 1, 0], [], []>} : vector<8x32xbf16>, vector<8x32xbf16>, vector<8x8xf32> -> vector<8x8xf32>
    %cst_24 = arith.constant 0.176776692 : f32
    %65 = vector.broadcast %cst_24 : f32 to vector<8x8xf32>
    %66 = arith.mulf %64, %65 : vector<8x8xf32>
    %cst_25 = arith.constant dense<0xFF800000> : vector<8xf32>
    %67 = vector.multi_reduction <maximumf>, %66, %cst_25 [1] : vector<8x8xf32> to vector<8xf32>
    %68 = vector.shape_cast %67 : vector<8xf32> to vector<8x1xf32>
    %69 = vector.broadcast %68 : vector<8x1xf32> to vector<8x8xf32>
    %70 = arith.subf %66, %69 : vector<8x8xf32>
    %71 = math.exp %70 : vector<8x8xf32>
    %cst_26 = arith.constant dense<0.000000e+00> : vector<8xf32>
    %72 = vector.multi_reduction <add>, %71, %cst_26 [1] : vector<8x8xf32> to vector<8xf32>
    %73 = vector.shape_cast %72 : vector<8xf32> to vector<8x1xf32>
    %74 = tpu.reciprocal %73 {approx = true} : vector<8x1xf32> -> vector<8x1xf32>
    %75 = vector.broadcast %74 : vector<8x1xf32> to vector<8x8xf32>
    %76 = arith.mulf %71, %75 : vector<8x8xf32>
    %77 = arith.truncf %76 : vector<8x8xf32> to vector<8x8xbf16>
    %78 = vector.extract_strided_slice %23 {offsets = [0, 64], sizes = [8, 32], strides = [1, 1]} : vector<8x128xbf16> to vector<8x32xbf16>
    %cst_27 = arith.constant dense<0.000000e+00> : vector<8x32xf32>
    %79 = tpu.matmul %77, %78, %cst_27 {dimension_numbers = #tpu.dot_dimension_numbers<[1], [0], [0], [1], [0, 0, 1, 1], [], []>} : vector<8x8xbf16>, vector<8x32xbf16>, vector<8x32xf32> -> vector<8x32xf32>
    %c0_28 = arith.constant 0 : index
    %c64 = arith.constant 64 : index
    %80 = vector.load %arg12[%c0_28, %c64] : memref<16x128xf32, #tpu.memory_space<vmem>>, vector<8x32xf32>
    tpu.vector_store %arg12[%c0_28, %c64], %79 {strides = array<i32>} : memref<16x128xf32, #tpu.memory_space<vmem>>, vector<8x32xf32>,
    %81 = vector.extract_strided_slice %21 {offsets = [0, 96], sizes = [8, 32], strides = [1, 1]} : vector<8x128xbf16> to vector<8x32xbf16>
    %82 = vector.extract_strided_slice %22 {offsets = [0, 96], sizes = [8, 32], strides = [1, 1]} : vector<8x128xbf16> to vector<8x32xbf16>
    %cst_29 = arith.constant dense<0.000000e+00> : vector<8x8xf32>
    %83 = tpu.matmul %81, %82, %cst_29 {dimension_numbers = #tpu.dot_dimension_numbers<[1], [1], [0], [0], [0, 0, 1, 0], [], []>} : vector<8x32xbf16>, vector<8x32xbf16>, vector<8x8xf32> -> vector<8x8xf32>
    %cst_30 = arith.constant 0.176776692 : f32
    %84 = vector.broadcast %cst_30 : f32 to vector<8x8xf32>
    %85 = arith.mulf %83, %84 : vector<8x8xf32>
    %cst_31 = arith.constant dense<0xFF800000> : vector<8xf32>
    %86 = vector.multi_reduction <maximumf>, %85, %cst_31 [1] : vector<8x8xf32> to vector<8xf32>
    %87 = vector.shape_cast %86 : vector<8xf32> to vector<8x1xf32>
    %88 = vector.broadcast %87 : vector<8x1xf32> to vector<8x8xf32>
    %89 = arith.subf %85, %88 : vector<8x8xf32>
    %90 = math.exp %89 : vector<8x8xf32>
    %cst_32 = arith.constant dense<0.000000e+00> : vector<8xf32>
    %91 = vector.multi_reduction <add>, %90, %cst_32 [1] : vector<8x8xf32> to vector<8xf32>
    %92 = vector.shape_cast %91 : vector<8xf32> to vector<8x1xf32>
    %93 = tpu.reciprocal %92 {approx = true} : vector<8x1xf32> -> vector<8x1xf32>
    %94 = vector.broadcast %93 : vector<8x1xf32> to vector<8x8xf32>
    %95 = arith.mulf %90, %94 : vector<8x8xf32>
    %96 = arith.truncf %95 : vector<8x8xf32> to vector<8x8xbf16>
    %97 = vector.extract_strided_slice %23 {offsets = [0, 96], sizes = [8, 32], strides = [1, 1]} : vector<8x128xbf16> to vector<8x32xbf16>
    %cst_33 = arith.constant dense<0.000000e+00> : vector<8x32xf32>
    %98 = tpu.matmul %96, %97, %cst_33 {dimension_numbers = #tpu.dot_dimension_numbers<[1], [0], [0], [1], [0, 0, 1, 1], [], []>} : vector<8x8xbf16>, vector<8x32xbf16>, vector<8x32xf32> -> vector<8x32xf32>
    %c0_34 = arith.constant 0 : index
    %c96 = arith.constant 96 : index
    %99 = vector.load %arg12[%c0_34, %c96] : memref<16x128xf32, #tpu.memory_space<vmem>>, vector<8x32xf32>
    tpu.vector_store %arg12[%c0_34, %c96], %98 {strides = array<i32>} : memref<16x128xf32, #tpu.memory_space<vmem>>, vector<8x32xf32>,
    %100 = vector.extract_strided_slice %18 {offsets = [8, 0], sizes = [8, 128], strides = [1, 1]} : vector<16x128xbf16> to vector<8x128xbf16>
    %101 = vector.extract_strided_slice %19 {offsets = [8, 0], sizes = [8, 128], strides = [1, 1]} : vector<16x128xbf16> to vector<8x128xbf16>
    %102 = vector.extract_strided_slice %20 {offsets = [8, 0], sizes = [8, 128], strides = [1, 1]} : vector<16x128xbf16> to vector<8x128xbf16>
    %103 = vector.extract_strided_slice %100 {offsets = [0, 0], sizes = [8, 32], strides = [1, 1]} : vector<8x128xbf16> to vector<8x32xbf16>
    %104 = vector.extract_strided_slice %101 {offsets = [0, 0], sizes = [8, 32], strides = [1, 1]} : vector<8x128xbf16> to vector<8x32xbf16>
    %cst_35 = arith.constant dense<0.000000e+00> : vector<8x8xf32>
    %105 = tpu.matmul %103, %104, %cst_35 {dimension_numbers = #tpu.dot_dimension_numbers<[1], [1], [0], [0], [0, 0, 1, 0], [], []>} : vector<8x32xbf16>, vector<8x32xbf16>, vector<8x8xf32> -> vector<8x8xf32>
    %cst_36 = arith.constant 0.176776692 : f32
    %106 = vector.broadcast %cst_36 : f32 to vector<8x8xf32>
    %107 = arith.mulf %105, %106 : vector<8x8xf32>
    %cst_37 = arith.constant dense<0xFF800000> : vector<8xf32>
    %108 = vector.multi_reduction <maximumf>, %107, %cst_37 [1] : vector<8x8xf32> to vector<8xf32>
    %109 = vector.shape_cast %108 : vector<8xf32> to vector<8x1xf32>
    %110 = vector.broadcast %109 : vector<8x1xf32> to vector<8x8xf32>
    %111 = arith.subf %107, %110 : vector<8x8xf32>
    %112 = math.exp %111 : vector<8x8xf32>
    %cst_38 = arith.constant dense<0.000000e+00> : vector<8xf32>
    %113 = vector.multi_reduction <add>, %112, %cst_38 [1] : vector<8x8xf32> to vector<8xf32>
    %114 = vector.shape_cast %113 : vector<8xf32> to vector<8x1xf32>
    %115 = tpu.reciprocal %114 {approx = true} : vector<8x1xf32> -> vector<8x1xf32>
    %116 = vector.broadcast %115 : vector<8x1xf32> to vector<8x8xf32>
    %117 = arith.mulf %112, %116 : vector<8x8xf32>
    %118 = arith.truncf %117 : vector<8x8xf32> to vector<8x8xbf16>
    %119 = vector.extract_strided_slice %102 {offsets = [0, 0], sizes = [8, 32], strides = [1, 1]} : vector<8x128xbf16> to vector<8x32xbf16>
    %cst_39 = arith.constant dense<0.000000e+00> : vector<8x32xf32>
    %120 = tpu.matmul %118, %119, %cst_39 {dimension_numbers = #tpu.dot_dimension_numbers<[1], [0], [0], [1], [0, 0, 1, 1], [], []>} : vector<8x8xbf16>, vector<8x32xbf16>, vector<8x32xf32> -> vector<8x32xf32>
    %c8 = arith.constant 8 : index
    %c0_40 = arith.constant 0 : index
    %121 = vector.load %arg12[%c8, %c0_40] : memref<16x128xf32, #tpu.memory_space<vmem>>, vector<8x32xf32>
    tpu.vector_store %arg12[%c8, %c0_40], %120 {strides = array<i32>} : memref<16x128xf32, #tpu.memory_space<vmem>>, vector<8x32xf32>,
    %122 = vector.extract_strided_slice %100 {offsets = [0, 32], sizes = [8, 32], strides = [1, 1]} : vector<8x128xbf16> to vector<8x32xbf16>
    %123 = vector.extract_strided_slice %101 {offsets = [0, 32], sizes = [8, 32], strides = [1, 1]} : vector<8x128xbf16> to vector<8x32xbf16>
    %cst_41 = arith.constant dense<0.000000e+00> : vector<8x8xf32>
    %124 = tpu.matmul %122, %123, %cst_41 {dimension_numbers = #tpu.dot_dimension_numbers<[1], [1], [0], [0], [0, 0, 1, 0], [], []>} : vector<8x32xbf16>, vector<8x32xbf16>, vector<8x8xf32> -> vector<8x8xf32>
    %cst_42 = arith.constant 0.176776692 : f32
    %125 = vector.broadcast %cst_42 : f32 to vector<8x8xf32>
    %126 = arith.mulf %124, %125 : vector<8x8xf32>
    %cst_43 = arith.constant dense<0xFF800000> : vector<8xf32>
    %127 = vector.multi_reduction <maximumf>, %126, %cst_43 [1] : vector<8x8xf32> to vector<8xf32>
    %128 = vector.shape_cast %127 : vector<8xf32> to vector<8x1xf32>
    %129 = vector.broadcast %128 : vector<8x1xf32> to vector<8x8xf32>
    %130 = arith.subf %126, %129 : vector<8x8xf32>
    %131 = math.exp %130 : vector<8x8xf32>
    %cst_44 = arith.constant dense<0.000000e+00> : vector<8xf32>
    %132 = vector.multi_reduction <add>, %131, %cst_44 [1] : vector<8x8xf32> to vector<8xf32>
    %133 = vector.shape_cast %132 : vector<8xf32> to vector<8x1xf32>
    %134 = tpu.reciprocal %133 {approx = true} : vector<8x1xf32> -> vector<8x1xf32>
    %135 = vector.broadcast %134 : vector<8x1xf32> to vector<8x8xf32>
    %136 = arith.mulf %131, %135 : vector<8x8xf32>
    %137 = arith.truncf %136 : vector<8x8xf32> to vector<8x8xbf16>
    %138 = vector.extract_strided_slice %102 {offsets = [0, 32], sizes = [8, 32], strides = [1, 1]} : vector<8x128xbf16> to vector<8x32xbf16>
    %cst_45 = arith.constant dense<0.000000e+00> : vector<8x32xf32>
    %139 = tpu.matmul %137, %138, %cst_45 {dimension_numbers = #tpu.dot_dimension_numbers<[1], [0], [0], [1], [0, 0, 1, 1], [], []>} : vector<8x8xbf16>, vector<8x32xbf16>, vector<8x32xf32> -> vector<8x32xf32>
    %c8_46 = arith.constant 8 : index
    %c32_47 = arith.constant 32 : index
    %140 = vector.load %arg12[%c8_46, %c32_47] : memref<16x128xf32, #tpu.memory_space<vmem>>, vector<8x32xf32>
    tpu.vector_store %arg12[%c8_46, %c32_47], %139 {strides = array<i32>} : memref<16x128xf32, #tpu.memory_space<vmem>>, vector<8x32xf32>,
    %141 = vector.extract_strided_slice %100 {offsets = [0, 64], sizes = [8, 32], strides = [1, 1]} : vector<8x128xbf16> to vector<8x32xbf16>
    %142 = vector.extract_strided_slice %101 {offsets = [0, 64], sizes = [8, 32], strides = [1, 1]} : vector<8x128xbf16> to vector<8x32xbf16>
    %cst_48 = arith.constant dense<0.000000e+00> : vector<8x8xf32>
    %143 = tpu.matmul %141, %142, %cst_48 {dimension_numbers = #tpu.dot_dimension_numbers<[1], [1], [0], [0], [0, 0, 1, 0], [], []>} : vector<8x32xbf16>, vector<8x32xbf16>, vector<8x8xf32> -> vector<8x8xf32>
    %cst_49 = arith.constant 0.176776692 : f32
    %144 = vector.broadcast %cst_49 : f32 to vector<8x8xf32>
    %145 = arith.mulf %143, %144 : vector<8x8xf32>
    %cst_50 = arith.constant dense<0xFF800000> : vector<8xf32>
    %146 = vector.multi_reduction <maximumf>, %145, %cst_50 [1] : vector<8x8xf32> to vector<8xf32>
    %147 = vector.shape_cast %146 : vector<8xf32> to vector<8x1xf32>
    %148 = vector.broadcast %147 : vector<8x1xf32> to vector<8x8xf32>
    %149 = arith.subf %145, %148 : vector<8x8xf32>
    %150 = math.exp %149 : vector<8x8xf32>
    %cst_51 = arith.constant dense<0.000000e+00> : vector<8xf32>
    %151 = vector.multi_reduction <add>, %150, %cst_51 [1] : vector<8x8xf32> to vector<8xf32>
    %152 = vector.shape_cast %151 : vector<8xf32> to vector<8x1xf32>
    %153 = tpu.reciprocal %152 {approx = true} : vector<8x1xf32> -> vector<8x1xf32>
    %154 = vector.broadcast %153 : vector<8x1xf32> to vector<8x8xf32>
    %155 = arith.mulf %150, %154 : vector<8x8xf32>
    %156 = arith.truncf %155 : vector<8x8xf32> to vector<8x8xbf16>
    %157 = vector.extract_strided_slice %102 {offsets = [0, 64], sizes = [8, 32], strides = [1, 1]} : vector<8x128xbf16> to vector<8x32xbf16>
    %cst_52 = arith.constant dense<0.000000e+00> : vector<8x32xf32>
    %158 = tpu.matmul %156, %157, %cst_52 {dimension_numbers = #tpu.dot_dimension_numbers<[1], [0], [0], [1], [0, 0, 1, 1], [], []>} : vector<8x8xbf16>, vector<8x32xbf16>, vector<8x32xf32> -> vector<8x32xf32>
    %c8_53 = arith.constant 8 : index
    %c64_54 = arith.constant 64 : index
    %159 = vector.load %arg12[%c8_53, %c64_54] : memref<16x128xf32, #tpu.memory_space<vmem>>, vector<8x32xf32>
    tpu.vector_store %arg12[%c8_53, %c64_54], %158 {strides = array<i32>} : memref<16x128xf32, #tpu.memory_space<vmem>>, vector<8x32xf32>,
    %160 = vector.extract_strided_slice %100 {offsets = [0, 96], sizes = [8, 32], strides = [1, 1]} : vector<8x128xbf16> to vector<8x32xbf16>
    %161 = vector.extract_strided_slice %101 {offsets = [0, 96], sizes = [8, 32], strides = [1, 1]} : vector<8x128xbf16> to vector<8x32xbf16>
    %cst_55 = arith.constant dense<0.000000e+00> : vector<8x8xf32>
    %162 = tpu.matmul %160, %161, %cst_55 {dimension_numbers = #tpu.dot_dimension_numbers<[1], [1], [0], [0], [0, 0, 1, 0], [], []>} : vector<8x32xbf16>, vector<8x32xbf16>, vector<8x8xf32> -> vector<8x8xf32>
    %cst_56 = arith.constant 0.176776692 : f32
    %163 = vector.broadcast %cst_56 : f32 to vector<8x8xf32>
    %164 = arith.mulf %162, %163 : vector<8x8xf32>
    %cst_57 = arith.constant dense<0xFF800000> : vector<8xf32>
    %165 = vector.multi_reduction <maximumf>, %164, %cst_57 [1] : vector<8x8xf32> to vector<8xf32>
    %166 = vector.shape_cast %165 : vector<8xf32> to vector<8x1xf32>
    %167 = vector.broadcast %166 : vector<8x1xf32> to vector<8x8xf32>
    %168 = arith.subf %164, %167 : vector<8x8xf32>
    %169 = math.exp %168 : vector<8x8xf32>
    %cst_58 = arith.constant dense<0.000000e+00> : vector<8xf32>
    %170 = vector.multi_reduction <add>, %169, %cst_58 [1] : vector<8x8xf32> to vector<8xf32>
    %171 = vector.shape_cast %170 : vector<8xf32> to vector<8x1xf32>
    %172 = tpu.reciprocal %171 {approx = true} : vector<8x1xf32> -> vector<8x1xf32>
    %173 = vector.broadcast %172 : vector<8x1xf32> to vector<8x8xf32>
    %174 = arith.mulf %169, %173 : vector<8x8xf32>
    %175 = arith.truncf %174 : vector<8x8xf32> to vector<8x8xbf16>
    %176 = vector.extract_strided_slice %102 {offsets = [0, 96], sizes = [8, 32], strides = [1, 1]} : vector<8x128xbf16> to vector<8x32xbf16>
    %cst_59 = arith.constant dense<0.000000e+00> : vector<8x32xf32>
    %177 = tpu.matmul %175, %176, %cst_59 {dimension_numbers = #tpu.dot_dimension_numbers<[1], [0], [0], [1], [0, 0, 1, 1], [], []>} : vector<8x8xbf16>, vector<8x32xbf16>, vector<8x32xf32> -> vector<8x32xf32>
    %c8_60 = arith.constant 8 : index
    %c96_61 = arith.constant 96 : index
    %178 = vector.load %arg12[%c8_60, %c96_61] : memref<16x128xf32, #tpu.memory_space<vmem>>, vector<8x32xf32>
    tpu.vector_store %arg12[%c8_60, %c96_61], %177 {strides = array<i32>} : memref<16x128xf32, #tpu.memory_space<vmem>>, vector<8x32xf32>,
    %c0_62 = arith.constant 0 : index
    %c0_63 = arith.constant 0 : index
    %179 = vector.load %arg12[%c0_62, %c0_63] : memref<16x128xf32, #tpu.memory_space<vmem>>, vector<16x128xf32>
    %180 = arith.truncf %179 : vector<16x128xf32> to vector<16x128xbf16>
    %c0_64 = arith.constant 0 : index
    %c0_65 = arith.constant 0 : index
    %181 = vector.load %arg3[%c0_64, %c0_65] : memref<128x128xbf16, #tpu.memory_space<vmem>>, vector<128x128xbf16>
    %cst_66 = arith.constant dense<0.000000e+00> : vector<16x128xf32>
    %182 = tpu.matmul %180, %181, %cst_66 {dimension_numbers = #tpu.dot_dimension_numbers<[1], [0], [0], [1], [0, 0, 1, 1], [], []>} : vector<16x128xbf16>, vector<128x128xbf16>, vector<16x128xf32> -> vector<16x128xf32>
    %183 = vector.broadcast %17 : vector<1x128xf32> to vector<16x128xf32>
    %184 = arith.addf %182, %183 : vector<16x128xf32>
    %c8_67 = arith.constant 8 : index
    %c0_68 = arith.constant 0 : index
    %185 = vector.load %arg9[%c8_67, %c0_68] : memref<15x128xf32, #tpu.memory_space<vmem>>, vector<1x128xf32>
    %c9 = arith.constant 9 : index
    %c0_69 = arith.constant 0 : index
    %186 = vector.load %arg9[%c9, %c0_69] : memref<15x128xf32, #tpu.memory_space<vmem>>, vector<1x128xf32>
    %187 = arith.addf %0, %184 : vector<16x128xf32>
    %cst_70 = arith.constant dense<0.000000e+00> : vector<16xf32>
    %188 = vector.multi_reduction <add>, %187, %cst_70 [1] : vector<16x128xf32> to vector<16xf32>
    %189 = vector.shape_cast %188 : vector<16xf32> to vector<16x1xf32>
    %cst_71 = arith.constant 1.280000e+02 : f32
    %190 = vector.broadcast %cst_71 : f32 to vector<16x1xf32>
    %191 = arith.divf %189, %190 : vector<16x1xf32>
    %192 = vector.broadcast %191 : vector<16x1xf32> to vector<16x128xf32>
    %193 = arith.subf %187, %192 : vector<16x128xf32>
    %194 = arith.mulf %193, %193 : vector<16x128xf32>
    %cst_72 = arith.constant dense<0.000000e+00> : vector<16xf32>
    %195 = vector.multi_reduction <add>, %194, %cst_72 [1] : vector<16x128xf32> to vector<16xf32>
    %196 = vector.shape_cast %195 : vector<16xf32> to vector<16x1xf32>
    %cst_73 = arith.constant 1.280000e+02 : f32
    %197 = vector.broadcast %cst_73 : f32 to vector<16x1xf32>
    %198 = arith.divf %196, %197 : vector<16x1xf32>
    %199 = vector.broadcast %191 : vector<16x1xf32> to vector<16x128xf32>
    %200 = arith.subf %187, %199 : vector<16x128xf32>
    %cst_74 = arith.constant 9.99999974E-6 : f32
    %201 = vector.broadcast %cst_74 : f32 to vector<16x1xf32>
    %202 = arith.addf %198, %201 : vector<16x1xf32>
    %203 = math.rsqrt %202 : vector<16x1xf32>
    %204 = vector.broadcast %203 : vector<16x1xf32> to vector<16x128xf32>
    %205 = arith.mulf %200, %204 : vector<16x128xf32>
    %206 = vector.broadcast %185 : vector<1x128xf32> to vector<16x128xf32>
    %207 = arith.mulf %205, %206 : vector<16x128xf32>
    %208 = vector.broadcast %186 : vector<1x128xf32> to vector<16x128xf32>
    %209 = arith.addf %207, %208 : vector<16x128xf32>
    %210 = arith.truncf %209 : vector<16x128xf32> to vector<16x128xbf16>
    %c0_75 = arith.constant 0 : index
    %c0_76 = arith.constant 0 : index
    %211 = vector.load %arg4[%c0_75, %c0_76] : memref<128x128xbf16, #tpu.memory_space<vmem>>, vector<128x128xbf16>
    %cst_77 = arith.constant dense<0.000000e+00> : vector<16x128xf32>
    %212 = tpu.matmul %210, %211, %cst_77 {dimension_numbers = #tpu.dot_dimension_numbers<[1], [0], [0], [1], [0, 0, 1, 1], [], []>} : vector<16x128xbf16>, vector<128x128xbf16>, vector<16x128xf32> -> vector<16x128xf32>
    %c4 = arith.constant 4 : index
    %c0_78 = arith.constant 0 : index
    %213 = vector.load %arg9[%c4, %c0_78] : memref<15x128xf32, #tpu.memory_space<vmem>>, vector<1x128xf32>
    %214 = vector.broadcast %213 : vector<1x128xf32> to vector<16x128xf32>
    %215 = arith.addf %212, %214 : vector<16x128xf32>
    %216 = arith.truncf %1 : vector<32x128xf32> to vector<32x128xbf16>
    %c0_79 = arith.constant 0 : index
    %c0_80 = arith.constant 0 : index
    %217 = vector.load %arg5[%c0_79, %c0_80] : memref<128x256xbf16, #tpu.memory_space<vmem>>, vector<128x256xbf16>
    %cst_81 = arith.constant dense<0.000000e+00> : vector<32x256xf32>
    %218 = tpu.matmul %216, %217, %cst_81 {dimension_numbers = #tpu.dot_dimension_numbers<[1], [0], [0], [1], [0, 0, 1, 1], [], []>} : vector<32x128xbf16>, vector<128x256xbf16>, vector<32x256xf32> -> vector<32x256xf32>
    %219 = vector.extract_strided_slice %218 {offsets = [0, 0], sizes = [32, 128], strides = [1, 1]} : vector<32x256xf32> to vector<32x128xf32>
    %c5 = arith.constant 5 : index
    %c0_82 = arith.constant 0 : index
    %220 = vector.load %arg9[%c5, %c0_82] : memref<15x128xf32, #tpu.memory_space<vmem>>, vector<1x128xf32>
    %221 = vector.broadcast %220 : vector<1x128xf32> to vector<32x128xf32>
    %222 = arith.addf %219, %221 : vector<32x128xf32>
    %223 = vector.extract_strided_slice %218 {offsets = [0, 128], sizes = [32, 128], strides = [1, 1]} : vector<32x256xf32> to vector<32x128xf32>
    %c6 = arith.constant 6 : index
    %c0_83 = arith.constant 0 : index
    %224 = vector.load %arg9[%c6, %c0_83] : memref<15x128xf32, #tpu.memory_space<vmem>>, vector<1x128xf32>
    %225 = vector.broadcast %224 : vector<1x128xf32> to vector<32x128xf32>
    %226 = arith.addf %223, %225 : vector<32x128xf32>
    %c7 = arith.constant 7 : index
    %c0_84 = arith.constant 0 : index
    %227 = vector.load %arg9[%c7, %c0_84] : memref<15x128xf32, #tpu.memory_space<vmem>>, vector<1x128xf32>
    %228 = arith.truncf %215 : vector<16x128xf32> to vector<16x128xbf16>
    %229 = arith.truncf %222 : vector<32x128xf32> to vector<32x128xbf16>
    %230 = arith.truncf %226 : vector<32x128xf32> to vector<32x128xbf16>
    %231 = vector.extract_strided_slice %228 {offsets = [0, 0], sizes = [8, 128], strides = [1, 1]} : vector<16x128xbf16> to vector<8x128xbf16>
    %232 = vector.extract_strided_slice %229 {offsets = [0, 0], sizes = [16, 128], strides = [1, 1]} : vector<32x128xbf16> to vector<16x128xbf16>
    %233 = vector.extract_strided_slice %230 {offsets = [0, 0], sizes = [16, 128], strides = [1, 1]} : vector<32x128xbf16> to vector<16x128xbf16>
    %234 = vector.extract_strided_slice %231 {offsets = [0, 0], sizes = [8, 32], strides = [1, 1]} : vector<8x128xbf16> to vector<8x32xbf16>
    %235 = vector.extract_strided_slice %232 {offsets = [0, 0], sizes = [16, 32], strides = [1, 1]} : vector<16x128xbf16> to vector<16x32xbf16>
    %cst_85 = arith.constant dense<0.000000e+00> : vector<8x16xf32>
    %236 = tpu.matmul %234, %235, %cst_85 {dimension_numbers = #tpu.dot_dimension_numbers<[1], [1], [0], [0], [0, 0, 1, 0], [], []>} : vector<8x32xbf16>, vector<16x32xbf16>, vector<8x16xf32> -> vector<8x16xf32>
    %cst_86 = arith.constant 0.176776692 : f32
    %237 = vector.broadcast %cst_86 : f32 to vector<8x16xf32>
    %238 = arith.mulf %236, %237 : vector<8x16xf32>
    %cst_87 = arith.constant dense<0xFF800000> : vector<8xf32>
    %239 = vector.multi_reduction <maximumf>, %238, %cst_87 [1] : vector<8x16xf32> to vector<8xf32>
    %240 = vector.shape_cast %239 : vector<8xf32> to vector<8x1xf32>
    %241 = vector.broadcast %240 : vector<8x1xf32> to vector<8x16xf32>
    %242 = arith.subf %238, %241 : vector<8x16xf32>
    %243 = math.exp %242 : vector<8x16xf32>
    %cst_88 = arith.constant dense<0.000000e+00> : vector<8xf32>
    %244 = vector.multi_reduction <add>, %243, %cst_88 [1] : vector<8x16xf32> to vector<8xf32>
    %245 = vector.shape_cast %244 : vector<8xf32> to vector<8x1xf32>
    %246 = tpu.reciprocal %245 {approx = true} : vector<8x1xf32> -> vector<8x1xf32>
    %247 = vector.broadcast %246 : vector<8x1xf32> to vector<8x16xf32>
    %248 = arith.mulf %243, %247 : vector<8x16xf32>
    %249 = arith.truncf %248 : vector<8x16xf32> to vector<8x16xbf16>
    %250 = vector.extract_strided_slice %233 {offsets = [0, 0], sizes = [16, 32], strides = [1, 1]} : vector<16x128xbf16> to vector<16x32xbf16>
    %cst_89 = arith.constant dense<0.000000e+00> : vector<8x32xf32>
    %251 = tpu.matmul %249, %250, %cst_89 {dimension_numbers = #tpu.dot_dimension_numbers<[1], [0], [0], [1], [0, 0, 1, 1], [], []>} : vector<8x16xbf16>, vector<16x32xbf16>, vector<8x32xf32> -> vector<8x32xf32>
    %c0_90 = arith.constant 0 : index
    %c0_91 = arith.constant 0 : index
    %252 = vector.load %arg12[%c0_90, %c0_91] : memref<16x128xf32, #tpu.memory_space<vmem>>, vector<8x32xf32>
    tpu.vector_store %arg12[%c0_90, %c0_91], %251 {strides = array<i32>} : memref<16x128xf32, #tpu.memory_space<vmem>>, vector<8x32xf32>,
    %253 = vector.extract_strided_slice %231 {offsets = [0, 32], sizes = [8, 32], strides = [1, 1]} : vector<8x128xbf16> to vector<8x32xbf16>
    %254 = vector.extract_strided_slice %232 {offsets = [0, 32], sizes = [16, 32], strides = [1, 1]} : vector<16x128xbf16> to vector<16x32xbf16>
    %cst_92 = arith.constant dense<0.000000e+00> : vector<8x16xf32>
    %255 = tpu.matmul %253, %254, %cst_92 {dimension_numbers = #tpu.dot_dimension_numbers<[1], [1], [0], [0], [0, 0, 1, 0], [], []>} : vector<8x32xbf16>, vector<16x32xbf16>, vector<8x16xf32> -> vector<8x16xf32>
    %cst_93 = arith.constant 0.176776692 : f32
    %256 = vector.broadcast %cst_93 : f32 to vector<8x16xf32>
    %257 = arith.mulf %255, %256 : vector<8x16xf32>
    %cst_94 = arith.constant dense<0xFF800000> : vector<8xf32>
    %258 = vector.multi_reduction <maximumf>, %257, %cst_94 [1] : vector<8x16xf32> to vector<8xf32>
    %259 = vector.shape_cast %258 : vector<8xf32> to vector<8x1xf32>
    %260 = vector.broadcast %259 : vector<8x1xf32> to vector<8x16xf32>
    %261 = arith.subf %257, %260 : vector<8x16xf32>
    %262 = math.exp %261 : vector<8x16xf32>
    %cst_95 = arith.constant dense<0.000000e+00> : vector<8xf32>
    %263 = vector.multi_reduction <add>, %262, %cst_95 [1] : vector<8x16xf32> to vector<8xf32>
    %264 = vector.shape_cast %263 : vector<8xf32> to vector<8x1xf32>
    %265 = tpu.reciprocal %264 {approx = true} : vector<8x1xf32> -> vector<8x1xf32>
    %266 = vector.broadcast %265 : vector<8x1xf32> to vector<8x16xf32>
    %267 = arith.mulf %262, %266 : vector<8x16xf32>
    %268 = arith.truncf %267 : vector<8x16xf32> to vector<8x16xbf16>
    %269 = vector.extract_strided_slice %233 {offsets = [0, 32], sizes = [16, 32], strides = [1, 1]} : vector<16x128xbf16> to vector<16x32xbf16>
    %cst_96 = arith.constant dense<0.000000e+00> : vector<8x32xf32>
    %270 = tpu.matmul %268, %269, %cst_96 {dimension_numbers = #tpu.dot_dimension_numbers<[1], [0], [0], [1], [0, 0, 1, 1], [], []>} : vector<8x16xbf16>, vector<16x32xbf16>, vector<8x32xf32> -> vector<8x32xf32>
    %c0_97 = arith.constant 0 : index
    %c32_98 = arith.constant 32 : index
    %271 = vector.load %arg12[%c0_97, %c32_98] : memref<16x128xf32, #tpu.memory_space<vmem>>, vector<8x32xf32>
    tpu.vector_store %arg12[%c0_97, %c32_98], %270 {strides = array<i32>} : memref<16x128xf32, #tpu.memory_space<vmem>>, vector<8x32xf32>,
    %272 = vector.extract_strided_slice %231 {offsets = [0, 64], sizes = [8, 32], strides = [1, 1]} : vector<8x128xbf16> to vector<8x32xbf16>
    %273 = vector.extract_strided_slice %232 {offsets = [0, 64], sizes = [16, 32], strides = [1, 1]} : vector<16x128xbf16> to vector<16x32xbf16>
    %cst_99 = arith.constant dense<0.000000e+00> : vector<8x16xf32>
    %274 = tpu.matmul %272, %273, %cst_99 {dimension_numbers = #tpu.dot_dimension_numbers<[1], [1], [0], [0], [0, 0, 1, 0], [], []>} : vector<8x32xbf16>, vector<16x32xbf16>, vector<8x16xf32> -> vector<8x16xf32>
    %cst_100 = arith.constant 0.176776692 : f32
    %275 = vector.broadcast %cst_100 : f32 to vector<8x16xf32>
    %276 = arith.mulf %274, %275 : vector<8x16xf32>
    %cst_101 = arith.constant dense<0xFF800000> : vector<8xf32>
    %277 = vector.multi_reduction <maximumf>, %276, %cst_101 [1] : vector<8x16xf32> to vector<8xf32>
    %278 = vector.shape_cast %277 : vector<8xf32> to vector<8x1xf32>
    %279 = vector.broadcast %278 : vector<8x1xf32> to vector<8x16xf32>
    %280 = arith.subf %276, %279 : vector<8x16xf32>
    %281 = math.exp %280 : vector<8x16xf32>
    %cst_102 = arith.constant dense<0.000000e+00> : vector<8xf32>
    %282 = vector.multi_reduction <add>, %281, %cst_102 [1] : vector<8x16xf32> to vector<8xf32>
    %283 = vector.shape_cast %282 : vector<8xf32> to vector<8x1xf32>
    %284 = tpu.reciprocal %283 {approx = true} : vector<8x1xf32> -> vector<8x1xf32>
    %285 = vector.broadcast %284 : vector<8x1xf32> to vector<8x16xf32>
    %286 = arith.mulf %281, %285 : vector<8x16xf32>
    %287 = arith.truncf %286 : vector<8x16xf32> to vector<8x16xbf16>
    %288 = vector.extract_strided_slice %233 {offsets = [0, 64], sizes = [16, 32], strides = [1, 1]} : vector<16x128xbf16> to vector<16x32xbf16>
    %cst_103 = arith.constant dense<0.000000e+00> : vector<8x32xf32>
    %289 = tpu.matmul %287, %288, %cst_103 {dimension_numbers = #tpu.dot_dimension_numbers<[1], [0], [0], [1], [0, 0, 1, 1], [], []>} : vector<8x16xbf16>, vector<16x32xbf16>, vector<8x32xf32> -> vector<8x32xf32>
    %c0_104 = arith.constant 0 : index
    %c64_105 = arith.constant 64 : index
    %290 = vector.load %arg12[%c0_104, %c64_105] : memref<16x128xf32, #tpu.memory_space<vmem>>, vector<8x32xf32>
    tpu.vector_store %arg12[%c0_104, %c64_105], %289 {strides = array<i32>} : memref<16x128xf32, #tpu.memory_space<vmem>>, vector<8x32xf32>,
    %291 = vector.extract_strided_slice %231 {offsets = [0, 96], sizes = [8, 32], strides = [1, 1]} : vector<8x128xbf16> to vector<8x32xbf16>
    %292 = vector.extract_strided_slice %232 {offsets = [0, 96], sizes = [16, 32], strides = [1, 1]} : vector<16x128xbf16> to vector<16x32xbf16>
    %cst_106 = arith.constant dense<0.000000e+00> : vector<8x16xf32>
    %293 = tpu.matmul %291, %292, %cst_106 {dimension_numbers = #tpu.dot_dimension_numbers<[1], [1], [0], [0], [0, 0, 1, 0], [], []>} : vector<8x32xbf16>, vector<16x32xbf16>, vector<8x16xf32> -> vector<8x16xf32>
    %cst_107 = arith.constant 0.176776692 : f32
    %294 = vector.broadcast %cst_107 : f32 to vector<8x16xf32>
    %295 = arith.mulf %293, %294 : vector<8x16xf32>
    %cst_108 = arith.constant dense<0xFF800000> : vector<8xf32>
    %296 = vector.multi_reduction <maximumf>, %295, %cst_108 [1] : vector<8x16xf32> to vector<8xf32>
    %297 = vector.shape_cast %296 : vector<8xf32> to vector<8x1xf32>
    %298 = vector.broadcast %297 : vector<8x1xf32> to vector<8x16xf32>
    %299 = arith.subf %295, %298 : vector<8x16xf32>
    %300 = math.exp %299 : vector<8x16xf32>
    %cst_109 = arith.constant dense<0.000000e+00> : vector<8xf32>
    %301 = vector.multi_reduction <add>, %300, %cst_109 [1] : vector<8x16xf32> to vector<8xf32>
    %302 = vector.shape_cast %301 : vector<8xf32> to vector<8x1xf32>
    %303 = tpu.reciprocal %302 {approx = true} : vector<8x1xf32> -> vector<8x1xf32>
    %304 = vector.broadcast %303 : vector<8x1xf32> to vector<8x16xf32>
    %305 = arith.mulf %300, %304 : vector<8x16xf32>
    %306 = arith.truncf %305 : vector<8x16xf32> to vector<8x16xbf16>
    %307 = vector.extract_strided_slice %233 {offsets = [0, 96], sizes = [16, 32], strides = [1, 1]} : vector<16x128xbf16> to vector<16x32xbf16>
    %cst_110 = arith.constant dense<0.000000e+00> : vector<8x32xf32>
    %308 = tpu.matmul %306, %307, %cst_110 {dimension_numbers = #tpu.dot_dimension_numbers<[1], [0], [0], [1], [0, 0, 1, 1], [], []>} : vector<8x16xbf16>, vector<16x32xbf16>, vector<8x32xf32> -> vector<8x32xf32>
    %c0_111 = arith.constant 0 : index
    %c96_112 = arith.constant 96 : index
    %309 = vector.load %arg12[%c0_111, %c96_112] : memref<16x128xf32, #tpu.memory_space<vmem>>, vector<8x32xf32>
    tpu.vector_store %arg12[%c0_111, %c96_112], %308 {strides = array<i32>} : memref<16x128xf32, #tpu.memory_space<vmem>>, vector<8x32xf32>,
    %310 = vector.extract_strided_slice %228 {offsets = [8, 0], sizes = [8, 128], strides = [1, 1]} : vector<16x128xbf16> to vector<8x128xbf16>
    %311 = vector.extract_strided_slice %229 {offsets = [16, 0], sizes = [16, 128], strides = [1, 1]} : vector<32x128xbf16> to vector<16x128xbf16>
    %312 = vector.extract_strided_slice %230 {offsets = [16, 0], sizes = [16, 128], strides = [1, 1]} : vector<32x128xbf16> to vector<16x128xbf16>
    %313 = vector.extract_strided_slice %310 {offsets = [0, 0], sizes = [8, 32], strides = [1, 1]} : vector<8x128xbf16> to vector<8x32xbf16>
    %314 = vector.extract_strided_slice %311 {offsets = [0, 0], sizes = [16, 32], strides = [1, 1]} : vector<16x128xbf16> to vector<16x32xbf16>
    %cst_113 = arith.constant dense<0.000000e+00> : vector<8x16xf32>
    %315 = tpu.matmul %313, %314, %cst_113 {dimension_numbers = #tpu.dot_dimension_numbers<[1], [1], [0], [0], [0, 0, 1, 0], [], []>} : vector<8x32xbf16>, vector<16x32xbf16>, vector<8x16xf32> -> vector<8x16xf32>
    %cst_114 = arith.constant 0.176776692 : f32
    %316 = vector.broadcast %cst_114 : f32 to vector<8x16xf32>
    %317 = arith.mulf %315, %316 : vector<8x16xf32>
    %cst_115 = arith.constant dense<0xFF800000> : vector<8xf32>
    %318 = vector.multi_reduction <maximumf>, %317, %cst_115 [1] : vector<8x16xf32> to vector<8xf32>
    %319 = vector.shape_cast %318 : vector<8xf32> to vector<8x1xf32>
    %320 = vector.broadcast %319 : vector<8x1xf32> to vector<8x16xf32>
    %321 = arith.subf %317, %320 : vector<8x16xf32>
    %322 = math.exp %321 : vector<8x16xf32>
    %cst_116 = arith.constant dense<0.000000e+00> : vector<8xf32>
    %323 = vector.multi_reduction <add>, %322, %cst_116 [1] : vector<8x16xf32> to vector<8xf32>
    %324 = vector.shape_cast %323 : vector<8xf32> to vector<8x1xf32>
    %325 = tpu.reciprocal %324 {approx = true} : vector<8x1xf32> -> vector<8x1xf32>
    %326 = vector.broadcast %325 : vector<8x1xf32> to vector<8x16xf32>
    %327 = arith.mulf %322, %326 : vector<8x16xf32>
    %328 = arith.truncf %327 : vector<8x16xf32> to vector<8x16xbf16>
    %329 = vector.extract_strided_slice %312 {offsets = [0, 0], sizes = [16, 32], strides = [1, 1]} : vector<16x128xbf16> to vector<16x32xbf16>
    %cst_117 = arith.constant dense<0.000000e+00> : vector<8x32xf32>
    %330 = tpu.matmul %328, %329, %cst_117 {dimension_numbers = #tpu.dot_dimension_numbers<[1], [0], [0], [1], [0, 0, 1, 1], [], []>} : vector<8x16xbf16>, vector<16x32xbf16>, vector<8x32xf32> -> vector<8x32xf32>
    %c8_118 = arith.constant 8 : index
    %c0_119 = arith.constant 0 : index
    %331 = vector.load %arg12[%c8_118, %c0_119] : memref<16x128xf32, #tpu.memory_space<vmem>>, vector<8x32xf32>
    tpu.vector_store %arg12[%c8_118, %c0_119], %330 {strides = array<i32>} : memref<16x128xf32, #tpu.memory_space<vmem>>, vector<8x32xf32>,
    %332 = vector.extract_strided_slice %310 {offsets = [0, 32], sizes = [8, 32], strides = [1, 1]} : vector<8x128xbf16> to vector<8x32xbf16>
    %333 = vector.extract_strided_slice %311 {offsets = [0, 32], sizes = [16, 32], strides = [1, 1]} : vector<16x128xbf16> to vector<16x32xbf16>
    %cst_120 = arith.constant dense<0.000000e+00> : vector<8x16xf32>
    %334 = tpu.matmul %332, %333, %cst_120 {dimension_numbers = #tpu.dot_dimension_numbers<[1], [1], [0], [0], [0, 0, 1, 0], [], []>} : vector<8x32xbf16>, vector<16x32xbf16>, vector<8x16xf32> -> vector<8x16xf32>
    %cst_121 = arith.constant 0.176776692 : f32
    %335 = vector.broadcast %cst_121 : f32 to vector<8x16xf32>
    %336 = arith.mulf %334, %335 : vector<8x16xf32>
    %cst_122 = arith.constant dense<0xFF800000> : vector<8xf32>
    %337 = vector.multi_reduction <maximumf>, %336, %cst_122 [1] : vector<8x16xf32> to vector<8xf32>
    %338 = vector.shape_cast %337 : vector<8xf32> to vector<8x1xf32>
    %339 = vector.broadcast %338 : vector<8x1xf32> to vector<8x16xf32>
    %340 = arith.subf %336, %339 : vector<8x16xf32>
    %341 = math.exp %340 : vector<8x16xf32>
    %cst_123 = arith.constant dense<0.000000e+00> : vector<8xf32>
    %342 = vector.multi_reduction <add>, %341, %cst_123 [1] : vector<8x16xf32> to vector<8xf32>
    %343 = vector.shape_cast %342 : vector<8xf32> to vector<8x1xf32>
    %344 = tpu.reciprocal %343 {approx = true} : vector<8x1xf32> -> vector<8x1xf32>
    %345 = vector.broadcast %344 : vector<8x1xf32> to vector<8x16xf32>
    %346 = arith.mulf %341, %345 : vector<8x16xf32>
    %347 = arith.truncf %346 : vector<8x16xf32> to vector<8x16xbf16>
    %348 = vector.extract_strided_slice %312 {offsets = [0, 32], sizes = [16, 32], strides = [1, 1]} : vector<16x128xbf16> to vector<16x32xbf16>
    %cst_124 = arith.constant dense<0.000000e+00> : vector<8x32xf32>
    %349 = tpu.matmul %347, %348, %cst_124 {dimension_numbers = #tpu.dot_dimension_numbers<[1], [0], [0], [1], [0, 0, 1, 1], [], []>} : vector<8x16xbf16>, vector<16x32xbf16>, vector<8x32xf32> -> vector<8x32xf32>
    %c8_125 = arith.constant 8 : index
    %c32_126 = arith.constant 32 : index
    %350 = vector.load %arg12[%c8_125, %c32_126] : memref<16x128xf32, #tpu.memory_space<vmem>>, vector<8x32xf32>
    tpu.vector_store %arg12[%c8_125, %c32_126], %349 {strides = array<i32>} : memref<16x128xf32, #tpu.memory_space<vmem>>, vector<8x32xf32>,
    %351 = vector.extract_strided_slice %310 {offsets = [0, 64], sizes = [8, 32], strides = [1, 1]} : vector<8x128xbf16> to vector<8x32xbf16>
    %352 = vector.extract_strided_slice %311 {offsets = [0, 64], sizes = [16, 32], strides = [1, 1]} : vector<16x128xbf16> to vector<16x32xbf16>
    %cst_127 = arith.constant dense<0.000000e+00> : vector<8x16xf32>
    %353 = tpu.matmul %351, %352, %cst_127 {dimension_numbers = #tpu.dot_dimension_numbers<[1], [1], [0], [0], [0, 0, 1, 0], [], []>} : vector<8x32xbf16>, vector<16x32xbf16>, vector<8x16xf32> -> vector<8x16xf32>
    %cst_128 = arith.constant 0.176776692 : f32
    %354 = vector.broadcast %cst_128 : f32 to vector<8x16xf32>
    %355 = arith.mulf %353, %354 : vector<8x16xf32>
    %cst_129 = arith.constant dense<0xFF800000> : vector<8xf32>
    %356 = vector.multi_reduction <maximumf>, %355, %cst_129 [1] : vector<8x16xf32> to vector<8xf32>
    %357 = vector.shape_cast %356 : vector<8xf32> to vector<8x1xf32>
    %358 = vector.broadcast %357 : vector<8x1xf32> to vector<8x16xf32>
    %359 = arith.subf %355, %358 : vector<8x16xf32>
    %360 = math.exp %359 : vector<8x16xf32>
    %cst_130 = arith.constant dense<0.000000e+00> : vector<8xf32>
    %361 = vector.multi_reduction <add>, %360, %cst_130 [1] : vector<8x16xf32> to vector<8xf32>
    %362 = vector.shape_cast %361 : vector<8xf32> to vector<8x1xf32>
    %363 = tpu.reciprocal %362 {approx = true} : vector<8x1xf32> -> vector<8x1xf32>
    %364 = vector.broadcast %363 : vector<8x1xf32> to vector<8x16xf32>
    %365 = arith.mulf %360, %364 : vector<8x16xf32>
    %366 = arith.truncf %365 : vector<8x16xf32> to vector<8x16xbf16>
    %367 = vector.extract_strided_slice %312 {offsets = [0, 64], sizes = [16, 32], strides = [1, 1]} : vector<16x128xbf16> to vector<16x32xbf16>
    %cst_131 = arith.constant dense<0.000000e+00> : vector<8x32xf32>
    %368 = tpu.matmul %366, %367, %cst_131 {dimension_numbers = #tpu.dot_dimension_numbers<[1], [0], [0], [1], [0, 0, 1, 1], [], []>} : vector<8x16xbf16>, vector<16x32xbf16>, vector<8x32xf32> -> vector<8x32xf32>
    %c8_132 = arith.constant 8 : index
    %c64_133 = arith.constant 64 : index
    %369 = vector.load %arg12[%c8_132, %c64_133] : memref<16x128xf32, #tpu.memory_space<vmem>>, vector<8x32xf32>
    tpu.vector_store %arg12[%c8_132, %c64_133], %368 {strides = array<i32>} : memref<16x128xf32, #tpu.memory_space<vmem>>, vector<8x32xf32>,
    %370 = vector.extract_strided_slice %310 {offsets = [0, 96], sizes = [8, 32], strides = [1, 1]} : vector<8x128xbf16> to vector<8x32xbf16>
    %371 = vector.extract_strided_slice %311 {offsets = [0, 96], sizes = [16, 32], strides = [1, 1]} : vector<16x128xbf16> to vector<16x32xbf16>
    %cst_134 = arith.constant dense<0.000000e+00> : vector<8x16xf32>
    %372 = tpu.matmul %370, %371, %cst_134 {dimension_numbers = #tpu.dot_dimension_numbers<[1], [1], [0], [0], [0, 0, 1, 0], [], []>} : vector<8x32xbf16>, vector<16x32xbf16>, vector<8x16xf32> -> vector<8x16xf32>
    %cst_135 = arith.constant 0.176776692 : f32
    %373 = vector.broadcast %cst_135 : f32 to vector<8x16xf32>
    %374 = arith.mulf %372, %373 : vector<8x16xf32>
    %cst_136 = arith.constant dense<0xFF800000> : vector<8xf32>
    %375 = vector.multi_reduction <maximumf>, %374, %cst_136 [1] : vector<8x16xf32> to vector<8xf32>
    %376 = vector.shape_cast %375 : vector<8xf32> to vector<8x1xf32>
    %377 = vector.broadcast %376 : vector<8x1xf32> to vector<8x16xf32>
    %378 = arith.subf %374, %377 : vector<8x16xf32>
    %379 = math.exp %378 : vector<8x16xf32>
    %cst_137 = arith.constant dense<0.000000e+00> : vector<8xf32>
    %380 = vector.multi_reduction <add>, %379, %cst_137 [1] : vector<8x16xf32> to vector<8xf32>
    %381 = vector.shape_cast %380 : vector<8xf32> to vector<8x1xf32>
    %382 = tpu.reciprocal %381 {approx = true} : vector<8x1xf32> -> vector<8x1xf32>
    %383 = vector.broadcast %382 : vector<8x1xf32> to vector<8x16xf32>
    %384 = arith.mulf %379, %383 : vector<8x16xf32>
    %385 = arith.truncf %384 : vector<8x16xf32> to vector<8x16xbf16>
    %386 = vector.extract_strided_slice %312 {offsets = [0, 96], sizes = [16, 32], strides = [1, 1]} : vector<16x128xbf16> to vector<16x32xbf16>
    %cst_138 = arith.constant dense<0.000000e+00> : vector<8x32xf32>
    %387 = tpu.matmul %385, %386, %cst_138 {dimension_numbers = #tpu.dot_dimension_numbers<[1], [0], [0], [1], [0, 0, 1, 1], [], []>} : vector<8x16xbf16>, vector<16x32xbf16>, vector<8x32xf32> -> vector<8x32xf32>
    %c8_139 = arith.constant 8 : index
    %c96_140 = arith.constant 96 : index
    %388 = vector.load %arg12[%c8_139, %c96_140] : memref<16x128xf32, #tpu.memory_space<vmem>>, vector<8x32xf32>
    tpu.vector_store %arg12[%c8_139, %c96_140], %387 {strides = array<i32>} : memref<16x128xf32, #tpu.memory_space<vmem>>, vector<8x32xf32>,
    %c0_141 = arith.constant 0 : index
    %c0_142 = arith.constant 0 : index
    %389 = vector.load %arg12[%c0_141, %c0_142] : memref<16x128xf32, #tpu.memory_space<vmem>>, vector<16x128xf32>
    %390 = arith.truncf %389 : vector<16x128xf32> to vector<16x128xbf16>
    %c0_143 = arith.constant 0 : index
    %c0_144 = arith.constant 0 : index
    %391 = vector.load %arg6[%c0_143, %c0_144] : memref<128x128xbf16, #tpu.memory_space<vmem>>, vector<128x128xbf16>
    %cst_145 = arith.constant dense<0.000000e+00> : vector<16x128xf32>
    %392 = tpu.matmul %390, %391, %cst_145 {dimension_numbers = #tpu.dot_dimension_numbers<[1], [0], [0], [1], [0, 0, 1, 1], [], []>} : vector<16x128xbf16>, vector<128x128xbf16>, vector<16x128xf32> -> vector<16x128xf32>
    %393 = vector.broadcast %227 : vector<1x128xf32> to vector<16x128xf32>
    %394 = arith.addf %392, %393 : vector<16x128xf32>
    %c10 = arith.constant 10 : index
    %c0_146 = arith.constant 0 : index
    %395 = vector.load %arg9[%c10, %c0_146] : memref<15x128xf32, #tpu.memory_space<vmem>>, vector<1x128xf32>
    %c11 = arith.constant 11 : index
    %c0_147 = arith.constant 0 : index
    %396 = vector.load %arg9[%c11, %c0_147] : memref<15x128xf32, #tpu.memory_space<vmem>>, vector<1x128xf32>
    %397 = arith.addf %209, %394 : vector<16x128xf32>
    %cst_148 = arith.constant dense<0.000000e+00> : vector<16xf32>
    %398 = vector.multi_reduction <add>, %397, %cst_148 [1] : vector<16x128xf32> to vector<16xf32>
    %399 = vector.shape_cast %398 : vector<16xf32> to vector<16x1xf32>
    %cst_149 = arith.constant 1.280000e+02 : f32
    %400 = vector.broadcast %cst_149 : f32 to vector<16x1xf32>
    %401 = arith.divf %399, %400 : vector<16x1xf32>
    %402 = vector.broadcast %401 : vector<16x1xf32> to vector<16x128xf32>
    %403 = arith.subf %397, %402 : vector<16x128xf32>
    %404 = arith.mulf %403, %403 : vector<16x128xf32>
    %cst_150 = arith.constant dense<0.000000e+00> : vector<16xf32>
    %405 = vector.multi_reduction <add>, %404, %cst_150 [1] : vector<16x128xf32> to vector<16xf32>
    %406 = vector.shape_cast %405 : vector<16xf32> to vector<16x1xf32>
    %cst_151 = arith.constant 1.280000e+02 : f32
    %407 = vector.broadcast %cst_151 : f32 to vector<16x1xf32>
    %408 = arith.divf %406, %407 : vector<16x1xf32>
    %409 = vector.broadcast %401 : vector<16x1xf32> to vector<16x128xf32>
    %410 = arith.subf %397, %409 : vector<16x128xf32>
    %cst_152 = arith.constant 9.99999974E-6 : f32
    %411 = vector.broadcast %cst_152 : f32 to vector<16x1xf32>
    %412 = arith.addf %408, %411 : vector<16x1xf32>
    %413 = math.rsqrt %412 : vector<16x1xf32>
    %414 = vector.broadcast %413 : vector<16x1xf32> to vector<16x128xf32>
    %415 = arith.mulf %410, %414 : vector<16x128xf32>
    %416 = vector.broadcast %395 : vector<1x128xf32> to vector<16x128xf32>
    %417 = arith.mulf %415, %416 : vector<16x128xf32>
    %418 = vector.broadcast %396 : vector<1x128xf32> to vector<16x128xf32>
    %419 = arith.addf %417, %418 : vector<16x128xf32>
    %420 = arith.truncf %419 : vector<16x128xf32> to vector<16x128xbf16>
    %c0_153 = arith.constant 0 : index
    %c0_154 = arith.constant 0 : index
    %421 = vector.load %arg7[%c0_153, %c0_154] : memref<128x256xbf16, #tpu.memory_space<vmem>>, vector<128x256xbf16>
    %cst_155 = arith.constant dense<0.000000e+00> : vector<16x256xf32>
    %422 = tpu.matmul %420, %421, %cst_155 {dimension_numbers = #tpu.dot_dimension_numbers<[1], [0], [0], [1], [0, 0, 1, 1], [], []>} : vector<16x128xbf16>, vector<128x256xbf16>, vector<16x256xf32> -> vector<16x256xf32>
    %c0_156 = arith.constant 0 : index
    %c0_157 = arith.constant 0 : index
    %423 = vector.load %arg10[%c0_156, %c0_157] : memref<1x256xf32, #tpu.memory_space<vmem>>, vector<1x256xf32>
    %424 = vector.broadcast %423 : vector<1x256xf32> to vector<16x256xf32>
    %425 = arith.addf %422, %424 : vector<16x256xf32>
    %cst_158 = arith.constant 0.000000e+00 : f32
    %426 = vector.broadcast %cst_158 : f32 to vector<16x256xf32>
    %427 = arith.maximumf %425, %426 : vector<16x256xf32>
    %428 = arith.truncf %427 : vector<16x256xf32> to vector<16x256xbf16>
    %c0_159 = arith.constant 0 : index
    %c0_160 = arith.constant 0 : index
    %429 = vector.load %arg8[%c0_159, %c0_160] : memref<256x128xbf16, #tpu.memory_space<vmem>>, vector<256x128xbf16>
    %cst_161 = arith.constant dense<0.000000e+00> : vector<16x128xf32>
    %430 = tpu.matmul %428, %429, %cst_161 {dimension_numbers = #tpu.dot_dimension_numbers<[1], [0], [0], [1], [0, 0, 1, 1], [], []>} : vector<16x256xbf16>, vector<256x128xbf16>, vector<16x128xf32> -> vector<16x128xf32>
    %c12 = arith.constant 12 : index
    %c0_162 = arith.constant 0 : index
    %431 = vector.load %arg9[%c12, %c0_162] : memref<15x128xf32, #tpu.memory_space<vmem>>, vector<1x128xf32>
    %432 = vector.broadcast %431 : vector<1x128xf32> to vector<16x128xf32>
    %433 = arith.addf %430, %432 : vector<16x128xf32>
    %c13 = arith.constant 13 : index
    %c0_163 = arith.constant 0 : index
    %434 = vector.load %arg9[%c13, %c0_163] : memref<15x128xf32, #tpu.memory_space<vmem>>, vector<1x128xf32>
    %c14 = arith.constant 14 : index
    %c0_164 = arith.constant 0 : index
    %435 = vector.load %arg9[%c14, %c0_164] : memref<15x128xf32, #tpu.memory_space<vmem>>, vector<1x128xf32>
    %436 = arith.addf %419, %433 : vector<16x128xf32>
    %cst_165 = arith.constant dense<0.000000e+00> : vector<16xf32>
    %437 = vector.multi_reduction <add>, %436, %cst_165 [1] : vector<16x128xf32> to vector<16xf32>
    %438 = vector.shape_cast %437 : vector<16xf32> to vector<16x1xf32>
    %cst_166 = arith.constant 1.280000e+02 : f32
    %439 = vector.broadcast %cst_166 : f32 to vector<16x1xf32>
    %440 = arith.divf %438, %439 : vector<16x1xf32>
    %441 = vector.broadcast %440 : vector<16x1xf32> to vector<16x128xf32>
    %442 = arith.subf %436, %441 : vector<16x128xf32>
    %443 = arith.mulf %442, %442 : vector<16x128xf32>
    %cst_167 = arith.constant dense<0.000000e+00> : vector<16xf32>
    %444 = vector.multi_reduction <add>, %443, %cst_167 [1] : vector<16x128xf32> to vector<16xf32>
    %445 = vector.shape_cast %444 : vector<16xf32> to vector<16x1xf32>
    %cst_168 = arith.constant 1.280000e+02 : f32
    %446 = vector.broadcast %cst_168 : f32 to vector<16x1xf32>
    %447 = arith.divf %445, %446 : vector<16x1xf32>
    %448 = vector.broadcast %440 : vector<16x1xf32> to vector<16x128xf32>
    %449 = arith.subf %436, %448 : vector<16x128xf32>
    %cst_169 = arith.constant 9.99999974E-6 : f32
    %450 = vector.broadcast %cst_169 : f32 to vector<16x1xf32>
    %451 = arith.addf %447, %450 : vector<16x1xf32>
    %452 = math.rsqrt %451 : vector<16x1xf32>
    %453 = vector.broadcast %452 : vector<16x1xf32> to vector<16x128xf32>
    %454 = arith.mulf %449, %453 : vector<16x128xf32>
    %455 = vector.broadcast %434 : vector<1x128xf32> to vector<16x128xf32>
    %456 = arith.mulf %454, %455 : vector<16x128xf32>
    %457 = vector.broadcast %435 : vector<1x128xf32> to vector<16x128xf32>
    %458 = arith.addf %456, %457 : vector<16x128xf32>
    %c0_170 = arith.constant 0 : index
    %c0_171 = arith.constant 0 : index
    %459 = vector.load %arg11[%c0_170, %c0_171] : memref<16x128xf32, #tpu.memory_space<vmem>>, vector<16x128xf32>
    tpu.vector_store %arg11[%c0_170, %c0_171], %458 {strides = array<i32>} : memref<16x128xf32, #tpu.memory_space<vmem>>, vector<16x128xf32>,
    return
  }
}

</mosaic_0001>

<llo_original>
// kernel: _lambda_.1
$region0: #{_lambda_.1}
  #allocation0 [shape = 'u32[]', space=smem, size = 0x4, offset = 0x4, fixed_abs, tag = 'smem constant byte address 0x4 - core index']
  #allocation1 [shape = 'u32[144,128]{1,0:T(1,128)}', space=vmem, size = 0x12000, scoped, tag = 'internal scratch']
  #allocation2 [shape = 'f32[16,128]{1,0:T(8,128)}', space=vmem, size = 0x2000, scoped, tag = 'scratch operand']
  %s0 = inlined_call_operand.vmem [shape: f32[16,128], index: 0, kind: input, shape index: {}]
  %s1 = inlined_call_operand.vmem [shape: f32[32,128], index: 1, kind: input, shape index: {}]
  %s2 = inlined_call_operand.vmem [shape: bf16[128,384], index: 2, kind: input, shape index: {}]
  %s3 = inlined_call_operand.vmem [shape: bf16[128,128], index: 3, kind: input, shape index: {}]
  %s4 = inlined_call_operand.vmem [shape: bf16[128,128], index: 4, kind: input, shape index: {}]
  %s5 = inlined_call_operand.vmem [shape: bf16[128,256], index: 5, kind: input, shape index: {}]
  %s6 = inlined_call_operand.vmem [shape: bf16[128,128], index: 6, kind: input, shape index: {}]
  %s7 = inlined_call_operand.vmem [shape: bf16[128,256], index: 7, kind: input, shape index: {}]
  %s8 = inlined_call_operand.vmem [shape: bf16[256,128], index: 8, kind: input, shape index: {}]
  %s9 = inlined_call_operand.vmem [shape: f32[15,128], index: 9, kind: input, shape index: {}]
  %s10 = inlined_call_operand.vmem [shape: f32[1,256], index: 10, kind: input, shape index: {}]
  %s11 = inlined_call_operand.hbm [shape: f32[16,128], index: 11, kind: output, shape index: {}]
  %s12 = sld [smem:[#allocation0]]
  $region54: #{_lambda_.1} parent=0
    _
  %s14 = ssub.s32 1, %s12
  %s15 = scalar_select 0, %s14, %s12
  $region1: #{_lambda_.1} parent=0
    #allocation3 [shape = 'u8[8192]{0}', space=vmem, size = 0x2000, scoped, tag = 'output window, operand 0, single buffered']
    #allocation4 [shape = 's32[1]{0}', space=sflag, size = 0x4, scoped, tag = 'scoped memory for _lambda_.1']
    %16 = vsyncpa [#allocation4], 0
    // Predicated region
    $region2: #{_lambda_.1} parent=1 // pred_check
      _
    $region3: #{_lambda_.1} parent=1 // pred_check_branch
      %18 = sbr.rel (0) target = $region5
    $region4: #{_lambda_.1} parent=1 // pred_region
      _
    $region5: #{_lambda_.1} parent=1 // pred_fallthru
      _
    // Predicated region
    $region6: #{_lambda_.1} parent=1 // pred_check
      _
    $region7: #{_lambda_.1} parent=1 // pred_check_branch
      %20 = sbr.rel (0) target = $region9
    $region8: #{_lambda_.1} parent=1 // pred_region
      _
    $region9: #{_lambda_.1} parent=1 // pred_fallthru
      _
    // Predicated region
    $region10: #{_lambda_.1} parent=1 // pred_check
      _
    $region11: #{_lambda_.1} parent=1 // pred_check_branch
      %22 = sbr.rel (0) target = $region13
    $region12: #{_lambda_.1} parent=1 // pred_region
      _
    $region13: #{_lambda_.1} parent=1 // pred_fallthru
      _
    // Predicated region
    $region14: #{_lambda_.1} parent=1 // pred_check
      _
    $region15: #{_lambda_.1} parent=1 // pred_check_branch
      %24 = sbr.rel (0) target = $region17
    $region16: #{_lambda_.1} parent=1 // pred_region
      _
    $region17: #{_lambda_.1} parent=1 // pred_fallthru
      _
    // Predicated region
    $region18: #{_lambda_.1} parent=1 // pred_check
      _
    $region19: #{_lambda_.1} parent=1 // pred_check_branch
      %26 = sbr.rel (0) target = $region21
    $region20: #{_lambda_.1} parent=1 // pred_region
      _
    $region21: #{_lambda_.1} parent=1 // pred_fallthru
      _
    // Predicated region
    $region22: #{_lambda_.1} parent=1 // pred_check
      _
    $region23: #{_lambda_.1} parent=1 // pred_check_branch
      %28 = sbr.rel (0) target = $region25
    $region24: #{_lambda_.1} parent=1 // pred_region
      _
    $region25: #{_lambda_.1} parent=1 // pred_fallthru
      _
    // Predicated region
    $region26: #{_lambda_.1} parent=1 // pred_check
      _
    $region27: #{_lambda_.1} parent=1 // pred_check_branch
      %30 = sbr.rel (0) target = $region29
    $region28: #{_lambda_.1} parent=1 // pred_region
      _
    $region29: #{_lambda_.1} parent=1 // pred_fallthru
      _
    // Predicated region
    $region30: #{_lambda_.1} parent=1 // pred_check
      _
    $region31: #{_lambda_.1} parent=1 // pred_check_branch
      %32 = sbr.rel (0) target = $region33
    $region32: #{_lambda_.1} parent=1 // pred_region
      _
    $region33: #{_lambda_.1} parent=1 // pred_fallthru
      _
    // Predicated region
    $region34: #{_lambda_.1} parent=1 // pred_check
      _
    $region35: #{_lambda_.1} parent=1 // pred_check_branch
      %34 = sbr.rel (0) target = $region37
    $region36: #{_lambda_.1} parent=1 // pred_region
      _
    $region37: #{_lambda_.1} parent=1 // pred_fallthru
      _
    // Predicated region
    $region38: #{_lambda_.1} parent=1 // pred_check
      _
    $region39: #{_lambda_.1} parent=1 // pred_check_branch
      %36 = sbr.rel (0) target = $region41
    $region40: #{_lambda_.1} parent=1 // pred_region
      _
    $region41: #{_lambda_.1} parent=1 // pred_fallthru
      _
    // Predicated region
    $region42: #{_lambda_.1} parent=1 // pred_check
      _
    $region43: #{_lambda_.1} parent=1 // pred_check_branch
      %38 = sbr.rel (0) target = $region45
    $region44: #{_lambda_.1} parent=1 // pred_region
      _
    $region45: #{_lambda_.1} parent=1 // pred_fallthru
      _
    %v40 = vld [vmem:[%s0] sm:$0xff]
    %v41 = vld [vmem:[%s0 + $0x8] sm:$0xff]
    %v42 = vld [vmem:[%s1] sm:$0xff]
    %v43 = vld [vmem:[%s1 + $0x8] sm:$0xff]
    %v44 = vld [vmem:[%s1 + $0x10] sm:$0xff]
    %v45 = vld [vmem:[%s1 + $0x18] sm:$0xff]
    %v46 = vpack.c.bf16 %v41, %v40
    %v47 = vld [vmem:[%s2] sm:$0xff]
    %v48 = vld [vmem:[%s2 + $0x8] sm:$0xf]
    %v49 = vld [vmem:[%s2 + $0xc] sm:$0xff]
    %v50 = vld [vmem:[%s2 + $0x14] sm:$0xf]
    %v51 = vld [vmem:[%s2 + $0x18] sm:$0xff]
    %v52 = vld [vmem:[%s2 + $0x20] sm:$0xf]
    %v53 = vld [vmem:[%s2 + $0x24] sm:$0xff]
    %v54 = vld [vmem:[%s2 + $0x2c] sm:$0xf]
    %v55 = vld [vmem:[%s2 + $0x30] sm:$0xff]
    %v56 = vld [vmem:[%s2 + $0x38] sm:$0xf]
    %v57 = vld [vmem:[%s2 + $0x3c] sm:$0xff]
    %v58 = vld [vmem:[%s2 + $0x44] sm:$0xf]
    %v59 = vld [vmem:[%s2 + $0x48] sm:$0xff]
    %v60 = vld [vmem:[%s2 + $0x50] sm:$0xf]
    %v61 = vld [vmem:[%s2 + $0x54] sm:$0xff]
    %v62 = vld [vmem:[%s2 + $0x5c] sm:$0xf]
    %v63 = vld [vmem:[%s2 + $0x60] sm:$0xff]
    %v64 = vld [vmem:[%s2 + $0x68] sm:$0xf]
    %v65 = vld [vmem:[%s2 + $0x6c] sm:$0xff]
    %v66 = vld [vmem:[%s2 + $0x74] sm:$0xf]
    %v67 = vld [vmem:[%s2 + $0x78] sm:$0xff]
    %v68 = vld [vmem:[%s2 + $0x80] sm:$0xf]
    %v69 = vld [vmem:[%s2 + $0x84] sm:$0xff]
    %v70 = vld [vmem:[%s2 + $0x8c] sm:$0xf]
    %v71 = vld [vmem:[%s2 + $0x90] sm:$0xff]
    %v72 = vld [vmem:[%s2 + $0x98] sm:$0xf]
    %v73 = vld [vmem:[%s2 + $0x9c] sm:$0xff]
    %v74 = vld [vmem:[%s2 + $0xa4] sm:$0xf]
    %v75 = vld [vmem:[%s2 + $0xa8] sm:$0xff]
    %v76 = vld [vmem:[%s2 + $0xb0] sm:$0xf]
    %v77 = vld [vmem:[%s2 + $0xb4] sm:$0xff]
    %v78 = vld [vmem:[%s2 + $0xbc] sm:$0xf]
    %v111 = vunpack.c.l.b16 %v47
    %v112 = vunpack.c.h.b16 %v47
    %v113 = vunpack.c.l.b16 %v48
    %v114 = vunpack.c.l.b16 %v49
    %v115 = vunpack.c.h.b16 %v49
    %v116 = vunpack.c.l.b16 %v50
    %v117 = vunpack.c.l.b16 %v51
    %v118 = vunpack.c.h.b16 %v51
    %v119 = vunpack.c.l.b16 %v52
    %v120 = vunpack.c.l.b16 %v53
    %v121 = vunpack.c.h.b16 %v53
    %v122 = vunpack.c.l.b16 %v54
    %v123 = vunpack.c.l.b16 %v55
    %v124 = vunpack.c.h.b16 %v55
    %v125 = vunpack.c.l.b16 %v56
    %v126 = vunpack.c.l.b16 %v57
    %v127 = vunpack.c.h.b16 %v57
    %v128 = vunpack.c.l.b16 %v58
    %v129 = vunpack.c.l.b16 %v59
    %v130 = vunpack.c.h.b16 %v59
    %v131 = vunpack.c.l.b16 %v60
    %v132 = vunpack.c.l.b16 %v61
    %v133 = vunpack.c.h.b16 %v61
    %v134 = vunpack.c.l.b16 %v62
    %v135 = vunpack.c.l.b16 %v63
    %v136 = vunpack.c.h.b16 %v63
    %v137 = vunpack.c.l.b16 %v64
    %v138 = vunpack.c.l.b16 %v65
    %v139 = vunpack.c.h.b16 %v65
    %v140 = vunpack.c.l.b16 %v66
    %v141 = vunpack.c.l.b16 %v67
    %v142 = vunpack.c.h.b16 %v67
    %v143 = vunpack.c.l.b16 %v68
    %v144 = vunpack.c.l.b16 %v69
    %v145 = vunpack.c.h.b16 %v69
    %v146 = vunpack.c.l.b16 %v70
    %v147 = vunpack.c.l.b16 %v71
    %v148 = vunpack.c.h.b16 %v71
    %v149 = vunpack.c.l.b16 %v72
    %v150 = vunpack.c.l.b16 %v73
    %v151 = vunpack.c.h.b16 %v73
    %v152 = vunpack.c.l.b16 %v74
    %v153 = vunpack.c.l.b16 %v75
    %v154 = vunpack.c.h.b16 %v75
    %v155 = vunpack.c.l.b16 %v76
    %v156 = vunpack.c.l.b16 %v77
    %v157 = vunpack.c.h.b16 %v77
    %v158 = vunpack.c.l.b16 %v78
    %v159 = vpack.c.b16 %v114, %v111
    %v160 = vpack.c.b16 %v115, %v112
    %v161 = vpack.c.b16 %v116, %v113
    %v162 = vpack.c.b16 %v120, %v117
    %v163 = vpack.c.b16 %v121, %v118
    %v164 = vpack.c.b16 %v122, %v119
    %v165 = vpack.c.b16 %v126, %v123
    %v166 = vpack.c.b16 %v127, %v124
    %v167 = vpack.c.b16 %v128, %v125
    %v168 = vpack.c.b16 %v132, %v129
    %v169 = vpack.c.b16 %v133, %v130
    %v170 = vpack.c.b16 %v134, %v131
    %v171 = vpack.c.b16 %v138, %v135
    %v172 = vpack.c.b16 %v139, %v136
    %v173 = vpack.c.b16 %v140, %v137
    %v174 = vpack.c.b16 %v144, %v141
    %v175 = vpack.c.b16 %v145, %v142
    %v176 = vpack.c.b16 %v146, %v143
    %v177 = vpack.c.b16 %v150, %v147
    %v178 = vpack.c.b16 %v151, %v148
    %v179 = vpack.c.b16 %v152, %v149
    %v180 = vpack.c.b16 %v156, %v153
    %v181 = vpack.c.b16 %v157, %v154
    %v182 = vpack.c.b16 %v158, %v155
    %207 = vmatprep.subr.bf16.mxu0 %v160
    %208 = vmatpush1.bf16.msra.mxu0 %v159
    %209 = vmatprep.subr.bf16.mxu0 %v163
    %210 = vmatpush1.bf16.msra.mxu0 %v162
    %211 = vmatprep.subr.bf16.mxu0 %v166
    %212 = vmatpush1.bf16.msra.mxu0 %v165
    %213 = vmatprep.subr.bf16.mxu0 %v169
    %214 = vmatpush1.bf16.msra.mxu0 %v168
    %215 = vmatprep.subr.bf16.mxu0 %v172
    %216 = vmatpush1.bf16.msra.mxu0 %v171
    %217 = vmatprep.subr.bf16.mxu0 %v175
    %218 = vmatpush1.bf16.msra.mxu0 %v174
    %219 = vmatprep.subr.bf16.mxu0 %v178
    %220 = vmatpush1.bf16.msra.mxu0 %v177
    %221 = vmatprep.subr.bf16.mxu0 %v181
    %222 = vmatpush1.bf16.msra.mxu0 %v180
    %223 = vmatprep.subr.bf16.mxu0 0
    %224 = vmatpush1.bf16.msra.mxu0 0
    %225 = vmatprep.subr.bf16.mxu0 0
    %226 = vmatpush1.bf16.msra.mxu0 0
    %227 = vmatprep.subr.bf16.mxu0 0
    %228 = vmatpush1.bf16.msra.mxu0 0
    %229 = vmatprep.subr.bf16.mxu0 0
    %230 = vmatpush1.bf16.msra.mxu0 0
    %231 = vmatprep.subr.bf16.mxu0 0
    %232 = vmatpush1.bf16.msra.mxu0 0
    %233 = vmatprep.subr.bf16.mxu0 0
    %234 = vmatpush1.bf16.msra.mxu0 0
    %235 = vmatprep.subr.bf16.mxu0 0
    %236 = vmatpush1.bf16.msra.mxu0 0
    %237 = vmatprep.subr.bf16.mxu0 0
    %238 = vmatpush1.bf16.msra.mxu0 0
    %239 = vmatprep.mubr.bf16.mxu0 0
    %240 = vmatmul.mubr.bf16.gmra.mrb[0].mxu0 %v46
    %v241 = vpop.f32.mrb[0].mxu0
    %v242 = vadd.f32 0.0, %v241
    %v243 = vpop.f32.mrb[0].mxu0
    %v244 = vadd.f32 0.0, %v243
    %v245 = vpop.f32.mrb[0].mxu0
    %v246 = vadd.f32 0.0, %v245
    %v247 = vpop.f32.mrb[0].mxu0
    %v248 = vadd.f32 0.0, %v247
    %249 = vdwg.mxu0
    %250 = vmatprep.subr.bf16.mxu0 0
    %251 = vmatpush1.bf16.msra.mxu0 %v161
    %252 = vmatprep.subr.bf16.mxu0 0
    %253 = vmatpush1.bf16.msra.mxu0 %v164
    %254 = vmatprep.subr.bf16.mxu0 0
    %255 = vmatpush1.bf16.msra.mxu0 %v167
    %256 = vmatprep.subr.bf16.mxu0 0
    %257 = vmatpush1.bf16.msra.mxu0 %v170
    %258 = vmatprep.subr.bf16.mxu0 0
    %259 = vmatpush1.bf16.msra.mxu0 %v173
    %260 = vmatprep.subr.bf16.mxu0 0
    %261 = vmatpush1.bf16.msra.mxu0 %v176
    %262 = vmatprep.subr.bf16.mxu0 0
    %263 = vmatpush1.bf16.msra.mxu0 %v179
    %264 = vmatprep.subr.bf16.mxu0 0
    %265 = vmatpush1.bf16.msra.mxu0 %v182
    %266 = vmatprep.subr.bf16.mxu0 0
    %267 = vmatpush1.bf16.msra.mxu0 0
    %268 = vmatprep.subr.bf16.mxu0 0
    %269 = vmatpush1.bf16.msra.mxu0 0
    %270 = vmatprep.subr.bf16.mxu0 0
    %271 = vmatpush1.bf16.msra.mxu0 0
    %272 = vmatprep.subr.bf16.mxu0 0
    %273 = vmatpush1.bf16.msra.mxu0 0
    %274 = vmatprep.subr.bf16.mxu0 0
    %275 = vmatpush1.bf16.msra.mxu0 0
    %276 = vmatprep.subr.bf16.mxu0 0
    %277 = vmatpush1.bf16.msra.mxu0 0
    %278 = vmatprep.subr.bf16.mxu0 0
    %279 = vmatpush1.bf16.msra.mxu0 0
    %280 = vmatprep.subr.bf16.mxu0 0
    %281 = vmatpush1.bf16.msra.mxu0 0
    %282 = vmatprep.mubr.bf16.mxu0 0
    %283 = vmatmul.mubr.bf16.gmra.mrb[0].mxu0 %v46
    %v284 = vpop.f32.mrb[0].mxu0
    %v285 = vadd.f32 0.0, %v284
    %v286 = vpop.f32.mrb[0].mxu0
    %v287 = vpop.f32.mrb[0].mxu0
    %v288 = vadd.f32 0.0, %v287
    %v289 = vpop.f32.mrb[0].mxu0
    %290 = vdwg.mxu0
    %v291 = vld [vmem:[%s9] sm:$0x1]
    %v292 = vlaneseq
    %v293 = vshrl.u32 %v292, 7
    %v294 = vsub.s32 0, %v293
    %v295 = vrot.slane %v291, %v294
    %v296 = vadd.f32 %v242, %v295
    %v297 = vadd.f32 %v246, %v295
    %v298 = vld [vmem:[%s9 + $0x1] sm:$0x1]
    %v299 = vlaneseq
    %v300 = vshrl.u32 %v299, 7
    %v301 = vsub.s32 0, %v300
    %v302 = vrot.slane %v298, %v301
    %v303 = vadd.f32 %v244, %v302
    %v304 = vadd.f32 %v248, %v302
    %v305 = vld [vmem:[%s9 + $0x2] sm:$0x1]
    %v306 = vlaneseq
    %v307 = vshrl.u32 %v306, 7
    %v308 = vsub.s32 0, %v307
    %v309 = vrot.slane %v305, %v308
    %v310 = vadd.f32 %v285, %v309
    %v311 = vadd.f32 %v288, %v309
    %v312 = vld [vmem:[%s9 + $0x3] sm:$0x1]
    %v313 = vpack.c.bf16 %v297, %v296
    %v314 = vpack.c.bf16 %v304, %v303
    %v315 = vpack.c.bf16 %v311, %v310
    %vm316 = vcmask 261120
    %v318 = vsel %vm316, %v313, 0
    %v321 = vsel %vm316, %v314, 0
    %323 = vmatprep.subr.bf16.mxu0 0
    %324 = vmatpush1.bf16.xpose.msra.mxu0 %v321
    %325 = vmatprep.subr.bf16.mxu0 0
    %326 = vmatpush1.bf16.xpose.msra.mxu0 0
    %327 = vmatprep.subr.bf16.mxu0 0
    %328 = vmatpush1.bf16.xpose.msra.mxu0 0
    %329 = vmatprep.subr.bf16.mxu0 0
    %330 = vmatpush1.bf16.xpose.msra.mxu0 0
    %331 = vmatprep.subr.bf16.mxu0 0
    %332 = vmatpush1.bf16.xpose.msra.mxu0 0
    %333 = vmatprep.subr.bf16.mxu0 0
    %334 = vmatpush1.bf16.xpose.msra.mxu0 0
    %335 = vmatprep.subr.bf16.mxu0 0
    %336 = vmatpush1.bf16.xpose.msra.mxu0 0
    %337 = vmatprep.subr.bf16.mxu0 0
    %338 = vmatpush1.bf16.xpose.msra.mxu0 0
    %339 = vmatprep.subr.bf16.mxu0 0
    %340 = vmatpush1.bf16.xpose.msra.mxu0 0
    %341 = vmatprep.subr.bf16.mxu0 0
    %342 = vmatpush1.bf16.xpose.msra.mxu0 0
    %343 = vmatprep.subr.bf16.mxu0 0
    %344 = vmatpush1.bf16.xpose.msra.mxu0 0
    %345 = vmatprep.subr.bf16.mxu0 0
    %346 = vmatpush1.bf16.xpose.msra.mxu0 0
    %347 = vmatprep.subr.bf16.mxu0 0
    %348 = vmatpush1.bf16.xpose.msra.mxu0 0
    %349 = vmatprep.subr.bf16.mxu0 0
    %350 = vmatpush1.bf16.xpose.msra.mxu0 0
    %351 = vmatprep.subr.bf16.mxu0 0
    %352 = vmatpush1.bf16.xpose.msra.mxu0 0
    %353 = vmatprep.subr.bf16.mxu0 0
    %354 = vmatpush1.bf16.xpose.msra.mxu0 0
    %355 = vmatprep.mubr.bf16.mxu0 0
    %356 = vmatmul.mubr.bf16.gmra.mrb[0].mxu0 %v318
    %v357 = vpop.f32.mrb[0].mxu0
    %v358 = vadd.f32 0.0, %v357
    %v359 = vpop.f32.mrb[0].mxu0
    %v360 = vpop.f32.mrb[0].mxu0
    %v361 = vpop.f32.mrb[0].mxu0
    %362 = vdwg.mxu0
    %v363 = vmul.f32 %v358, 0.17677669
    %vm364 = vcmask 64512
    %v365 = vsel %vm364, %v363, -inf
    %366 = vmax.xlane.f32.xlu0 %v365
    %v367 = vpop.xlane.xlu0 %366
    %v368 = vsub.f32 %v363, %v367
    %v369 = vmul.f32 %v368, 1.442695
    %v370 = vpow.pop %v369
    %v371 = vsel %vm364, %v370, 0.0
    %372 = vadd.xlane.f32.xlu0 %v371
    %v373 = vpop.xlane.xlu0 %372
    %v374 = vrcp.pop %v373
    %v375 = vmul.f32 %v370, %v374
    %v376 = vpack.c.bf16 %v375, %v375
    %v378 = vsel %vm364, %v376, 0
    %vm380 = vcmask 1043456
    %v382 = vsel %vm380, %v315, 0
    %384 = vmatprep.subr.bf16.mxu0 0
    %385 = vmatpush1.bf16.msra.mxu0 %v382
    %386 = vmatprep.subr.bf16.mxu0 0
    %387 = vmatpush1.bf16.msra.mxu0 0
    %388 = vmatprep.subr.bf16.mxu0 0
    %389 = vmatpush1.bf16.msra.mxu0 0
    %390 = vmatprep.subr.bf16.mxu0 0
    %391 = vmatpush1.bf16.msra.mxu0 0
    %392 = vmatprep.subr.bf16.mxu0 0
    %393 = vmatpush1.bf16.msra.mxu0 0
    %394 = vmatprep.subr.bf16.mxu0 0
    %395 = vmatpush1.bf16.msra.mxu0 0
    %396 = vmatprep.subr.bf16.mxu0 0
    %397 = vmatpush1.bf16.msra.mxu0 0
    %398 = vmatprep.subr.bf16.mxu0 0
    %399 = vmatpush1.bf16.msra.mxu0 0
    %400 = vmatprep.subr.bf16.mxu0 0
    %401 = vmatpush1.bf16.msra.mxu0 0
    %402 = vmatprep.subr.bf16.mxu0 0
    %403 = vmatpush1.bf16.msra.mxu0 0
    %404 = vmatprep.subr.bf16.mxu0 0
    %405 = vmatpush1.bf16.msra.mxu0 0
    %406 = vmatprep.subr.bf16.mxu0 0
    %407 = vmatpush1.bf16.msra.mxu0 0
    %408 = vmatprep.subr.bf16.mxu0 0
    %409 = vmatpush1.bf16.msra.mxu0 0
    %410 = vmatprep.subr.bf16.mxu0 0
    %411 = vmatpush1.bf16.msra.mxu0 0
    %412 = vmatprep.subr.bf16.mxu0 0
    %413 = vmatpush1.bf16.msra.mxu0 0
    %414 = vmatprep.subr.bf16.mxu0 0
    %415 = vmatpush1.bf16.msra.mxu0 0
    %416 = vmatprep.mubr.bf16.mxu0 0
    %417 = vmatmul.mubr.bf16.gmra.mrb[0].mxu0 %v378
    %v418 = vpop.f32.mrb[0].mxu0
    %v419 = vadd.f32 0.0, %v418
    %v420 = vpop.f32.mrb[0].mxu0
    %v421 = vpop.f32.mrb[0].mxu0
    %v422 = vpop.f32.mrb[0].mxu0
    %423 = vdwg.mxu0
    %424 = vst.msk [vmem:[#allocation2] sm:$0xff] %vm316, %v419
    %426 = vrot.lane.b32.xlu0 %v313, 96
    %v427 = vpop.permute.xlu0 %426
    %429 = vrot.lane.b32.xlu0 %v314, 96
    %v430 = vpop.permute.xlu0 %429
    %v432 = vsel %vm316, %v427, 0
    %v435 = vsel %vm316, %v430, 0
    %437 = vmatprep.subr.bf16.mxu0 0
    %438 = vmatpush1.bf16.xpose.msra.mxu0 %v435
    %439 = vmatprep.subr.bf16.mxu0 0
    %440 = vmatpush1.bf16.xpose.msra.mxu0 0
    %441 = vmatprep.subr.bf16.mxu0 0
    %442 = vmatpush1.bf16.xpose.msra.mxu0 0
    %443 = vmatprep.subr.bf16.mxu0 0
    %444 = vmatpush1.bf16.xpose.msra.mxu0 0
    %445 = vmatprep.subr.bf16.mxu0 0
    %446 = vmatpush1.bf16.xpose.msra.mxu0 0
    %447 = vmatprep.subr.bf16.mxu0 0
    %448 = vmatpush1.bf16.xpose.msra.mxu0 0
    %449 = vmatprep.subr.bf16.mxu0 0
    %450 = vmatpush1.bf16.xpose.msra.mxu0 0
    %451 = vmatprep.subr.bf16.mxu0 0
    %452 = vmatpush1.bf16.xpose.msra.mxu0 0
    %453 = vmatprep.subr.bf16.mxu0 0
    %454 = vmatpush1.bf16.xpose.msra.mxu0 0
    %455 = vmatprep.subr.bf16.mxu0 0
    %456 = vmatpush1.bf16.xpose.msra.mxu0 0
    %457 = vmatprep.subr.bf16.mxu0 0
    %458 = vmatpush1.bf16.xpose.msra.mxu0 0
    %459 = vmatprep.subr.bf16.mxu0 0
    %460 = vmatpush1.bf16.xpose.msra.mxu0 0
    %461 = vmatprep.subr.bf16.mxu0 0
    %462 = vmatpush1.bf16.xpose.msra.mxu0 0
    %463 = vmatprep.subr.bf16.mxu0 0
    %464 = vmatpush1.bf16.xpose.msra.mxu0 0
    %465 = vmatprep.subr.bf16.mxu0 0
    %466 = vmatpush1.bf16.xpose.msra.mxu0 0
    %467 = vmatprep.subr.bf16.mxu0 0
    %468 = vmatpush1.bf16.xpose.msra.mxu0 0
    %469 = vmatprep.mubr.bf16.mxu0 0
    %470 = vmatmul.mubr.bf16.gmra.mrb[0].mxu0 %v432
    %v471 = vpop.f32.mrb[0].mxu0
    %v472 = vadd.f32 0.0, %v471
    %v473 = vpop.f32.mrb[0].mxu0
    %v474 = vpop.f32.mrb[0].mxu0
    %v475 = vpop.f32.mrb[0].mxu0
    %476 = vdwg.mxu0
    %v477 = vmul.f32 %v472, 0.17677669
    %v478 = vsel %vm364, %v477, -inf
    %479 = vmax.xlane.f32.xlu0 %v478
    %v480 = vpop.xlane.xlu0 %479
    %v481 = vsub.f32 %v477, %v480
    %v482 = vmul.f32 %v481, 1.442695
    %v483 = vpow.pop %v482
    %v484 = vsel %vm364, %v483, 0.0
    %485 = vadd.xlane.f32.xlu0 %v484
    %v486 = vpop.xlane.xlu0 %485
    %v487 = vrcp.pop %v486
    %v488 = vmul.f32 %v483, %v487
    %v489 = vpack.c.bf16 %v488, %v488
    %491 = vrot.lane.b32.xlu0 %v315, 96
    %v492 = vpop.permute.xlu0 %491
    %v494 = vsel %vm364, %v489, 0
    %v497 = vsel %vm380, %v492, 0
    %499 = vmatprep.subr.bf16.mxu0 0
    %500 = vmatpush1.bf16.msra.mxu0 %v497
    %501 = vmatprep.subr.bf16.mxu0 0
    %502 = vmatpush1.bf16.msra.mxu0 0
    %503 = vmatprep.subr.bf16.mxu0 0
    %504 = vmatpush1.bf16.msra.mxu0 0
    %505 = vmatprep.subr.bf16.mxu0 0
    %506 = vmatpush1.bf16.msra.mxu0 0
    %507 = vmatprep.subr.bf16.mxu0 0
    %508 = vmatpush1.bf16.msra.mxu0 0
    %509 = vmatprep.subr.bf16.mxu0 0
    %510 = vmatpush1.bf16.msra.mxu0 0
    %511 = vmatprep.subr.bf16.mxu0 0
    %512 = vmatpush1.bf16.msra.mxu0 0
    %513 = vmatprep.subr.bf16.mxu0 0
    %514 = vmatpush1.bf16.msra.mxu0 0
    %515 = vmatprep.subr.bf16.mxu0 0
    %516 = vmatpush1.bf16.msra.mxu0 0
    %517 = vmatprep.subr.bf16.mxu0 0
    %518 = vmatpush1.bf16.msra.mxu0 0
    %519 = vmatprep.subr.bf16.mxu0 0
    %520 = vmatpush1.bf16.msra.mxu0 0
    %521 = vmatprep.subr.bf16.mxu0 0
    %522 = vmatpush1.bf16.msra.mxu0 0
    %523 = vmatprep.subr.bf16.mxu0 0
    %524 = vmatpush1.bf16.msra.mxu0 0
    %525 = vmatprep.subr.bf16.mxu0 0
    %526 = vmatpush1.bf16.msra.mxu0 0
    %527 = vmatprep.subr.bf16.mxu0 0
    %528 = vmatpush1.bf16.msra.mxu0 0
    %529 = vmatprep.subr.bf16.mxu0 0
    %530 = vmatpush1.bf16.msra.mxu0 0
    %531 = vmatprep.mubr.bf16.mxu0 0
    %532 = vmatmul.mubr.bf16.gmra.mrb[0].mxu0 %v494
    %v533 = vpop.f32.mrb[0].mxu0
    %v534 = vadd.f32 0.0, %v533
    %v535 = vpop.f32.mrb[0].mxu0
    %v536 = vpop.f32.mrb[0].mxu0
    %v537 = vpop.f32.mrb[0].mxu0
    %538 = vdwg.mxu0
    %540 = vrot.lane.b32.xlu0 %v534, 32
    %v541 = vpop.permute.xlu0 %540
    %vm543 = vcmask 523520
    %544 = vst.msk [vmem:[#allocation2] sm:$0xff] %vm543, %v541
    %545 = vrot.lane.b32.xlu0 %v313, 64
    %v546 = vpop.permute.xlu0 %545
    %547 = vrot.lane.b32.xlu0 %v314, 64
    %v548 = vpop.permute.xlu0 %547
    %v550 = vsel %vm316, %v546, 0
    %v553 = vsel %vm316, %v548, 0
    %555 = vmatprep.subr.bf16.mxu0 0
    %556 = vmatpush1.bf16.xpose.msra.mxu0 %v553
    %557 = vmatprep.subr.bf16.mxu0 0
    %558 = vmatpush1.bf16.xpose.msra.mxu0 0
    %559 = vmatprep.subr.bf16.mxu0 0
    %560 = vmatpush1.bf16.xpose.msra.mxu0 0
    %561 = vmatprep.subr.bf16.mxu0 0
    %562 = vmatpush1.bf16.xpose.msra.mxu0 0
    %563 = vmatprep.subr.bf16.mxu0 0
    %564 = vmatpush1.bf16.xpose.msra.mxu0 0
    %565 = vmatprep.subr.bf16.mxu0 0
    %566 = vmatpush1.bf16.xpose.msra.mxu0 0
    %567 = vmatprep.subr.bf16.mxu0 0
    %568 = vmatpush1.bf16.xpose.msra.mxu0 0
    %569 = vmatprep.subr.bf16.mxu0 0
    %570 = vmatpush1.bf16.xpose.msra.mxu0 0
    %571 = vmatprep.subr.bf16.mxu0 0
    %572 = vmatpush1.bf16.xpose.msra.mxu0 0
    %573 = vmatprep.subr.bf16.mxu0 0
    %574 = vmatpush1.bf16.xpose.msra.mxu0 0
    %575 = vmatprep.subr.bf16.mxu0 0
    %576 = vmatpush1.bf16.xpose.msra.mxu0 0
    %577 = vmatprep.subr.bf16.mxu0 0
    %578 = vmatpush1.bf16.xpose.msra.mxu0 0
    %579 = vmatprep.subr.bf16.mxu0 0
    %580 = vmatpush1.bf16.xpose.msra.mxu0 0
    %581 = vmatprep.subr.bf16.mxu0 0
    %582 = vmatpush1.bf16.xpose.msra.mxu0 0
    %583 = vmatprep.subr.bf16.mxu0 0
    %584 = vmatpush1.bf16.xpose.msra.mxu0 0
    %585 = vmatprep.subr.bf16.mxu0 0
    %586 = vmatpush1.bf16.xpose.msra.mxu0 0
    %587 = vmatprep.mubr.bf16.mxu0 0
    %588 = vmatmul.mubr.bf16.gmra.mrb[0].mxu0 %v550
    %v589 = vpop.f32.mrb[0].mxu0
    %v590 = vadd.f32 0.0, %v589
    %v591 = vpop.f32.mrb[0].mxu0
    %v592 = vpop.f32.mrb[0].mxu0
    %v593 = vpop.f32.mrb[0].mxu0
    %594 = vdwg.mxu0
    %v595 = vmul.f32 %v590, 0.17677669
    %v596 = vsel %vm364, %v595, -inf
    %597 = vmax.xlane.f32.xlu0 %v596
    %v598 = vpop.xlane.xlu0 %597
    %v599 = vsub.f32 %v595, %v598
    %v600 = vmul.f32 %v599, 1.442695
    %v601 = vpow.pop %v600
    %v602 = vsel %vm364, %v601, 0.0
    %603 = vadd.xlane.f32.xlu0 %v602
    %v604 = vpop.xlane.xlu0 %603
    %v605 = vrcp.pop %v604
    %v606 = vmul.f32 %v601, %v605
    %v607 = vpack.c.bf16 %v606, %v606
    %608 = vrot.lane.b32.xlu0 %v315, 64
    %v609 = vpop.permute.xlu0 %608
    %v611 = vsel %vm364, %v607, 0
    %v614 = vsel %vm380, %v609, 0
    %616 = vmatprep.subr.bf16.mxu0 0
    %617 = vmatpush1.bf16.msra.mxu0 %v614
    %618 = vmatprep.subr.bf16.mxu0 0
    %619 = vmatpush1.bf16.msra.mxu0 0
    %620 = vmatprep.subr.bf16.mxu0 0
    %621 = vmatpush1.bf16.msra.mxu0 0
    %622 = vmatprep.subr.bf16.mxu0 0
    %623 = vmatpush1.bf16.msra.mxu0 0
    %624 = vmatprep.subr.bf16.mxu0 0
    %625 = vmatpush1.bf16.msra.mxu0 0
    %626 = vmatprep.subr.bf16.mxu0 0
    %627 = vmatpush1.bf16.msra.mxu0 0
    %628 = vmatprep.subr.bf16.mxu0 0
    %629 = vmatpush1.bf16.msra.mxu0 0
    %630 = vmatprep.subr.bf16.mxu0 0
    %631 = vmatpush1.bf16.msra.mxu0 0
    %632 = vmatprep.subr.bf16.mxu0 0
    %633 = vmatpush1.bf16.msra.mxu0 0
    %634 = vmatprep.subr.bf16.mxu0 0
    %635 = vmatpush1.bf16.msra.mxu0 0
    %636 = vmatprep.subr.bf16.mxu0 0
    %637 = vmatpush1.bf16.msra.mxu0 0
    %638 = vmatprep.subr.bf16.mxu0 0
    %639 = vmatpush1.bf16.msra.mxu0 0
    %640 = vmatprep.subr.bf16.mxu0 0
    %641 = vmatpush1.bf16.msra.mxu0 0
    %642 = vmatprep.subr.bf16.mxu0 0
    %643 = vmatpush1.bf16.msra.mxu0 0
    %644 = vmatprep.subr.bf16.mxu0 0
    %645 = vmatpush1.bf16.msra.mxu0 0
    %646 = vmatprep.subr.bf16.mxu0 0
    %647 = vmatpush1.bf16.msra.mxu0 0
    %648 = vmatprep.mubr.bf16.mxu0 0
    %649 = vmatmul.mubr.bf16.gmra.mrb[0].mxu0 %v611
    %v650 = vpop.f32.mrb[0].mxu0
    %v651 = vadd.f32 0.0, %v650
    %v652 = vpop.f32.mrb[0].mxu0
    %v653 = vpop.f32.mrb[0].mxu0
    %v654 = vpop.f32.mrb[0].mxu0
    %655 = vdwg.mxu0
    %657 = vrot.lane.b32.xlu0 %v651, 64
    %v658 = vpop.permute.xlu0 %657
    %vm660 = vcmask 785920
    %661 = vst.msk [vmem:[#allocation2] sm:$0xff] %vm660, %v658
    %662 = vrot.lane.b32.xlu0 %v313, 32
    %v663 = vpop.permute.xlu0 %662
    %664 = vrot.lane.b32.xlu0 %v314, 32
    %v665 = vpop.permute.xlu0 %664
    %v667 = vsel %vm316, %v663, 0
    %v670 = vsel %vm316, %v665, 0
    %672 = vmatprep.subr.bf16.mxu0 0
    %673 = vmatpush1.bf16.xpose.msra.mxu0 %v670
    %674 = vmatprep.subr.bf16.mxu0 0
    %675 = vmatpush1.bf16.xpose.msra.mxu0 0
    %676 = vmatprep.subr.bf16.mxu0 0
    %677 = vmatpush1.bf16.xpose.msra.mxu0 0
    %678 = vmatprep.subr.bf16.mxu0 0
    %679 = vmatpush1.bf16.xpose.msra.mxu0 0
    %680 = vmatprep.subr.bf16.mxu0 0
    %681 = vmatpush1.bf16.xpose.msra.mxu0 0
    %682 = vmatprep.subr.bf16.mxu0 0
    %683 = vmatpush1.bf16.xpose.msra.mxu0 0
    %684 = vmatprep.subr.bf16.mxu0 0
    %685 = vmatpush1.bf16.xpose.msra.mxu0 0
    %686 = vmatprep.subr.bf16.mxu0 0
    %687 = vmatpush1.bf16.xpose.msra.mxu0 0
    %688 = vmatprep.subr.bf16.mxu0 0
    %689 = vmatpush1.bf16.xpose.msra.mxu0 0
    %690 = vmatprep.subr.bf16.mxu0 0
    %691 = vmatpush1.bf16.xpose.msra.mxu0 0
    %692 = vmatprep.subr.bf16.mxu0 0
    %693 = vmatpush1.bf16.xpose.msra.mxu0 0
    %694 = vmatprep.subr.bf16.mxu0 0
    %695 = vmatpush1.bf16.xpose.msra.mxu0 0
    %696 = vmatprep.subr.bf16.mxu0 0
    %697 = vmatpush1.bf16.xpose.msra.mxu0 0
    %698 = vmatprep.subr.bf16.mxu0 0
    %699 = vmatpush1.bf16.xpose.msra.mxu0 0
    %700 = vmatprep.subr.bf16.mxu0 0
    %701 = vmatpush1.bf16.xpose.msra.mxu0 0
    %702 = vmatprep.subr.bf16.mxu0 0
    %703 = vmatpush1.bf16.xpose.msra.mxu0 0
    %704 = vmatprep.mubr.bf16.mxu0 0
    %705 = vmatmul.mubr.bf16.gmra.mrb[0].mxu0 %v667
    %v706 = vpop.f32.mrb[0].mxu0
    %v707 = vadd.f32 0.0, %v706
    %v708 = vpop.f32.mrb[0].mxu0
    %v709 = vpop.f32.mrb[0].mxu0
    %v710 = vpop.f32.mrb[0].mxu0
    %711 = vdwg.mxu0
    %v712 = vmul.f32 %v707, 0.17677669
    %v713 = vsel %vm364, %v712, -inf
    %714 = vmax.xlane.f32.xlu0 %v713
    %v715 = vpop.xlane.xlu0 %714
    %v716 = vsub.f32 %v712, %v715
    %v717 = vmul.f32 %v716, 1.442695
    %v718 = vpow.pop %v717
    %v719 = vsel %vm364, %v718, 0.0
    %720 = vadd.xlane.f32.xlu0 %v719
    %v721 = vpop.xlane.xlu0 %720
    %v722 = vrcp.pop %v721
    %v723 = vmul.f32 %v718, %v722
    %v724 = vpack.c.bf16 %v723, %v723
    %725 = vrot.lane.b32.xlu0 %v315, 32
    %v726 = vpop.permute.xlu0 %725
    %v728 = vsel %vm364, %v724, 0
    %v731 = vsel %vm380, %v726, 0
    %733 = vmatprep.subr.bf16.mxu0 0
    %734 = vmatpush1.bf16.msra.mxu0 %v731
    %735 = vmatprep.subr.bf16.mxu0 0
    %736 = vmatpush1.bf16.msra.mxu0 0
    %737 = vmatprep.subr.bf16.mxu0 0
    %738 = vmatpush1.bf16.msra.mxu0 0
    %739 = vmatprep.subr.bf16.mxu0 0
    %740 = vmatpush1.bf16.msra.mxu0 0
    %741 = vmatprep.subr.bf16.mxu0 0
    %742 = vmatpush1.bf16.msra.mxu0 0
    %743 = vmatprep.subr.bf16.mxu0 0
    %744 = vmatpush1.bf16.msra.mxu0 0
    %745 = vmatprep.subr.bf16.mxu0 0
    %746 = vmatpush1.bf16.msra.mxu0 0
    %747 = vmatprep.subr.bf16.mxu0 0
    %748 = vmatpush1.bf16.msra.mxu0 0
    %749 = vmatprep.subr.bf16.mxu0 0
    %750 = vmatpush1.bf16.msra.mxu0 0
    %751 = vmatprep.subr.bf16.mxu0 0
    %752 = vmatpush1.bf16.msra.mxu0 0
    %753 = vmatprep.subr.bf16.mxu0 0
    %754 = vmatpush1.bf16.msra.mxu0 0
    %755 = vmatprep.subr.bf16.mxu0 0
    %756 = vmatpush1.bf16.msra.mxu0 0
    %757 = vmatprep.subr.bf16.mxu0 0
    %758 = vmatpush1.bf16.msra.mxu0 0
    %759 = vmatprep.subr.bf16.mxu0 0
    %760 = vmatpush1.bf16.msra.mxu0 0
    %761 = vmatprep.subr.bf16.mxu0 0
    %762 = vmatpush1.bf16.msra.mxu0 0
    %763 = vmatprep.subr.bf16.mxu0 0
    %764 = vmatpush1.bf16.msra.mxu0 0
    %765 = vmatprep.mubr.bf16.mxu0 0
    %766 = vmatmul.mubr.bf16.gmra.mrb[0].mxu0 %v728
    %v767 = vpop.f32.mrb[0].mxu0
    %v768 = vadd.f32 0.0, %v767
    %v769 = vpop.f32.mrb[0].mxu0
    %v770 = vpop.f32.mrb[0].mxu0
    %v771 = vpop.f32.mrb[0].mxu0
    %772 = vdwg.mxu0
    %774 = vrot.lane.b32.xlu0 %v768, 96
    %v775 = vpop.permute.xlu0 %774
    %vm777 = vcmask 1048320
    %778 = vst.msk [vmem:[#allocation2] sm:$0xff] %vm777, %v775
    %v779 = vrot.slane %v313, 4
    %v780 = vrot.slane %v314, 4
    %v782 = vsel %vm316, %v779, 0
    %v785 = vsel %vm316, %v780, 0
    %787 = vmatprep.subr.bf16.mxu0 0
    %788 = vmatpush1.bf16.xpose.msra.mxu0 %v785
    %789 = vmatprep.subr.bf16.mxu0 0
    %790 = vmatpush1.bf16.xpose.msra.mxu0 0
    %791 = vmatprep.subr.bf16.mxu0 0
    %792 = vmatpush1.bf16.xpose.msra.mxu0 0
    %793 = vmatprep.subr.bf16.mxu0 0
    %794 = vmatpush1.bf16.xpose.msra.mxu0 0
    %795 = vmatprep.subr.bf16.mxu0 0
    %796 = vmatpush1.bf16.xpose.msra.mxu0 0
    %797 = vmatprep.subr.bf16.mxu0 0
    %798 = vmatpush1.bf16.xpose.msra.mxu0 0
    %799 = vmatprep.subr.bf16.mxu0 0
    %800 = vmatpush1.bf16.xpose.msra.mxu0 0
    %801 = vmatprep.subr.bf16.mxu0 0
    %802 = vmatpush1.bf16.xpose.msra.mxu0 0
    %803 = vmatprep.subr.bf16.mxu0 0
    %804 = vmatpush1.bf16.xpose.msra.mxu0 0
    %805 = vmatprep.subr.bf16.mxu0 0
    %806 = vmatpush1.bf16.xpose.msra.mxu0 0
    %807 = vmatprep.subr.bf16.mxu0 0
    %808 = vmatpush1.bf16.xpose.msra.mxu0 0
    %809 = vmatprep.subr.bf16.mxu0 0
    %810 = vmatpush1.bf16.xpose.msra.mxu0 0
    %811 = vmatprep.subr.bf16.mxu0 0
    %812 = vmatpush1.bf16.xpose.msra.mxu0 0
    %813 = vmatprep.subr.bf16.mxu0 0
    %814 = vmatpush1.bf16.xpose.msra.mxu0 0
    %815 = vmatprep.subr.bf16.mxu0 0
    %816 = vmatpush1.bf16.xpose.msra.mxu0 0
    %817 = vmatprep.subr.bf16.mxu0 0
    %818 = vmatpush1.bf16.xpose.msra.mxu0 0
    %819 = vmatprep.mubr.bf16.mxu0 0
    %820 = vmatmul.mubr.bf16.gmra.mrb[0].mxu0 %v782
    %v821 = vpop.f32.mrb[0].mxu0
    %v822 = vadd.f32 0.0, %v821
    %v823 = vpop.f32.mrb[0].mxu0
    %v824 = vpop.f32.mrb[0].mxu0
    %v825 = vpop.f32.mrb[0].mxu0
    %826 = vdwg.mxu0
    %v827 = vmul.f32 %v822, 0.17677669
    %v828 = vsel %vm364, %v827, -inf
    %829 = vmax.xlane.f32.xlu0 %v828
    %v830 = vpop.xlane.xlu0 %829
    %v831 = vsub.f32 %v827, %v830
    %v832 = vmul.f32 %v831, 1.442695
    %v833 = vpow.pop %v832
    %v834 = vsel %vm364, %v833, 0.0
    %835 = vadd.xlane.f32.xlu0 %v834
    %v836 = vpop.xlane.xlu0 %835
    %v837 = vrcp.pop %v836
    %v838 = vmul.f32 %v833, %v837
    %v839 = vpack.c.bf16 %v838, %v838
    %v840 = vrot.slane %v315, 4
    %v842 = vsel %vm364, %v839, 0
    %v845 = vsel %vm380, %v840, 0
    %847 = vmatprep.subr.bf16.mxu0 0
    %848 = vmatpush1.bf16.msra.mxu0 %v845
    %849 = vmatprep.subr.bf16.mxu0 0
    %850 = vmatpush1.bf16.msra.mxu0 0
    %851 = vmatprep.subr.bf16.mxu0 0
    %852 = vmatpush1.bf16.msra.mxu0 0
    %853 = vmatprep.subr.bf16.mxu0 0
    %854 = vmatpush1.bf16.msra.mxu0 0
    %855 = vmatprep.subr.bf16.mxu0 0
    %856 = vmatpush1.bf16.msra.mxu0 0
    %857 = vmatprep.subr.bf16.mxu0 0
    %858 = vmatpush1.bf16.msra.mxu0 0
    %859 = vmatprep.subr.bf16.mxu0 0
    %860 = vmatpush1.bf16.msra.mxu0 0
    %861 = vmatprep.subr.bf16.mxu0 0
    %862 = vmatpush1.bf16.msra.mxu0 0
    %863 = vmatprep.subr.bf16.mxu0 0
    %864 = vmatpush1.bf16.msra.mxu0 0
    %865 = vmatprep.subr.bf16.mxu0 0
    %866 = vmatpush1.bf16.msra.mxu0 0
    %867 = vmatprep.subr.bf16.mxu0 0
    %868 = vmatpush1.bf16.msra.mxu0 0
    %869 = vmatprep.subr.bf16.mxu0 0
    %870 = vmatpush1.bf16.msra.mxu0 0
    %871 = vmatprep.subr.bf16.mxu0 0
    %872 = vmatpush1.bf16.msra.mxu0 0
    %873 = vmatprep.subr.bf16.mxu0 0
    %874 = vmatpush1.bf16.msra.mxu0 0
    %875 = vmatprep.subr.bf16.mxu0 0
    %876 = vmatpush1.bf16.msra.mxu0 0
    %877 = vmatprep.subr.bf16.mxu0 0
    %878 = vmatpush1.bf16.msra.mxu0 0
    %879 = vmatprep.mubr.bf16.mxu0 0
    %880 = vmatmul.mubr.bf16.gmra.mrb[0].mxu0 %v842
    %v881 = vpop.f32.mrb[0].mxu0
    %v882 = vadd.f32 0.0, %v881
    %v883 = vpop.f32.mrb[0].mxu0
    %v884 = vpop.f32.mrb[0].mxu0
    %v885 = vpop.f32.mrb[0].mxu0
    %886 = vdwg.mxu0
    %887 = vst.msk [vmem:[#allocation2 + $0x8] sm:$0xff] %vm316, %v882
    %888 = vrot.lane.b32.xlu0 %v779, 96
    %v889 = vpop.permute.xlu0 %888
    %890 = vrot.lane.b32.xlu0 %v780, 96
    %v891 = vpop.permute.xlu0 %890
    %v893 = vsel %vm316, %v889, 0
    %v896 = vsel %vm316, %v891, 0
    %898 = vmatprep.subr.bf16.mxu0 0
    %899 = vmatpush1.bf16.xpose.msra.mxu0 %v896
    %900 = vmatprep.subr.bf16.mxu0 0
    %901 = vmatpush1.bf16.xpose.msra.mxu0 0
    %902 = vmatprep.subr.bf16.mxu0 0
    %903 = vmatpush1.bf16.xpose.msra.mxu0 0
    %904 = vmatprep.subr.bf16.mxu0 0
    %905 = vmatpush1.bf16.xpose.msra.mxu0 0
    %906 = vmatprep.subr.bf16.mxu0 0
    %907 = vmatpush1.bf16.xpose.msra.mxu0 0
    %908 = vmatprep.subr.bf16.mxu0 0
    %909 = vmatpush1.bf16.xpose.msra.mxu0 0
    %910 = vmatprep.subr.bf16.mxu0 0
    %911 = vmatpush1.bf16.xpose.msra.mxu0 0
    %912 = vmatprep.subr.bf16.mxu0 0
    %913 = vmatpush1.bf16.xpose.msra.mxu0 0
    %914 = vmatprep.subr.bf16.mxu0 0
    %915 = vmatpush1.bf16.xpose.msra.mxu0 0
    %916 = vmatprep.subr.bf16.mxu0 0
    %917 = vmatpush1.bf16.xpose.msra.mxu0 0
    %918 = vmatprep.subr.bf16.mxu0 0
    %919 = vmatpush1.bf16.xpose.msra.mxu0 0
    %920 = vmatprep.subr.bf16.mxu0 0
    %921 = vmatpush1.bf16.xpose.msra.mxu0 0
    %922 = vmatprep.subr.bf16.mxu0 0
    %923 = vmatpush1.bf16.xpose.msra.mxu0 0
    %924 = vmatprep.subr.bf16.mxu0 0
    %925 = vmatpush1.bf16.xpose.msra.mxu0 0
    %926 = vmatprep.subr.bf16.mxu0 0
    %927 = vmatpush1.bf16.xpose.msra.mxu0 0
    %928 = vmatprep.subr.bf16.mxu0 0
    %929 = vmatpush1.bf16.xpose.msra.mxu0 0
    %930 = vmatprep.mubr.bf16.mxu0 0
    %931 = vmatmul.mubr.bf16.gmra.mrb[0].mxu0 %v893
    %v932 = vpop.f32.mrb[0].mxu0
    %v933 = vadd.f32 0.0, %v932
    %v934 = vpop.f32.mrb[0].mxu0
    %v935 = vpop.f32.mrb[0].mxu0
    %v936 = vpop.f32.mrb[0].mxu0
    %937 = vdwg.mxu0
    %v938 = vmul.f32 %v933, 0.17677669
    %v939 = vsel %vm364, %v938, -inf
    %940 = vmax.xlane.f32.xlu0 %v939
    %v941 = vpop.xlane.xlu0 %940
    %v942 = vsub.f32 %v938, %v941
    %v943 = vmul.f32 %v942, 1.442695
    %v944 = vpow.pop %v943
    %v945 = vsel %vm364, %v944, 0.0
    %946 = vadd.xlane.f32.xlu0 %v945
    %v947 = vpop.xlane.xlu0 %946
    %v948 = vrcp.pop %v947
    %v949 = vmul.f32 %v944, %v948
    %v950 = vpack.c.bf16 %v949, %v949
    %951 = vrot.lane.b32.xlu0 %v840, 96
    %v952 = vpop.permute.xlu0 %951
    %v954 = vsel %vm364, %v950, 0
    %v957 = vsel %vm380, %v952, 0
    %959 = vmatprep.subr.bf16.mxu0 0
    %960 = vmatpush1.bf16.msra.mxu0 %v957
    %961 = vmatprep.subr.bf16.mxu0 0
    %962 = vmatpush1.bf16.msra.mxu0 0
    %963 = vmatprep.subr.bf16.mxu0 0
    %964 = vmatpush1.bf16.msra.mxu0 0
    %965 = vmatprep.subr.bf16.mxu0 0
    %966 = vmatpush1.bf16.msra.mxu0 0
    %967 = vmatprep.subr.bf16.mxu0 0
    %968 = vmatpush1.bf16.msra.mxu0 0
    %969 = vmatprep.subr.bf16.mxu0 0
    %970 = vmatpush1.bf16.msra.mxu0 0
    %971 = vmatprep.subr.bf16.mxu0 0
    %972 = vmatpush1.bf16.msra.mxu0 0
    %973 = vmatprep.subr.bf16.mxu0 0
    %974 = vmatpush1.bf16.msra.mxu0 0
    %975 = vmatprep.subr.bf16.mxu0 0
    %976 = vmatpush1.bf16.msra.mxu0 0
    %977 = vmatprep.subr.bf16.mxu0 0
    %978 = vmatpush1.bf16.msra.mxu0 0
    %979 = vmatprep.subr.bf16.mxu0 0
    %980 = vmatpush1.bf16.msra.mxu0 0
    %981 = vmatprep.subr.bf16.mxu0 0
    %982 = vmatpush1.bf16.msra.mxu0 0
    %983 = vmatprep.subr.bf16.mxu0 0
    %984 = vmatpush1.bf16.msra.mxu0 0
    %985 = vmatprep.subr.bf16.mxu0 0
    %986 = vmatpush1.bf16.msra.mxu0 0
    %987 = vmatprep.subr.bf16.mxu0 0
    %988 = vmatpush1.bf16.msra.mxu0 0
    %989 = vmatprep.subr.bf16.mxu0 0
    %990 = vmatpush1.bf16.msra.mxu0 0
    %991 = vmatprep.mubr.bf16.mxu0 0
    %992 = vmatmul.mubr.bf16.gmra.mrb[0].mxu0 %v954
    %v993 = vpop.f32.mrb[0].mxu0
    %v994 = vadd.f32 0.0, %v993
    %v995 = vpop.f32.mrb[0].mxu0
    %v996 = vpop.f32.mrb[0].mxu0
    %v997 = vpop.f32.mrb[0].mxu0
    %998 = vdwg.mxu0
    %1000 = vrot.lane.b32.xlu0 %v994, 32
    %v1001 = vpop.permute.xlu0 %1000
    %1003 = vst.msk [vmem:[#allocation2 + $0x8] sm:$0xff] %vm543, %v1001
    %1004 = vrot.lane.b32.xlu0 %v779, 64
    %v1005 = vpop.permute.xlu0 %1004
    %1006 = vrot.lane.b32.xlu0 %v780, 64
    %v1007 = vpop.permute.xlu0 %1006
    %v1009 = vsel %vm316, %v1005, 0
    %v1012 = vsel %vm316, %v1007, 0
    %1014 = vmatprep.subr.bf16.mxu0 0
    %1015 = vmatpush1.bf16.xpose.msra.mxu0 %v1012
    %1016 = vmatprep.subr.bf16.mxu0 0
    %1017 = vmatpush1.bf16.xpose.msra.mxu0 0
    %1018 = vmatprep.subr.bf16.mxu0 0
    %1019 = vmatpush1.bf16.xpose.msra.mxu0 0
    %1020 = vmatprep.subr.bf16.mxu0 0
    %1021 = vmatpush1.bf16.xpose.msra.mxu0 0
    %1022 = vmatprep.subr.bf16.mxu0 0
    %1023 = vmatpush1.bf16.xpose.msra.mxu0 0
    %1024 = vmatprep.subr.bf16.mxu0 0
    %1025 = vmatpush1.bf16.xpose.msra.mxu0 0
    %1026 = vmatprep.subr.bf16.mxu0 0
    %1027 = vmatpush1.bf16.xpose.msra.mxu0 0
    %1028 = vmatprep.subr.bf16.mxu0 0
    %1029 = vmatpush1.bf16.xpose.msra.mxu0 0
    %1030 = vmatprep.subr.bf16.mxu0 0
    %1031 = vmatpush1.bf16.xpose.msra.mxu0 0
    %1032 = vmatprep.subr.bf16.mxu0 0
    %1033 = vmatpush1.bf16.xpose.msra.mxu0 0
    %1034 = vmatprep.subr.bf16.mxu0 0
    %1035 = vmatpush1.bf16.xpose.msra.mxu0 0
    %1036 = vmatprep.subr.bf16.mxu0 0
    %1037 = vmatpush1.bf16.xpose.msra.mxu0 0
    %1038 = vmatprep.subr.bf16.mxu0 0
    %1039 = vmatpush1.bf16.xpose.msra.mxu0 0
    %1040 = vmatprep.subr.bf16.mxu0 0
    %1041 = vmatpush1.bf16.xpose.msra.mxu0 0
    %1042 = vmatprep.subr.bf16.mxu0 0
    %1043 = vmatpush1.bf16.xpose.msra.mxu0 0
    %1044 = vmatprep.subr.bf16.mxu0 0
    %1045 = vmatpush1.bf16.xpose.msra.mxu0 0
    %1046 = vmatprep.mubr.bf16.mxu0 0
    %1047 = vmatmul.mubr.bf16.gmra.mrb[0].mxu0 %v1009
    %v1048 = vpop.f32.mrb[0].mxu0
    %v1049 = vadd.f32 0.0, %v1048
    %v1050 = vpop.f32.mrb[0].mxu0
    %v1051 = vpop.f32.mrb[0].mxu0
    %v1052 = vpop.f32.mrb[0].mxu0
    %1053 = vdwg.mxu0
    %v1054 = vmul.f32 %v1049, 0.17677669
    %v1055 = vsel %vm364, %v1054, -inf
    %1056 = vmax.xlane.f32.xlu0 %v1055
    %v1057 = vpop.xlane.xlu0 %1056
    %v1058 = vsub.f32 %v1054, %v1057
    %v1059 = vmul.f32 %v1058, 1.442695
    %v1060 = vpow.pop %v1059
    %v1061 = vsel %vm364, %v1060, 0.0
    %1062 = vadd.xlane.f32.xlu0 %v1061
    %v1063 = vpop.xlane.xlu0 %1062
    %v1064 = vrcp.pop %v1063
    %v1065 = vmul.f32 %v1060, %v1064
    %v1066 = vpack.c.bf16 %v1065, %v1065
    %1067 = vrot.lane.b32.xlu0 %v840, 64
    %v1068 = vpop.permute.xlu0 %1067
    %v1070 = vsel %vm364, %v1066, 0
    %v1073 = vsel %vm380, %v1068, 0
    %1075 = vmatprep.subr.bf16.mxu0 0
    %1076 = vmatpush1.bf16.msra.mxu0 %v1073
    %1077 = vmatprep.subr.bf16.mxu0 0
    %1078 = vmatpush1.bf16.msra.mxu0 0
    %1079 = vmatprep.subr.bf16.mxu0 0
    %1080 = vmatpush1.bf16.msra.mxu0 0
    %1081 = vmatprep.subr.bf16.mxu0 0
    %1082 = vmatpush1.bf16.msra.mxu0 0
    %1083 = vmatprep.subr.bf16.mxu0 0
    %1084 = vmatpush1.bf16.msra.mxu0 0
    %1085 = vmatprep.subr.bf16.mxu0 0
    %1086 = vmatpush1.bf16.msra.mxu0 0
    %1087 = vmatprep.subr.bf16.mxu0 0
    %1088 = vmatpush1.bf16.msra.mxu0 0
    %1089 = vmatprep.subr.bf16.mxu0 0
    %1090 = vmatpush1.bf16.msra.mxu0 0
    %1091 = vmatprep.subr.bf16.mxu0 0
    %1092 = vmatpush1.bf16.msra.mxu0 0
    %1093 = vmatprep.subr.bf16.mxu0 0
    %1094 = vmatpush1.bf16.msra.mxu0 0
    %1095 = vmatprep.subr.bf16.mxu0 0
    %1096 = vmatpush1.bf16.msra.mxu0 0
    %1097 = vmatprep.subr.bf16.mxu0 0
    %1098 = vmatpush1.bf16.msra.mxu0 0
    %1099 = vmatprep.subr.bf16.mxu0 0
    %1100 = vmatpush1.bf16.msra.mxu0 0
    %1101 = vmatprep.subr.bf16.mxu0 0
    %1102 = vmatpush1.bf16.msra.mxu0 0
    %1103 = vmatprep.subr.bf16.mxu0 0
    %1104 = vmatpush1.bf16.msra.mxu0 0
    %1105 = vmatprep.subr.bf16.mxu0 0
    %1106 = vmatpush1.bf16.msra.mxu0 0
    %1107 = vmatprep.mubr.bf16.mxu0 0
    %1108 = vmatmul.mubr.bf16.gmra.mrb[0].mxu0 %v1070
    %v1109 = vpop.f32.mrb[0].mxu0
    %v1110 = vadd.f32 0.0, %v1109
    %v1111 = vpop.f32.mrb[0].mxu0
    %v1112 = vpop.f32.mrb[0].mxu0
    %v1113 = vpop.f32.mrb[0].mxu0
    %1114 = vdwg.mxu0
    %1116 = vrot.lane.b32.xlu0 %v1110, 64
    %v1117 = vpop.permute.xlu0 %1116
    %1119 = vst.msk [vmem:[#allocation2 + $0x8] sm:$0xff] %vm660, %v1117
    %1120 = vrot.lane.b32.xlu0 %v779, 32
    %v1121 = vpop.permute.xlu0 %1120
    %1122 = vrot.lane.b32.xlu0 %v780, 32
    %v1123 = vpop.permute.xlu0 %1122
    %v1125 = vsel %vm316, %v1121, 0
    %v1128 = vsel %vm316, %v1123, 0
    %1130 = vmatprep.subr.bf16.mxu0 0
    %1131 = vmatpush1.bf16.xpose.msra.mxu0 %v1128
    %1132 = vmatprep.subr.bf16.mxu0 0
    %1133 = vmatpush1.bf16.xpose.msra.mxu0 0
    %1134 = vmatprep.subr.bf16.mxu0 0
    %1135 = vmatpush1.bf16.xpose.msra.mxu0 0
    %1136 = vmatprep.subr.bf16.mxu0 0
    %1137 = vmatpush1.bf16.xpose.msra.mxu0 0
    %1138 = vmatprep.subr.bf16.mxu0 0
    %1139 = vmatpush1.bf16.xpose.msra.mxu0 0
    %1140 = vmatprep.subr.bf16.mxu0 0
    %1141 = vmatpush1.bf16.xpose.msra.mxu0 0
    %1142 = vmatprep.subr.bf16.mxu0 0
    %1143 = vmatpush1.bf16.xpose.msra.mxu0 0
    %1144 = vmatprep.subr.bf16.mxu0 0
    %1145 = vmatpush1.bf16.xpose.msra.mxu0 0
    %1146 = vmatprep.subr.bf16.mxu0 0
    %1147 = vmatpush1.bf16.xpose.msra.mxu0 0
    %1148 = vmatprep.subr.bf16.mxu0 0
    %1149 = vmatpush1.bf16.xpose.msra.mxu0 0
    %1150 = vmatprep.subr.bf16.mxu0 0
    %1151 = vmatpush1.bf16.xpose.msra.mxu0 0
    %1152 = vmatprep.subr.bf16.mxu0 0
    %1153 = vmatpush1.bf16.xpose.msra.mxu0 0
    %1154 = vmatprep.subr.bf16.mxu0 0
    %1155 = vmatpush1.bf16.xpose.msra.mxu0 0
    %1156 = vmatprep.subr.bf16.mxu0 0
    %1157 = vmatpush1.bf16.xpose.msra.mxu0 0
    %1158 = vmatprep.subr.bf16.mxu0 0
    %1159 = vmatpush1.bf16.xpose.msra.mxu0 0
    %1160 = vmatprep.subr.bf16.mxu0 0
    %1161 = vmatpush1.bf16.xpose.msra.mxu0 0
    %1162 = vmatprep.mubr.bf16.mxu0 0
    %1163 = vmatmul.mubr.bf16.gmra.mrb[0].mxu0 %v1125
    %v1164 = vpop.f32.mrb[0].mxu0
    %v1165 = vadd.f32 0.0, %v1164
    %v1166 = vpop.f32.mrb[0].mxu0
    %v1167 = vpop.f32.mrb[0].mxu0
    %v1168 = vpop.f32.mrb[0].mxu0
    %1169 = vdwg.mxu0
    %v1170 = vmul.f32 %v1165, 0.17677669
    %v1171 = vsel %vm364, %v1170, -inf
    %1172 = vmax.xlane.f32.xlu0 %v1171
    %v1173 = vpop.xlane.xlu0 %1172
    %v1174 = vsub.f32 %v1170, %v1173
    %v1175 = vmul.f32 %v1174, 1.442695
    %v1176 = vpow.pop %v1175
    %v1177 = vsel %vm364, %v1176, 0.0
    %1178 = vadd.xlane.f32.xlu0 %v1177
    %v1179 = vpop.xlane.xlu0 %1178
    %v1180 = vrcp.pop %v1179
    %v1181 = vmul.f32 %v1176, %v1180
    %v1182 = vpack.c.bf16 %v1181, %v1181
    %1183 = vrot.lane.b32.xlu0 %v840, 32
    %v1184 = vpop.permute.xlu0 %1183
    %v1186 = vsel %vm364, %v1182, 0
    %v1189 = vsel %vm380, %v1184, 0
    %1191 = vmatprep.subr.bf16.mxu0 0
    %1192 = vmatpush1.bf16.msra.mxu0 %v1189
    %1193 = vmatprep.subr.bf16.mxu0 0
    %1194 = vmatpush1.bf16.msra.mxu0 0
    %1195 = vmatprep.subr.bf16.mxu0 0
    %1196 = vmatpush1.bf16.msra.mxu0 0
    %1197 = vmatprep.subr.bf16.mxu0 0
    %1198 = vmatpush1.bf16.msra.mxu0 0
    %1199 = vmatprep.subr.bf16.mxu0 0
    %1200 = vmatpush1.bf16.msra.mxu0 0
    %1201 = vmatprep.subr.bf16.mxu0 0
    %1202 = vmatpush1.bf16.msra.mxu0 0
    %1203 = vmatprep.subr.bf16.mxu0 0
    %1204 = vmatpush1.bf16.msra.mxu0 0
    %1205 = vmatprep.subr.bf16.mxu0 0
    %1206 = vmatpush1.bf16.msra.mxu0 0
    %1207 = vmatprep.subr.bf16.mxu0 0
    %1208 = vmatpush1.bf16.msra.mxu0 0
    %1209 = vmatprep.subr.bf16.mxu0 0
    %1210 = vmatpush1.bf16.msra.mxu0 0
    %1211 = vmatprep.subr.bf16.mxu0 0
    %1212 = vmatpush1.bf16.msra.mxu0 0
    %1213 = vmatprep.subr.bf16.mxu0 0
    %1214 = vmatpush1.bf16.msra.mxu0 0
    %1215 = vmatprep.subr.bf16.mxu0 0
    %1216 = vmatpush1.bf16.msra.mxu0 0
    %1217 = vmatprep.subr.bf16.mxu0 0
    %1218 = vmatpush1.bf16.msra.mxu0 0
    %1219 = vmatprep.subr.bf16.mxu0 0
    %1220 = vmatpush1.bf16.msra.mxu0 0
    %1221 = vmatprep.subr.bf16.mxu0 0
    %1222 = vmatpush1.bf16.msra.mxu0 0
    %1223 = vmatprep.mubr.bf16.mxu0 0
    %1224 = vmatmul.mubr.bf16.gmra.mrb[0].mxu0 %v1186
    %v1225 = vpop.f32.mrb[0].mxu0
    %v1226 = vadd.f32 0.0, %v1225
    %v1227 = vpop.f32.mrb[0].mxu0
    %v1228 = vpop.f32.mrb[0].mxu0
    %v1229 = vpop.f32.mrb[0].mxu0
    %1230 = vdwg.mxu0
    %1232 = vrot.lane.b32.xlu0 %v1226, 96
    %v1233 = vpop.permute.xlu0 %1232
    %1235 = vst.msk [vmem:[#allocation2 + $0x8] sm:$0xff] %vm777, %v1233
    %v1236 = vld [vmem:[#allocation2] sm:$0xff]
    %v1237 = vld [vmem:[#allocation2 + $0x8] sm:$0xff]
    %v1238 = vpack.c.bf16 %v1237, %v1236
    %v1239 = vld [vmem:[%s3] sm:$0xf]
    %v1240 = vld [vmem:[%s3 + $0x4] sm:$0xf]
    %v1241 = vld [vmem:[%s3 + $0x8] sm:$0xf]
    %v1242 = vld [vmem:[%s3 + $0xc] sm:$0xf]
    %v1243 = vld [vmem:[%s3 + $0x10] sm:$0xf]
    %v1244 = vld [vmem:[%s3 + $0x14] sm:$0xf]
    %v1245 = vld [vmem:[%s3 + $0x18] sm:$0xf]
    %v1246 = vld [vmem:[%s3 + $0x1c] sm:$0xf]
    %v1247 = vld [vmem:[%s3 + $0x20] sm:$0xf]
    %v1248 = vld [vmem:[%s3 + $0x24] sm:$0xf]
    %v1249 = vld [vmem:[%s3 + $0x28] sm:$0xf]
    %v1250 = vld [vmem:[%s3 + $0x2c] sm:$0xf]
    %v1251 = vld [vmem:[%s3 + $0x30] sm:$0xf]
    %v1252 = vld [vmem:[%s3 + $0x34] sm:$0xf]
    %v1253 = vld [vmem:[%s3 + $0x38] sm:$0xf]
    %v1254 = vld [vmem:[%s3 + $0x3c] sm:$0xf]
    %v1255 = vlaneseq
    %v1256 = vshrl.u32 %v1255, 7
    %v1257 = vsub.s32 0, %v1256
    %v1258 = vrot.slane %v312, %v1257
    %v1275 = vunpack.c.l.b16 %v1239
    %v1276 = vunpack.c.l.b16 %v1240
    %v1277 = vunpack.c.l.b16 %v1241
    %v1278 = vunpack.c.l.b16 %v1242
    %v1279 = vunpack.c.l.b16 %v1243
    %v1280 = vunpack.c.l.b16 %v1244
    %v1281 = vunpack.c.l.b16 %v1245
    %v1282 = vunpack.c.l.b16 %v1246
    %v1283 = vunpack.c.l.b16 %v1247
    %v1284 = vunpack.c.l.b16 %v1248
    %v1285 = vunpack.c.l.b16 %v1249
    %v1286 = vunpack.c.l.b16 %v1250
    %v1287 = vunpack.c.l.b16 %v1251
    %v1288 = vunpack.c.l.b16 %v1252
    %v1289 = vunpack.c.l.b16 %v1253
    %v1290 = vunpack.c.l.b16 %v1254
    %v1291 = vpack.c.b16 %v1276, %v1275
    %v1292 = vpack.c.b16 %v1278, %v1277
    %v1293 = vpack.c.b16 %v1280, %v1279
    %v1294 = vpack.c.b16 %v1282, %v1281
    %v1295 = vpack.c.b16 %v1284, %v1283
    %v1296 = vpack.c.b16 %v1286, %v1285
    %v1297 = vpack.c.b16 %v1288, %v1287
    %v1298 = vpack.c.b16 %v1290, %v1289
    %1307 = vmatprep.subr.bf16.mxu0 0
    %1308 = vmatpush1.bf16.msra.mxu0 %v1291
    %1309 = vmatprep.subr.bf16.mxu0 0
    %1310 = vmatpush1.bf16.msra.mxu0 %v1292
    %1311 = vmatprep.subr.bf16.mxu0 0
    %1312 = vmatpush1.bf16.msra.mxu0 %v1293
    %1313 = vmatprep.subr.bf16.mxu0 0
    %1314 = vmatpush1.bf16.msra.mxu0 %v1294
    %1315 = vmatprep.subr.bf16.mxu0 0
    %1316 = vmatpush1.bf16.msra.mxu0 %v1295
    %1317 = vmatprep.subr.bf16.mxu0 0
    %1318 = vmatpush1.bf16.msra.mxu0 %v1296
    %1319 = vmatprep.subr.bf16.mxu0 0
    %1320 = vmatpush1.bf16.msra.mxu0 %v1297
    %1321 = vmatprep.subr.bf16.mxu0 0
    %1322 = vmatpush1.bf16.msra.mxu0 %v1298
    %1323 = vmatprep.subr.bf16.mxu0 0
    %1324 = vmatpush1.bf16.msra.mxu0 0
    %1325 = vmatprep.subr.bf16.mxu0 0
    %1326 = vmatpush1.bf16.msra.mxu0 0
    %1327 = vmatprep.subr.bf16.mxu0 0
    %1328 = vmatpush1.bf16.msra.mxu0 0
    %1329 = vmatprep.subr.bf16.mxu0 0
    %1330 = vmatpush1.bf16.msra.mxu0 0
    %1331 = vmatprep.subr.bf16.mxu0 0
    %1332 = vmatpush1.bf16.msra.mxu0 0
    %1333 = vmatprep.subr.bf16.mxu0 0
    %1334 = vmatpush1.bf16.msra.mxu0 0
    %1335 = vmatprep.subr.bf16.mxu0 0
    %1336 = vmatpush1.bf16.msra.mxu0 0
    %1337 = vmatprep.subr.bf16.mxu0 0
    %1338 = vmatpush1.bf16.msra.mxu0 0
    %1339 = vmatprep.mubr.bf16.mxu0 0
    %1340 = vmatmul.mubr.bf16.gmra.mrb[0].mxu0 %v1238
    %v1341 = vpop.f32.mrb[0].mxu0
    %v1342 = vadd.f32 %v1258, %v1341
    %v1343 = vpop.f32.mrb[0].mxu0
    %v1344 = vpop.f32.mrb[0].mxu0
    %v1345 = vadd.f32 %v1258, %v1344
    %v1346 = vpop.f32.mrb[0].mxu0
    %1347 = vdwg.mxu0
    %v1348 = vld [vmem:[%s9 + $0x8] sm:$0x1]
    %v1349 = vld [vmem:[%s9 + $0x9] sm:$0x1]
    %v1350 = vadd.f32 %v40, %v1342
    %v1351 = vadd.f32 %v41, %v1345
    %1352 = vadd.xlane.f32.xlu0 %v1350
    %v1353 = vpop.xlane.xlu0 %1352
    %1354 = vadd.xlane.f32.xlu0 %v1351
    %v1355 = vpop.xlane.xlu0 %1354
    %v1356 = vrcp.pop 128.0
    %v1357 = vmul.f32 %v1353, %v1356
    %v1358 = vmul.f32 %v1355, %v1356
    %v1359 = vsub.f32 %v1350, %v1357
    %v1360 = vsub.f32 %v1351, %v1358
    %v1361 = vmul.f32 %v1359, %v1359
    %v1362 = vmul.f32 %v1360, %v1360
    %1363 = vadd.xlane.f32.xlu0 %v1361
    %v1364 = vpop.xlane.xlu0 %1363
    %1365 = vadd.xlane.f32.xlu0 %v1362
    %v1366 = vpop.xlane.xlu0 %1365
    %v1367 = vmul.f32 %v1364, %v1356
    %v1368 = vmul.f32 %v1366, %v1356
    %v1369 = vadd.f32 %v1367, 1e-05
    %v1370 = vadd.f32 %v1368, 1e-05
    %v1371 = vrsqrt.pop %v1369
    %v1372 = vrsqrt.pop %v1370
    %v1373 = vmul.f32 %v1359, %v1371
    %v1374 = vmul.f32 %v1360, %v1372
    %v1375 = vlaneseq
    %v1376 = vshrl.u32 %v1375, 7
    %v1377 = vsub.s32 0, %v1376
    %v1378 = vrot.slane %v1348, %v1377
    %v1379 = vmul.f32 %v1373, %v1378
    %v1380 = vmul.f32 %v1374, %v1378
    %v1381 = vlaneseq
    %v1382 = vshrl.u32 %v1381, 7
    %v1383 = vsub.s32 0, %v1382
    %v1384 = vrot.slane %v1349, %v1383
    %v1385 = vadd.f32 %v1379, %v1384
    %v1386 = vadd.f32 %v1380, %v1384
    %v1387 = vpack.c.bf16 %v1386, %v1385
    %v1388 = vld [vmem:[%s4] sm:$0xf]
    %v1389 = vld [vmem:[%s4 + $0x4] sm:$0xf]
    %v1390 = vld [vmem:[%s4 + $0x8] sm:$0xf]
    %v1391 = vld [vmem:[%s4 + $0xc] sm:$0xf]
    %v1392 = vld [vmem:[%s4 + $0x10] sm:$0xf]
    %v1393 = vld [vmem:[%s4 + $0x14] sm:$0xf]
    %v1394 = vld [vmem:[%s4 + $0x18] sm:$0xf]
    %v1395 = vld [vmem:[%s4 + $0x1c] sm:$0xf]
    %v1396 = vld [vmem:[%s4 + $0x20] sm:$0xf]
    %v1397 = vld [vmem:[%s4 + $0x24] sm:$0xf]
    %v1398 = vld [vmem:[%s4 + $0x28] sm:$0xf]
    %v1399 = vld [vmem:[%s4 + $0x2c] sm:$0xf]
    %v1400 = vld [vmem:[%s4 + $0x30] sm:$0xf]
    %v1401 = vld [vmem:[%s4 + $0x34] sm:$0xf]
    %v1402 = vld [vmem:[%s4 + $0x38] sm:$0xf]
    %v1403 = vld [vmem:[%s4 + $0x3c] sm:$0xf]
    %v1404 = vld [vmem:[%s9 + $0x4] sm:$0x1]
    %v1405 = vlaneseq
    %v1406 = vshrl.u32 %v1405, 7
    %v1407 = vsub.s32 0, %v1406
    %v1408 = vrot.slane %v1404, %v1407
    %v1425 = vunpack.c.l.b16 %v1388
    %v1426 = vunpack.c.l.b16 %v1389
    %v1427 = vunpack.c.l.b16 %v1390
    %v1428 = vunpack.c.l.b16 %v1391
    %v1429 = vunpack.c.l.b16 %v1392
    %v1430 = vunpack.c.l.b16 %v1393
    %v1431 = vunpack.c.l.b16 %v1394
    %v1432 = vunpack.c.l.b16 %v1395
    %v1433 = vunpack.c.l.b16 %v1396
    %v1434 = vunpack.c.l.b16 %v1397
    %v1435 = vunpack.c.l.b16 %v1398
    %v1436 = vunpack.c.l.b16 %v1399
    %v1437 = vunpack.c.l.b16 %v1400
    %v1438 = vunpack.c.l.b16 %v1401
    %v1439 = vunpack.c.l.b16 %v1402
    %v1440 = vunpack.c.l.b16 %v1403
    %v1441 = vpack.c.b16 %v1426, %v1425
    %v1442 = vpack.c.b16 %v1428, %v1427
    %v1443 = vpack.c.b16 %v1430, %v1429
    %v1444 = vpack.c.b16 %v1432, %v1431
    %v1445 = vpack.c.b16 %v1434, %v1433
    %v1446 = vpack.c.b16 %v1436, %v1435
    %v1447 = vpack.c.b16 %v1438, %v1437
    %v1448 = vpack.c.b16 %v1440, %v1439
    %1457 = vmatprep.subr.bf16.mxu0 0
    %1458 = vmatpush1.bf16.msra.mxu0 %v1441
    %1459 = vmatprep.subr.bf16.mxu0 0
    %1460 = vmatpush1.bf16.msra.mxu0 %v1442
    %1461 = vmatprep.subr.bf16.mxu0 0
    %1462 = vmatpush1.bf16.msra.mxu0 %v1443
    %1463 = vmatprep.subr.bf16.mxu0 0
    %1464 = vmatpush1.bf16.msra.mxu0 %v1444
    %1465 = vmatprep.subr.bf16.mxu0 0
    %1466 = vmatpush1.bf16.msra.mxu0 %v1445
    %1467 = vmatprep.subr.bf16.mxu0 0
    %1468 = vmatpush1.bf16.msra.mxu0 %v1446
    %1469 = vmatprep.subr.bf16.mxu0 0
    %1470 = vmatpush1.bf16.msra.mxu0 %v1447
    %1471 = vmatprep.subr.bf16.mxu0 0
    %1472 = vmatpush1.bf16.msra.mxu0 %v1448
    %1473 = vmatprep.subr.bf16.mxu0 0
    %1474 = vmatpush1.bf16.msra.mxu0 0
    %1475 = vmatprep.subr.bf16.mxu0 0
    %1476 = vmatpush1.bf16.msra.mxu0 0
    %1477 = vmatprep.subr.bf16.mxu0 0
    %1478 = vmatpush1.bf16.msra.mxu0 0
    %1479 = vmatprep.subr.bf16.mxu0 0
    %1480 = vmatpush1.bf16.msra.mxu0 0
    %1481 = vmatprep.subr.bf16.mxu0 0
    %1482 = vmatpush1.bf16.msra.mxu0 0
    %1483 = vmatprep.subr.bf16.mxu0 0
    %1484 = vmatpush1.bf16.msra.mxu0 0
    %1485 = vmatprep.subr.bf16.mxu0 0
    %1486 = vmatpush1.bf16.msra.mxu0 0
    %1487 = vmatprep.subr.bf16.mxu0 0
    %1488 = vmatpush1.bf16.msra.mxu0 0
    %1489 = vmatprep.mubr.bf16.mxu0 0
    %1490 = vmatmul.mubr.bf16.gmra.mrb[0].mxu0 %v1387
    %v1491 = vpop.f32.mrb[0].mxu0
    %v1492 = vadd.f32 %v1408, %v1491
    %v1493 = vpop.f32.mrb[0].mxu0
    %v1494 = vpop.f32.mrb[0].mxu0
    %v1495 = vadd.f32 %v1408, %v1494
    %v1496 = vpop.f32.mrb[0].mxu0
    %1497 = vdwg.mxu0
    %v1498 = vpack.c.bf16 %v43, %v42
    %v1499 = vpack.c.bf16 %v45, %v44
    %v1500 = vld [vmem:[%s5] sm:$0xff]
    %v1501 = vld [vmem:[%s5 + $0x8] sm:$0xff]
    %v1502 = vld [vmem:[%s5 + $0x10] sm:$0xff]
    %v1503 = vld [vmem:[%s5 + $0x18] sm:$0xff]
    %v1504 = vld [vmem:[%s5 + $0x20] sm:$0xff]
    %v1505 = vld [vmem:[%s5 + $0x28] sm:$0xff]
    %v1506 = vld [vmem:[%s5 + $0x30] sm:$0xff]
    %v1507 = vld [vmem:[%s5 + $0x38] sm:$0xff]
    %v1508 = vld [vmem:[%s5 + $0x40] sm:$0xff]
    %v1509 = vld [vmem:[%s5 + $0x48] sm:$0xff]
    %v1510 = vld [vmem:[%s5 + $0x50] sm:$0xff]
    %v1511 = vld [vmem:[%s5 + $0x58] sm:$0xff]
    %v1512 = vld [vmem:[%s5 + $0x60] sm:$0xff]
    %v1513 = vld [vmem:[%s5 + $0x68] sm:$0xff]
    %v1514 = vld [vmem:[%s5 + $0x70] sm:$0xff]
    %v1515 = vld [vmem:[%s5 + $0x78] sm:$0xff]
    %v1532 = vunpack.c.l.b16 %v1500
    %v1533 = vunpack.c.h.b16 %v1500
    %v1534 = vunpack.c.l.b16 %v1501
    %v1535 = vunpack.c.h.b16 %v1501
    %v1536 = vunpack.c.l.b16 %v1502
    %v1537 = vunpack.c.h.b16 %v1502
    %v1538 = vunpack.c.l.b16 %v1503
    %v1539 = vunpack.c.h.b16 %v1503
    %v1540 = vunpack.c.l.b16 %v1504
    %v1541 = vunpack.c.h.b16 %v1504
    %v1542 = vunpack.c.l.b16 %v1505
    %v1543 = vunpack.c.h.b16 %v1505
    %v1544 = vunpack.c.l.b16 %v1506
    %v1545 = vunpack.c.h.b16 %v1506
    %v1546 = vunpack.c.l.b16 %v1507
    %v1547 = vunpack.c.h.b16 %v1507
    %v1548 = vunpack.c.l.b16 %v1508
    %v1549 = vunpack.c.h.b16 %v1508
    %v1550 = vunpack.c.l.b16 %v1509
    %v1551 = vunpack.c.h.b16 %v1509
    %v1552 = vunpack.c.l.b16 %v1510
    %v1553 = vunpack.c.h.b16 %v1510
    %v1554 = vunpack.c.l.b16 %v1511
    %v1555 = vunpack.c.h.b16 %v1511
    %v1556 = vunpack.c.l.b16 %v1512
    %v1557 = vunpack.c.h.b16 %v1512
    %v1558 = vunpack.c.l.b16 %v1513
    %v1559 = vunpack.c.h.b16 %v1513
    %v1560 = vunpack.c.l.b16 %v1514
    %v1561 = vunpack.c.h.b16 %v1514
    %v1562 = vunpack.c.l.b16 %v1515
    %v1563 = vunpack.c.h.b16 %v1515
    %v1564 = vpack.c.b16 %v1534, %v1532
    %v1565 = vpack.c.b16 %v1535, %v1533
    %v1566 = vpack.c.b16 %v1538, %v1536
    %v1567 = vpack.c.b16 %v1539, %v1537
    %v1568 = vpack.c.b16 %v1542, %v1540
    %v1569 = vpack.c.b16 %v1543, %v1541
    %v1570 = vpack.c.b16 %v1546, %v1544
    %v1571 = vpack.c.b16 %v1547, %v1545
    %v1572 = vpack.c.b16 %v1550, %v1548
    %v1573 = vpack.c.b16 %v1551, %v1549
    %v1574 = vpack.c.b16 %v1554, %v1552
    %v1575 = vpack.c.b16 %v1555, %v1553
    %v1576 = vpack.c.b16 %v1558, %v1556
    %v1577 = vpack.c.b16 %v1559, %v1557
    %v1578 = vpack.c.b16 %v1562, %v1560
    %v1579 = vpack.c.b16 %v1563, %v1561
    %1596 = vmatprep.subr.bf16.mxu0 %v1565
    %1597 = vmatpush1.bf16.msra.mxu0 %v1564
    %1598 = vmatprep.subr.bf16.mxu0 %v1567
    %1599 = vmatpush1.bf16.msra.mxu0 %v1566
    %1600 = vmatprep.subr.bf16.mxu0 %v1569
    %1601 = vmatpush1.bf16.msra.mxu0 %v1568
    %1602 = vmatprep.subr.bf16.mxu0 %v1571
    %1603 = vmatpush1.bf16.msra.mxu0 %v1570
    %1604 = vmatprep.subr.bf16.mxu0 %v1573
    %1605 = vmatpush1.bf16.msra.mxu0 %v1572
    %1606 = vmatprep.subr.bf16.mxu0 %v1575
    %1607 = vmatpush1.bf16.msra.mxu0 %v1574
    %1608 = vmatprep.subr.bf16.mxu0 %v1577
    %1609 = vmatpush1.bf16.msra.mxu0 %v1576
    %1610 = vmatprep.subr.bf16.mxu0 %v1579
    %1611 = vmatpush1.bf16.msra.mxu0 %v1578
    %1612 = vmatprep.subr.bf16.mxu0 0
    %1613 = vmatpush1.bf16.msra.mxu0 0
    %1614 = vmatprep.subr.bf16.mxu0 0
    %1615 = vmatpush1.bf16.msra.mxu0 0
    %1616 = vmatprep.subr.bf16.mxu0 0
    %1617 = vmatpush1.bf16.msra.mxu0 0
    %1618 = vmatprep.subr.bf16.mxu0 0
    %1619 = vmatpush1.bf16.msra.mxu0 0
    %1620 = vmatprep.subr.bf16.mxu0 0
    %1621 = vmatpush1.bf16.msra.mxu0 0
    %1622 = vmatprep.subr.bf16.mxu0 0
    %1623 = vmatpush1.bf16.msra.mxu0 0
    %1624 = vmatprep.subr.bf16.mxu0 0
    %1625 = vmatpush1.bf16.msra.mxu0 0
    %1626 = vmatprep.subr.bf16.mxu0 0
    %1627 = vmatpush1.bf16.msra.mxu0 0
    %1628 = vmatprep.mubr.bf16.mxu0 0
    %1629 = vmatmul.mubr.bf16.gmra.mrb[0].mxu0 %v1498
    %v1630 = vpop.f32.mrb[0].mxu0
    %v1631 = vadd.f32 0.0, %v1630
    %v1632 = vpop.f32.mrb[0].mxu0
    %v1633 = vadd.f32 0.0, %v1632
    %v1634 = vpop.f32.mrb[0].mxu0
    %v1635 = vadd.f32 0.0, %v1634
    %v1636 = vpop.f32.mrb[0].mxu0
    %v1637 = vadd.f32 0.0, %v1636
    %1638 = vmatprep.mubr.bf16.mxu0 0
    %1639 = vmatmul.mubr.bf16.gmra.mrb[0].mxu0 %v1499
    %v1640 = vpop.f32.mrb[0].mxu0
    %v1641 = vadd.f32 0.0, %v1640
    %v1642 = vpop.f32.mrb[0].mxu0
    %v1643 = vadd.f32 0.0, %v1642
    %v1644 = vpop.f32.mrb[0].mxu0
    %v1645 = vadd.f32 0.0, %v1644
    %v1646 = vpop.f32.mrb[0].mxu0
    %v1647 = vadd.f32 0.0, %v1646
    %1648 = vdwg.mxu0
    %v1649 = vld [vmem:[%s9 + $0x5] sm:$0x1]
    %v1650 = vlaneseq
    %v1651 = vshrl.u32 %v1650, 7
    %v1652 = vsub.s32 0, %v1651
    %v1653 = vrot.slane %v1649, %v1652
    %v1654 = vadd.f32 %v1631, %v1653
    %v1655 = vadd.f32 %v1635, %v1653
    %v1656 = vadd.f32 %v1641, %v1653
    %v1657 = vadd.f32 %v1645, %v1653
    %v1658 = vld [vmem:[%s9 + $0x6] sm:$0x1]
    %v1659 = vlaneseq
    %v1660 = vshrl.u32 %v1659, 7
    %v1661 = vsub.s32 0, %v1660
    %v1662 = vrot.slane %v1658, %v1661
    %v1663 = vadd.f32 %v1633, %v1662
    %v1664 = vadd.f32 %v1637, %v1662
    %v1665 = vadd.f32 %v1643, %v1662
    %v1666 = vadd.f32 %v1647, %v1662
    %v1667 = vld [vmem:[%s9 + $0x7] sm:$0x1]
    %v1668 = vpack.c.bf16 %v1495, %v1492
    %v1669 = vpack.c.bf16 %v1655, %v1654
    %v1670 = vpack.c.bf16 %v1657, %v1656
    %v1671 = vpack.c.bf16 %v1664, %v1663
    %v1672 = vpack.c.bf16 %v1666, %v1665
    %v1674 = vsel %vm316, %v1668, 0
    %v1677 = vsel %vm316, %v1669, 0
    %1679 = vmatprep.subr.bf16.mxu0 0
    %1680 = vmatpush1.bf16.xpose.msra.mxu0 %v1677
    %1681 = vmatprep.subr.bf16.mxu0 0
    %1682 = vmatpush1.bf16.xpose.msra.mxu0 0
    %1683 = vmatprep.subr.bf16.mxu0 0
    %1684 = vmatpush1.bf16.xpose.msra.mxu0 0
    %1685 = vmatprep.subr.bf16.mxu0 0
    %1686 = vmatpush1.bf16.xpose.msra.mxu0 0
    %1687 = vmatprep.subr.bf16.mxu0 0
    %1688 = vmatpush1.bf16.xpose.msra.mxu0 0
    %1689 = vmatprep.subr.bf16.mxu0 0
    %1690 = vmatpush1.bf16.xpose.msra.mxu0 0
    %1691 = vmatprep.subr.bf16.mxu0 0
    %1692 = vmatpush1.bf16.xpose.msra.mxu0 0
    %1693 = vmatprep.subr.bf16.mxu0 0
    %1694 = vmatpush1.bf16.xpose.msra.mxu0 0
    %1695 = vmatprep.subr.bf16.mxu0 0
    %1696 = vmatpush1.bf16.xpose.msra.mxu0 0
    %1697 = vmatprep.subr.bf16.mxu0 0
    %1698 = vmatpush1.bf16.xpose.msra.mxu0 0
    %1699 = vmatprep.subr.bf16.mxu0 0
    %1700 = vmatpush1.bf16.xpose.msra.mxu0 0
    %1701 = vmatprep.subr.bf16.mxu0 0
    %1702 = vmatpush1.bf16.xpose.msra.mxu0 0
    %1703 = vmatprep.subr.bf16.mxu0 0
    %1704 = vmatpush1.bf16.xpose.msra.mxu0 0
    %1705 = vmatprep.subr.bf16.mxu0 0
    %1706 = vmatpush1.bf16.xpose.msra.mxu0 0
    %1707 = vmatprep.subr.bf16.mxu0 0
    %1708 = vmatpush1.bf16.xpose.msra.mxu0 0
    %1709 = vmatprep.subr.bf16.mxu0 0
    %1710 = vmatpush1.bf16.xpose.msra.mxu0 0
    %1711 = vmatprep.mubr.bf16.mxu0 0
    %1712 = vmatmul.mubr.bf16.gmra.mrb[0].mxu0 %v1674
    %v1713 = vpop.f32.mrb[0].mxu0
    %v1714 = vadd.f32 0.0, %v1713
    %v1715 = vpop.f32.mrb[0].mxu0
    %v1716 = vpop.f32.mrb[0].mxu0
    %v1717 = vpop.f32.mrb[0].mxu0
    %1718 = vdwg.mxu0
    %v1719 = vmul.f32 %v1714, 0.17677669
    %vm1720 = vcmask 130048
    %v1721 = vsel %vm1720, %v1719, -inf
    %1722 = vmax.xlane.f32.xlu0 %v1721
    %v1723 = vpop.xlane.xlu0 %1722
    %v1724 = vsub.f32 %v1719, %v1723
    %v1725 = vmul.f32 %v1724, 1.442695
    %v1726 = vpow.pop %v1725
    %v1727 = vsel %vm1720, %v1726, 0.0
    %1728 = vadd.xlane.f32.xlu0 %v1727
    %v1729 = vpop.xlane.xlu0 %1728
    %v1730 = vrcp.pop %v1729
    %v1731 = vmul.f32 %v1726, %v1730
    %v1732 = vpack.c.bf16 %v1731, %v1731
    %v1734 = vsel %vm1720, %v1732, 0
    %1736 = vmatprep.subr.bf16.mxu0 0
    %1737 = vmatpush1.bf16.msra.mxu0 %v1671
    %1738 = vmatprep.subr.bf16.mxu0 0
    %1739 = vmatpush1.bf16.msra.mxu0 0
    %1740 = vmatprep.subr.bf16.mxu0 0
    %1741 = vmatpush1.bf16.msra.mxu0 0
    %1742 = vmatprep.subr.bf16.mxu0 0
    %1743 = vmatpush1.bf16.msra.mxu0 0
    %1744 = vmatprep.subr.bf16.mxu0 0
    %1745 = vmatpush1.bf16.msra.mxu0 0
    %1746 = vmatprep.subr.bf16.mxu0 0
    %1747 = vmatpush1.bf16.msra.mxu0 0
    %1748 = vmatprep.subr.bf16.mxu0 0
    %1749 = vmatpush1.bf16.msra.mxu0 0
    %1750 = vmatprep.subr.bf16.mxu0 0
    %1751 = vmatpush1.bf16.msra.mxu0 0
    %1752 = vmatprep.subr.bf16.mxu0 0
    %1753 = vmatpush1.bf16.msra.mxu0 0
    %1754 = vmatprep.subr.bf16.mxu0 0
    %1755 = vmatpush1.bf16.msra.mxu0 0
    %1756 = vmatprep.subr.bf16.mxu0 0
    %1757 = vmatpush1.bf16.msra.mxu0 0
    %1758 = vmatprep.subr.bf16.mxu0 0
    %1759 = vmatpush1.bf16.msra.mxu0 0
    %1760 = vmatprep.subr.bf16.mxu0 0
    %1761 = vmatpush1.bf16.msra.mxu0 0
    %1762 = vmatprep.subr.bf16.mxu0 0
    %1763 = vmatpush1.bf16.msra.mxu0 0
    %1764 = vmatprep.subr.bf16.mxu0 0
    %1765 = vmatpush1.bf16.msra.mxu0 0
    %1766 = vmatprep.subr.bf16.mxu0 0
    %1767 = vmatpush1.bf16.msra.mxu0 0
    %1768 = vmatprep.mubr.bf16.mxu0 0
    %1769 = vmatmul.mubr.bf16.gmra.mrb[0].mxu0 %v1734
    %v1770 = vpop.f32.mrb[0].mxu0
    %v1771 = vadd.f32 0.0, %v1770
    %v1772 = vpop.f32.mrb[0].mxu0
    %v1773 = vpop.f32.mrb[0].mxu0
    %v1774 = vpop.f32.mrb[0].mxu0
    %1775 = vdwg.mxu0
    %1776 = vst.msk [vmem:[#allocation2] sm:$0xff] %vm316, %v1771
    %1778 = vrot.lane.b32.xlu0 %v1668, 96
    %v1779 = vpop.permute.xlu0 %1778
    %1781 = vrot.lane.b32.xlu0 %v1669, 96
    %v1782 = vpop.permute.xlu0 %1781
    %v1784 = vsel %vm316, %v1779, 0
    %v1787 = vsel %vm316, %v1782, 0
    %1789 = vmatprep.subr.bf16.mxu0 0
    %1790 = vmatpush1.bf16.xpose.msra.mxu0 %v1787
    %1791 = vmatprep.subr.bf16.mxu0 0
    %1792 = vmatpush1.bf16.xpose.msra.mxu0 0
    %1793 = vmatprep.subr.bf16.mxu0 0
    %1794 = vmatpush1.bf16.xpose.msra.mxu0 0
    %1795 = vmatprep.subr.bf16.mxu0 0
    %1796 = vmatpush1.bf16.xpose.msra.mxu0 0
    %1797 = vmatprep.subr.bf16.mxu0 0
    %1798 = vmatpush1.bf16.xpose.msra.mxu0 0
    %1799 = vmatprep.subr.bf16.mxu0 0
    %1800 = vmatpush1.bf16.xpose.msra.mxu0 0
    %1801 = vmatprep.subr.bf16.mxu0 0
    %1802 = vmatpush1.bf16.xpose.msra.mxu0 0
    %1803 = vmatprep.subr.bf16.mxu0 0
    %1804 = vmatpush1.bf16.xpose.msra.mxu0 0
    %1805 = vmatprep.subr.bf16.mxu0 0
    %1806 = vmatpush1.bf16.xpose.msra.mxu0 0
    %1807 = vmatprep.subr.bf16.mxu0 0
    %1808 = vmatpush1.bf16.xpose.msra.mxu0 0
    %1809 = vmatprep.subr.bf16.mxu0 0
    %1810 = vmatpush1.bf16.xpose.msra.mxu0 0
    %1811 = vmatprep.subr.bf16.mxu0 0
    %1812 = vmatpush1.bf16.xpose.msra.mxu0 0
    %1813 = vmatprep.subr.bf16.mxu0 0
    %1814 = vmatpush1.bf16.xpose.msra.mxu0 0
    %1815 = vmatprep.subr.bf16.mxu0 0
    %1816 = vmatpush1.bf16.xpose.msra.mxu0 0
    %1817 = vmatprep.subr.bf16.mxu0 0
    %1818 = vmatpush1.bf16.xpose.msra.mxu0 0
    %1819 = vmatprep.subr.bf16.mxu0 0
    %1820 = vmatpush1.bf16.xpose.msra.mxu0 0
    %1821 = vmatprep.mubr.bf16.mxu0 0
    %1822 = vmatmul.mubr.bf16.gmra.mrb[0].mxu0 %v1784
    %v1823 = vpop.f32.mrb[0].mxu0
    %v1824 = vadd.f32 0.0, %v1823
    %v1825 = vpop.f32.mrb[0].mxu0
    %v1826 = vpop.f32.mrb[0].mxu0
    %v1827 = vpop.f32.mrb[0].mxu0
    %1828 = vdwg.mxu0
    %v1829 = vmul.f32 %v1824, 0.17677669
    %v1830 = vsel %vm1720, %v1829, -inf
    %1831 = vmax.xlane.f32.xlu0 %v1830
    %v1832 = vpop.xlane.xlu0 %1831
    %v1833 = vsub.f32 %v1829, %v1832
    %v1834 = vmul.f32 %v1833, 1.442695
    %v1835 = vpow.pop %v1834
    %v1836 = vsel %vm1720, %v1835, 0.0
    %1837 = vadd.xlane.f32.xlu0 %v1836
    %v1838 = vpop.xlane.xlu0 %1837
    %v1839 = vrcp.pop %v1838
    %v1840 = vmul.f32 %v1835, %v1839
    %v1841 = vpack.c.bf16 %v1840, %v1840
    %1843 = vrot.lane.b32.xlu0 %v1671, 96
    %v1844 = vpop.permute.xlu0 %1843
    %v1847 = vsel %vm1720, %v1841, 0
    %1849 = vmatprep.subr.bf16.mxu0 0
    %1850 = vmatpush1.bf16.msra.mxu0 %v1844
    %1851 = vmatprep.subr.bf16.mxu0 0
    %1852 = vmatpush1.bf16.msra.mxu0 0
    %1853 = vmatprep.subr.bf16.mxu0 0
    %1854 = vmatpush1.bf16.msra.mxu0 0
    %1855 = vmatprep.subr.bf16.mxu0 0
    %1856 = vmatpush1.bf16.msra.mxu0 0
    %1857 = vmatprep.subr.bf16.mxu0 0
    %1858 = vmatpush1.bf16.msra.mxu0 0
    %1859 = vmatprep.subr.bf16.mxu0 0
    %1860 = vmatpush1.bf16.msra.mxu0 0
    %1861 = vmatprep.subr.bf16.mxu0 0
    %1862 = vmatpush1.bf16.msra.mxu0 0
    %1863 = vmatprep.subr.bf16.mxu0 0
    %1864 = vmatpush1.bf16.msra.mxu0 0
    %1865 = vmatprep.subr.bf16.mxu0 0
    %1866 = vmatpush1.bf16.msra.mxu0 0
    %1867 = vmatprep.subr.bf16.mxu0 0
    %1868 = vmatpush1.bf16.msra.mxu0 0
    %1869 = vmatprep.subr.bf16.mxu0 0
    %1870 = vmatpush1.bf16.msra.mxu0 0
    %1871 = vmatprep.subr.bf16.mxu0 0
    %1872 = vmatpush1.bf16.msra.mxu0 0
    %1873 = vmatprep.subr.bf16.mxu0 0
    %1874 = vmatpush1.bf16.msra.mxu0 0
    %1875 = vmatprep.subr.bf16.mxu0 0
    %1876 = vmatpush1.bf16.msra.mxu0 0
    %1877 = vmatprep.subr.bf16.mxu0 0
    %1878 = vmatpush1.bf16.msra.mxu0 0
    %1879 = vmatprep.subr.bf16.mxu0 0
    %1880 = vmatpush1.bf16.msra.mxu0 0
    %1881 = vmatprep.mubr.bf16.mxu0 0
    %1882 = vmatmul.mubr.bf16.gmra.mrb[0].mxu0 %v1847
    %v1883 = vpop.f32.mrb[0].mxu0
    %v1884 = vadd.f32 0.0, %v1883
    %v1885 = vpop.f32.mrb[0].mxu0
    %v1886 = vpop.f32.mrb[0].mxu0
    %v1887 = vpop.f32.mrb[0].mxu0
    %1888 = vdwg.mxu0
    %1890 = vrot.lane.b32.xlu0 %v1884, 32
    %v1891 = vpop.permute.xlu0 %1890
    %1893 = vst.msk [vmem:[#allocation2] sm:$0xff] %vm543, %v1891
    %1894 = vrot.lane.b32.xlu0 %v1668, 64
    %v1895 = vpop.permute.xlu0 %1894
    %1896 = vrot.lane.b32.xlu0 %v1669, 64
    %v1897 = vpop.permute.xlu0 %1896
    %v1899 = vsel %vm316, %v1895, 0
    %v1902 = vsel %vm316, %v1897, 0
    %1904 = vmatprep.subr.bf16.mxu0 0
    %1905 = vmatpush1.bf16.xpose.msra.mxu0 %v1902
    %1906 = vmatprep.subr.bf16.mxu0 0
    %1907 = vmatpush1.bf16.xpose.msra.mxu0 0
    %1908 = vmatprep.subr.bf16.mxu0 0
    %1909 = vmatpush1.bf16.xpose.msra.mxu0 0
    %1910 = vmatprep.subr.bf16.mxu0 0
    %1911 = vmatpush1.bf16.xpose.msra.mxu0 0
    %1912 = vmatprep.subr.bf16.mxu0 0
    %1913 = vmatpush1.bf16.xpose.msra.mxu0 0
    %1914 = vmatprep.subr.bf16.mxu0 0
    %1915 = vmatpush1.bf16.xpose.msra.mxu0 0
    %1916 = vmatprep.subr.bf16.mxu0 0
    %1917 = vmatpush1.bf16.xpose.msra.mxu0 0
    %1918 = vmatprep.subr.bf16.mxu0 0
    %1919 = vmatpush1.bf16.xpose.msra.mxu0 0
    %1920 = vmatprep.subr.bf16.mxu0 0
    %1921 = vmatpush1.bf16.xpose.msra.mxu0 0
    %1922 = vmatprep.subr.bf16.mxu0 0
    %1923 = vmatpush1.bf16.xpose.msra.mxu0 0
    %1924 = vmatprep.subr.bf16.mxu0 0
    %1925 = vmatpush1.bf16.xpose.msra.mxu0 0
    %1926 = vmatprep.subr.bf16.mxu0 0
    %1927 = vmatpush1.bf16.xpose.msra.mxu0 0
    %1928 = vmatprep.subr.bf16.mxu0 0
    %1929 = vmatpush1.bf16.xpose.msra.mxu0 0
    %1930 = vmatprep.subr.bf16.mxu0 0
    %1931 = vmatpush1.bf16.xpose.msra.mxu0 0
    %1932 = vmatprep.subr.bf16.mxu0 0
    %1933 = vmatpush1.bf16.xpose.msra.mxu0 0
    %1934 = vmatprep.subr.bf16.mxu0 0
    %1935 = vmatpush1.bf16.xpose.msra.mxu0 0
    %1936 = vmatprep.mubr.bf16.mxu0 0
    %1937 = vmatmul.mubr.bf16.gmra.mrb[0].mxu0 %v1899
    %v1938 = vpop.f32.mrb[0].mxu0
    %v1939 = vadd.f32 0.0, %v1938
    %v1940 = vpop.f32.mrb[0].mxu0
    %v1941 = vpop.f32.mrb[0].mxu0
    %v1942 = vpop.f32.mrb[0].mxu0
    %1943 = vdwg.mxu0
    %v1944 = vmul.f32 %v1939, 0.17677669
    %v1945 = vsel %vm1720, %v1944, -inf
    %1946 = vmax.xlane.f32.xlu0 %v1945
    %v1947 = vpop.xlane.xlu0 %1946
    %v1948 = vsub.f32 %v1944, %v1947
    %v1949 = vmul.f32 %v1948, 1.442695
    %v1950 = vpow.pop %v1949
    %v1951 = vsel %vm1720, %v1950, 0.0
    %1952 = vadd.xlane.f32.xlu0 %v1951
    %v1953 = vpop.xlane.xlu0 %1952
    %v1954 = vrcp.pop %v1953
    %v1955 = vmul.f32 %v1950, %v1954
    %v1956 = vpack.c.bf16 %v1955, %v1955
    %1957 = vrot.lane.b32.xlu0 %v1671, 64
    %v1958 = vpop.permute.xlu0 %1957
    %v1961 = vsel %vm1720, %v1956, 0
    %1963 = vmatprep.subr.bf16.mxu0 0
    %1964 = vmatpush1.bf16.msra.mxu0 %v1958
    %1965 = vmatprep.subr.bf16.mxu0 0
    %1966 = vmatpush1.bf16.msra.mxu0 0
    %1967 = vmatprep.subr.bf16.mxu0 0
    %1968 = vmatpush1.bf16.msra.mxu0 0
    %1969 = vmatprep.subr.bf16.mxu0 0
    %1970 = vmatpush1.bf16.msra.mxu0 0
    %1971 = vmatprep.subr.bf16.mxu0 0
    %1972 = vmatpush1.bf16.msra.mxu0 0
    %1973 = vmatprep.subr.bf16.mxu0 0
    %1974 = vmatpush1.bf16.msra.mxu0 0
    %1975 = vmatprep.subr.bf16.mxu0 0
    %1976 = vmatpush1.bf16.msra.mxu0 0
    %1977 = vmatprep.subr.bf16.mxu0 0
    %1978 = vmatpush1.bf16.msra.mxu0 0
    %1979 = vmatprep.subr.bf16.mxu0 0
    %1980 = vmatpush1.bf16.msra.mxu0 0
    %1981 = vmatprep.subr.bf16.mxu0 0
    %1982 = vmatpush1.bf16.msra.mxu0 0
    %1983 = vmatprep.subr.bf16.mxu0 0
    %1984 = vmatpush1.bf16.msra.mxu0 0
    %1985 = vmatprep.subr.bf16.mxu0 0
    %1986 = vmatpush1.bf16.msra.mxu0 0
    %1987 = vmatprep.subr.bf16.mxu0 0
    %1988 = vmatpush1.bf16.msra.mxu0 0
    %1989 = vmatprep.subr.bf16.mxu0 0
    %1990 = vmatpush1.bf16.msra.mxu0 0
    %1991 = vmatprep.subr.bf16.mxu0 0
    %1992 = vmatpush1.bf16.msra.mxu0 0
    %1993 = vmatprep.subr.bf16.mxu0 0
    %1994 = vmatpush1.bf16.msra.mxu0 0
    %1995 = vmatprep.mubr.bf16.mxu0 0
    %1996 = vmatmul.mubr.bf16.gmra.mrb[0].mxu0 %v1961
    %v1997 = vpop.f32.mrb[0].mxu0
    %v1998 = vadd.f32 0.0, %v1997
    %v1999 = vpop.f32.mrb[0].mxu0
    %v2000 = vpop.f32.mrb[0].mxu0
    %v2001 = vpop.f32.mrb[0].mxu0
    %2002 = vdwg.mxu0
    %2004 = vrot.lane.b32.xlu0 %v1998, 64
    %v2005 = vpop.permute.xlu0 %2004
    %2007 = vst.msk [vmem:[#allocation2] sm:$0xff] %vm660, %v2005
    %2008 = vrot.lane.b32.xlu0 %v1668, 32
    %v2009 = vpop.permute.xlu0 %2008
    %2010 = vrot.lane.b32.xlu0 %v1669, 32
    %v2011 = vpop.permute.xlu0 %2010
    %v2013 = vsel %vm316, %v2009, 0
    %v2016 = vsel %vm316, %v2011, 0
    %2018 = vmatprep.subr.bf16.mxu0 0
    %2019 = vmatpush1.bf16.xpose.msra.mxu0 %v2016
    %2020 = vmatprep.subr.bf16.mxu0 0
    %2021 = vmatpush1.bf16.xpose.msra.mxu0 0
    %2022 = vmatprep.subr.bf16.mxu0 0
    %2023 = vmatpush1.bf16.xpose.msra.mxu0 0
    %2024 = vmatprep.subr.bf16.mxu0 0
    %2025 = vmatpush1.bf16.xpose.msra.mxu0 0
    %2026 = vmatprep.subr.bf16.mxu0 0
    %2027 = vmatpush1.bf16.xpose.msra.mxu0 0
    %2028 = vmatprep.subr.bf16.mxu0 0
    %2029 = vmatpush1.bf16.xpose.msra.mxu0 0
    %2030 = vmatprep.subr.bf16.mxu0 0
    %2031 = vmatpush1.bf16.xpose.msra.mxu0 0
    %2032 = vmatprep.subr.bf16.mxu0 0
    %2033 = vmatpush1.bf16.xpose.msra.mxu0 0
    %2034 = vmatprep.subr.bf16.mxu0 0
    %2035 = vmatpush1.bf16.xpose.msra.mxu0 0
    %2036 = vmatprep.subr.bf16.mxu0 0
    %2037 = vmatpush1.bf16.xpose.msra.mxu0 0
    %2038 = vmatprep.subr.bf16.mxu0 0
    %2039 = vmatpush1.bf16.xpose.msra.mxu0 0
    %2040 = vmatprep.subr.bf16.mxu0 0
    %2041 = vmatpush1.bf16.xpose.msra.mxu0 0
    %2042 = vmatprep.subr.bf16.mxu0 0
    %2043 = vmatpush1.bf16.xpose.msra.mxu0 0
    %2044 = vmatprep.subr.bf16.mxu0 0
    %2045 = vmatpush1.bf16.xpose.msra.mxu0 0
    %2046 = vmatprep.subr.bf16.mxu0 0
    %2047 = vmatpush1.bf16.xpose.msra.mxu0 0
    %2048 = vmatprep.subr.bf16.mxu0 0
    %2049 = vmatpush1.bf16.xpose.msra.mxu0 0
    %2050 = vmatprep.mubr.bf16.mxu0 0
    %2051 = vmatmul.mubr.bf16.gmra.mrb[0].mxu0 %v2013
    %v2052 = vpop.f32.mrb[0].mxu0
    %v2053 = vadd.f32 0.0, %v2052
    %v2054 = vpop.f32.mrb[0].mxu0
    %v2055 = vpop.f32.mrb[0].mxu0
    %v2056 = vpop.f32.mrb[0].mxu0
    %2057 = vdwg.mxu0
    %v2058 = vmul.f32 %v2053, 0.17677669
    %v2059 = vsel %vm1720, %v2058, -inf
    %2060 = vmax.xlane.f32.xlu0 %v2059
    %v2061 = vpop.xlane.xlu0 %2060
    %v2062 = vsub.f32 %v2058, %v2061
    %v2063 = vmul.f32 %v2062, 1.442695
    %v2064 = vpow.pop %v2063
    %v2065 = vsel %vm1720, %v2064, 0.0
    %2066 = vadd.xlane.f32.xlu0 %v2065
    %v2067 = vpop.xlane.xlu0 %2066
    %v2068 = vrcp.pop %v2067
    %v2069 = vmul.f32 %v2064, %v2068
    %v2070 = vpack.c.bf16 %v2069, %v2069
    %2071 = vrot.lane.b32.xlu0 %v1671, 32
    %v2072 = vpop.permute.xlu0 %2071
    %v2075 = vsel %vm1720, %v2070, 0
    %2077 = vmatprep.subr.bf16.mxu0 0
    %2078 = vmatpush1.bf16.msra.mxu0 %v2072
    %2079 = vmatprep.subr.bf16.mxu0 0
    %2080 = vmatpush1.bf16.msra.mxu0 0
    %2081 = vmatprep.subr.bf16.mxu0 0
    %2082 = vmatpush1.bf16.msra.mxu0 0
    %2083 = vmatprep.subr.bf16.mxu0 0
    %2084 = vmatpush1.bf16.msra.mxu0 0
    %2085 = vmatprep.subr.bf16.mxu0 0
    %2086 = vmatpush1.bf16.msra.mxu0 0
    %2087 = vmatprep.subr.bf16.mxu0 0
    %2088 = vmatpush1.bf16.msra.mxu0 0
    %2089 = vmatprep.subr.bf16.mxu0 0
    %2090 = vmatpush1.bf16.msra.mxu0 0
    %2091 = vmatprep.subr.bf16.mxu0 0
    %2092 = vmatpush1.bf16.msra.mxu0 0
    %2093 = vmatprep.subr.bf16.mxu0 0
    %2094 = vmatpush1.bf16.msra.mxu0 0
    %2095 = vmatprep.subr.bf16.mxu0 0
    %2096 = vmatpush1.bf16.msra.mxu0 0
    %2097 = vmatprep.subr.bf16.mxu0 0
    %2098 = vmatpush1.bf16.msra.mxu0 0
    %2099 = vmatprep.subr.bf16.mxu0 0
    %2100 = vmatpush1.bf16.msra.mxu0 0
    %2101 = vmatprep.subr.bf16.mxu0 0
    %2102 = vmatpush1.bf16.msra.mxu0 0
    %2103 = vmatprep.subr.bf16.mxu0 0
    %2104 = vmatpush1.bf16.msra.mxu0 0
    %2105 = vmatprep.subr.bf16.mxu0 0
    %2106 = vmatpush1.bf16.msra.mxu0 0
    %2107 = vmatprep.subr.bf16.mxu0 0
    %2108 = vmatpush1.bf16.msra.mxu0 0
    %2109 = vmatprep.mubr.bf16.mxu0 0
    %2110 = vmatmul.mubr.bf16.gmra.mrb[0].mxu0 %v2075
    %v2111 = vpop.f32.mrb[0].mxu0
    %v2112 = vadd.f32 0.0, %v2111
    %v2113 = vpop.f32.mrb[0].mxu0
    %v2114 = vpop.f32.mrb[0].mxu0
    %v2115 = vpop.f32.mrb[0].mxu0
    %2116 = vdwg.mxu0
    %2118 = vrot.lane.b32.xlu0 %v2112, 96
    %v2119 = vpop.permute.xlu0 %2118
    %2121 = vst.msk [vmem:[#allocation2] sm:$0xff] %vm777, %v2119
    %v2122 = vrot.slane %v1668, 4
    %v2124 = vsel %vm316, %v2122, 0
    %v2127 = vsel %vm316, %v1670, 0
    %2129 = vmatprep.subr.bf16.mxu0 0
    %2130 = vmatpush1.bf16.xpose.msra.mxu0 %v2127
    %2131 = vmatprep.subr.bf16.mxu0 0
    %2132 = vmatpush1.bf16.xpose.msra.mxu0 0
    %2133 = vmatprep.subr.bf16.mxu0 0
    %2134 = vmatpush1.bf16.xpose.msra.mxu0 0
    %2135 = vmatprep.subr.bf16.mxu0 0
    %2136 = vmatpush1.bf16.xpose.msra.mxu0 0
    %2137 = vmatprep.subr.bf16.mxu0 0
    %2138 = vmatpush1.bf16.xpose.msra.mxu0 0
    %2139 = vmatprep.subr.bf16.mxu0 0
    %2140 = vmatpush1.bf16.xpose.msra.mxu0 0
    %2141 = vmatprep.subr.bf16.mxu0 0
    %2142 = vmatpush1.bf16.xpose.msra.mxu0 0
    %2143 = vmatprep.subr.bf16.mxu0 0
    %2144 = vmatpush1.bf16.xpose.msra.mxu0 0
    %2145 = vmatprep.subr.bf16.mxu0 0
    %2146 = vmatpush1.bf16.xpose.msra.mxu0 0
    %2147 = vmatprep.subr.bf16.mxu0 0
    %2148 = vmatpush1.bf16.xpose.msra.mxu0 0
    %2149 = vmatprep.subr.bf16.mxu0 0
    %2150 = vmatpush1.bf16.xpose.msra.mxu0 0
    %2151 = vmatprep.subr.bf16.mxu0 0
    %2152 = vmatpush1.bf16.xpose.msra.mxu0 0
    %2153 = vmatprep.subr.bf16.mxu0 0
    %2154 = vmatpush1.bf16.xpose.msra.mxu0 0
    %2155 = vmatprep.subr.bf16.mxu0 0
    %2156 = vmatpush1.bf16.xpose.msra.mxu0 0
    %2157 = vmatprep.subr.bf16.mxu0 0
    %2158 = vmatpush1.bf16.xpose.msra.mxu0 0
    %2159 = vmatprep.subr.bf16.mxu0 0
    %2160 = vmatpush1.bf16.xpose.msra.mxu0 0
    %2161 = vmatprep.mubr.bf16.mxu0 0
    %2162 = vmatmul.mubr.bf16.gmra.mrb[0].mxu0 %v2124
    %v2163 = vpop.f32.mrb[0].mxu0
    %v2164 = vadd.f32 0.0, %v2163
    %v2165 = vpop.f32.mrb[0].mxu0
    %v2166 = vpop.f32.mrb[0].mxu0
    %v2167 = vpop.f32.mrb[0].mxu0
    %2168 = vdwg.mxu0
    %v2169 = vmul.f32 %v2164, 0.17677669
    %v2170 = vsel %vm1720, %v2169, -inf
    %2171 = vmax.xlane.f32.xlu0 %v2170
    %v2172 = vpop.xlane.xlu0 %2171
    %v2173 = vsub.f32 %v2169, %v2172
    %v2174 = vmul.f32 %v2173, 1.442695
    %v2175 = vpow.pop %v2174
    %v2176 = vsel %vm1720, %v2175, 0.0
    %2177 = vadd.xlane.f32.xlu0 %v2176
    %v2178 = vpop.xlane.xlu0 %2177
    %v2179 = vrcp.pop %v2178
    %v2180 = vmul.f32 %v2175, %v2179
    %v2181 = vpack.c.bf16 %v2180, %v2180
    %v2183 = vsel %vm1720, %v2181, 0
    %2185 = vmatprep.subr.bf16.mxu0 0
    %2186 = vmatpush1.bf16.msra.mxu0 %v1672
    %2187 = vmatprep.subr.bf16.mxu0 0
    %2188 = vmatpush1.bf16.msra.mxu0 0
    %2189 = vmatprep.subr.bf16.mxu0 0
    %2190 = vmatpush1.bf16.msra.mxu0 0
    %2191 = vmatprep.subr.bf16.mxu0 0
    %2192 = vmatpush1.bf16.msra.mxu0 0
    %2193 = vmatprep.subr.bf16.mxu0 0
    %2194 = vmatpush1.bf16.msra.mxu0 0
    %2195 = vmatprep.subr.bf16.mxu0 0
    %2196 = vmatpush1.bf16.msra.mxu0 0
    %2197 = vmatprep.subr.bf16.mxu0 0
    %2198 = vmatpush1.bf16.msra.mxu0 0
    %2199 = vmatprep.subr.bf16.mxu0 0
    %2200 = vmatpush1.bf16.msra.mxu0 0
    %2201 = vmatprep.subr.bf16.mxu0 0
    %2202 = vmatpush1.bf16.msra.mxu0 0
    %2203 = vmatprep.subr.bf16.mxu0 0
    %2204 = vmatpush1.bf16.msra.mxu0 0
    %2205 = vmatprep.subr.bf16.mxu0 0
    %2206 = vmatpush1.bf16.msra.mxu0 0
    %2207 = vmatprep.subr.bf16.mxu0 0
    %2208 = vmatpush1.bf16.msra.mxu0 0
    %2209 = vmatprep.subr.bf16.mxu0 0
    %2210 = vmatpush1.bf16.msra.mxu0 0
    %2211 = vmatprep.subr.bf16.mxu0 0
    %2212 = vmatpush1.bf16.msra.mxu0 0
    %2213 = vmatprep.subr.bf16.mxu0 0
    %2214 = vmatpush1.bf16.msra.mxu0 0
    %2215 = vmatprep.subr.bf16.mxu0 0
    %2216 = vmatpush1.bf16.msra.mxu0 0
    %2217 = vmatprep.mubr.bf16.mxu0 0
    %2218 = vmatmul.mubr.bf16.gmra.mrb[0].mxu0 %v2183
    %v2219 = vpop.f32.mrb[0].mxu0
    %v2220 = vadd.f32 0.0, %v2219
    %v2221 = vpop.f32.mrb[0].mxu0
    %v2222 = vpop.f32.mrb[0].mxu0
    %v2223 = vpop.f32.mrb[0].mxu0
    %2224 = vdwg.mxu0
    %2225 = vst.msk [vmem:[#allocation2 + $0x8] sm:$0xff] %vm316, %v2220
    %2226 = vrot.lane.b32.xlu0 %v2122, 96
    %v2227 = vpop.permute.xlu0 %2226
    %2229 = vrot.lane.b32.xlu0 %v1670, 96
    %v2230 = vpop.permute.xlu0 %2229
    %v2232 = vsel %vm316, %v2227, 0
    %v2235 = vsel %vm316, %v2230, 0
    %2237 = vmatprep.subr.bf16.mxu0 0
    %2238 = vmatpush1.bf16.xpose.msra.mxu0 %v2235
    %2239 = vmatprep.subr.bf16.mxu0 0
    %2240 = vmatpush1.bf16.xpose.msra.mxu0 0
    %2241 = vmatprep.subr.bf16.mxu0 0
    %2242 = vmatpush1.bf16.xpose.msra.mxu0 0
    %2243 = vmatprep.subr.bf16.mxu0 0
    %2244 = vmatpush1.bf16.xpose.msra.mxu0 0
    %2245 = vmatprep.subr.bf16.mxu0 0
    %2246 = vmatpush1.bf16.xpose.msra.mxu0 0
    %2247 = vmatprep.subr.bf16.mxu0 0
    %2248 = vmatpush1.bf16.xpose.msra.mxu0 0
    %2249 = vmatprep.subr.bf16.mxu0 0
    %2250 = vmatpush1.bf16.xpose.msra.mxu0 0
    %2251 = vmatprep.subr.bf16.mxu0 0
    %2252 = vmatpush1.bf16.xpose.msra.mxu0 0
    %2253 = vmatprep.subr.bf16.mxu0 0
    %2254 = vmatpush1.bf16.xpose.msra.mxu0 0
    %2255 = vmatprep.subr.bf16.mxu0 0
    %2256 = vmatpush1.bf16.xpose.msra.mxu0 0
    %2257 = vmatprep.subr.bf16.mxu0 0
    %2258 = vmatpush1.bf16.xpose.msra.mxu0 0
    %2259 = vmatprep.subr.bf16.mxu0 0
    %2260 = vmatpush1.bf16.xpose.msra.mxu0 0
    %2261 = vmatprep.subr.bf16.mxu0 0
    %2262 = vmatpush1.bf16.xpose.msra.mxu0 0
    %2263 = vmatprep.subr.bf16.mxu0 0
    %2264 = vmatpush1.bf16.xpose.msra.mxu0 0
    %2265 = vmatprep.subr.bf16.mxu0 0
    %2266 = vmatpush1.bf16.xpose.msra.mxu0 0
    %2267 = vmatprep.subr.bf16.mxu0 0
    %2268 = vmatpush1.bf16.xpose.msra.mxu0 0
    %2269 = vmatprep.mubr.bf16.mxu0 0
    %2270 = vmatmul.mubr.bf16.gmra.mrb[0].mxu0 %v2232
    %v2271 = vpop.f32.mrb[0].mxu0
    %v2272 = vadd.f32 0.0, %v2271
    %v2273 = vpop.f32.mrb[0].mxu0
    %v2274 = vpop.f32.mrb[0].mxu0
    %v2275 = vpop.f32.mrb[0].mxu0
    %2276 = vdwg.mxu0
    %v2277 = vmul.f32 %v2272, 0.17677669
    %v2278 = vsel %vm1720, %v2277, -inf
    %2279 = vmax.xlane.f32.xlu0 %v2278
    %v2280 = vpop.xlane.xlu0 %2279
    %v2281 = vsub.f32 %v2277, %v2280
    %v2282 = vmul.f32 %v2281, 1.442695
    %v2283 = vpow.pop %v2282
    %v2284 = vsel %vm1720, %v2283, 0.0
    %2285 = vadd.xlane.f32.xlu0 %v2284
    %v2286 = vpop.xlane.xlu0 %2285
    %v2287 = vrcp.pop %v2286
    %v2288 = vmul.f32 %v2283, %v2287
    %v2289 = vpack.c.bf16 %v2288, %v2288
    %2291 = vrot.lane.b32.xlu0 %v1672, 96
    %v2292 = vpop.permute.xlu0 %2291
    %v2295 = vsel %vm1720, %v2289, 0
    %2297 = vmatprep.subr.bf16.mxu0 0
    %2298 = vmatpush1.bf16.msra.mxu0 %v2292
    %2299 = vmatprep.subr.bf16.mxu0 0
    %2300 = vmatpush1.bf16.msra.mxu0 0
    %2301 = vmatprep.subr.bf16.mxu0 0
    %2302 = vmatpush1.bf16.msra.mxu0 0
    %2303 = vmatprep.subr.bf16.mxu0 0
    %2304 = vmatpush1.bf16.msra.mxu0 0
    %2305 = vmatprep.subr.bf16.mxu0 0
    %2306 = vmatpush1.bf16.msra.mxu0 0
    %2307 = vmatprep.subr.bf16.mxu0 0
    %2308 = vmatpush1.bf16.msra.mxu0 0
    %2309 = vmatprep.subr.bf16.mxu0 0
    %2310 = vmatpush1.bf16.msra.mxu0 0
    %2311 = vmatprep.subr.bf16.mxu0 0
    %2312 = vmatpush1.bf16.msra.mxu0 0
    %2313 = vmatprep.subr.bf16.mxu0 0
    %2314 = vmatpush1.bf16.msra.mxu0 0
    %2315 = vmatprep.subr.bf16.mxu0 0
    %2316 = vmatpush1.bf16.msra.mxu0 0
    %2317 = vmatprep.subr.bf16.mxu0 0
    %2318 = vmatpush1.bf16.msra.mxu0 0
    %2319 = vmatprep.subr.bf16.mxu0 0
    %2320 = vmatpush1.bf16.msra.mxu0 0
    %2321 = vmatprep.subr.bf16.mxu0 0
    %2322 = vmatpush1.bf16.msra.mxu0 0
    %2323 = vmatprep.subr.bf16.mxu0 0
    %2324 = vmatpush1.bf16.msra.mxu0 0
    %2325 = vmatprep.subr.bf16.mxu0 0
    %2326 = vmatpush1.bf16.msra.mxu0 0
    %2327 = vmatprep.subr.bf16.mxu0 0
    %2328 = vmatpush1.bf16.msra.mxu0 0
    %2329 = vmatprep.mubr.bf16.mxu0 0
    %2330 = vmatmul.mubr.bf16.gmra.mrb[0].mxu0 %v2295
    %v2331 = vpop.f32.mrb[0].mxu0
    %v2332 = vadd.f32 0.0, %v2331
    %v2333 = vpop.f32.mrb[0].mxu0
    %v2334 = vpop.f32.mrb[0].mxu0
    %v2335 = vpop.f32.mrb[0].mxu0
    %2336 = vdwg.mxu0
    %2338 = vrot.lane.b32.xlu0 %v2332, 32
    %v2339 = vpop.permute.xlu0 %2338
    %2341 = vst.msk [vmem:[#allocation2 + $0x8] sm:$0xff] %vm543, %v2339
    %2342 = vrot.lane.b32.xlu0 %v2122, 64
    %v2343 = vpop.permute.xlu0 %2342
    %2344 = vrot.lane.b32.xlu0 %v1670, 64
    %v2345 = vpop.permute.xlu0 %2344
    %v2347 = vsel %vm316, %v2343, 0
    %v2350 = vsel %vm316, %v2345, 0
    %2352 = vmatprep.subr.bf16.mxu0 0
    %2353 = vmatpush1.bf16.xpose.msra.mxu0 %v2350
    %2354 = vmatprep.subr.bf16.mxu0 0
    %2355 = vmatpush1.bf16.xpose.msra.mxu0 0
    %2356 = vmatprep.subr.bf16.mxu0 0
    %2357 = vmatpush1.bf16.xpose.msra.mxu0 0
    %2358 = vmatprep.subr.bf16.mxu0 0
    %2359 = vmatpush1.bf16.xpose.msra.mxu0 0
    %2360 = vmatprep.subr.bf16.mxu0 0
    %2361 = vmatpush1.bf16.xpose.msra.mxu0 0
    %2362 = vmatprep.subr.bf16.mxu0 0
    %2363 = vmatpush1.bf16.xpose.msra.mxu0 0
    %2364 = vmatprep.subr.bf16.mxu0 0
    %2365 = vmatpush1.bf16.xpose.msra.mxu0 0
    %2366 = vmatprep.subr.bf16.mxu0 0
    %2367 = vmatpush1.bf16.xpose.msra.mxu0 0
    %2368 = vmatprep.subr.bf16.mxu0 0
    %2369 = vmatpush1.bf16.xpose.msra.mxu0 0
    %2370 = vmatprep.subr.bf16.mxu0 0
    %2371 = vmatpush1.bf16.xpose.msra.mxu0 0
    %2372 = vmatprep.subr.bf16.mxu0 0
    %2373 = vmatpush1.bf16.xpose.msra.mxu0 0
    %2374 = vmatprep.subr.bf16.mxu0 0
    %2375 = vmatpush1.bf16.xpose.msra.mxu0 0
    %2376 = vmatprep.subr.bf16.mxu0 0
    %2377 = vmatpush1.bf16.xpose.msra.mxu0 0
    %2378 = vmatprep.subr.bf16.mxu0 0
    %2379 = vmatpush1.bf16.xpose.msra.mxu0 0
    %2380 = vmatprep.subr.bf16.mxu0 0
    %2381 = vmatpush1.bf16.xpose.msra.mxu0 0
    %2382 = vmatprep.subr.bf16.mxu0 0
    %2383 = vmatpush1.bf16.xpose.msra.mxu0 0
    %2384 = vmatprep.mubr.bf16.mxu0 0
    %2385 = vmatmul.mubr.bf16.gmra.mrb[0].mxu0 %v2347
    %v2386 = vpop.f32.mrb[0].mxu0
    %v2387 = vadd.f32 0.0, %v2386
    %v2388 = vpop.f32.mrb[0].mxu0
    %v2389 = vpop.f32.mrb[0].mxu0
    %v2390 = vpop.f32.mrb[0].mxu0
    %2391 = vdwg.mxu0
    %v2392 = vmul.f32 %v2387, 0.17677669
    %v2393 = vsel %vm1720, %v2392, -inf
    %2394 = vmax.xlane.f32.xlu0 %v2393
    %v2395 = vpop.xlane.xlu0 %2394
    %v2396 = vsub.f32 %v2392, %v2395
    %v2397 = vmul.f32 %v2396, 1.442695
    %v2398 = vpow.pop %v2397
    %v2399 = vsel %vm1720, %v2398, 0.0
    %2400 = vadd.xlane.f32.xlu0 %v2399
    %v2401 = vpop.xlane.xlu0 %2400
    %v2402 = vrcp.pop %v2401
    %v2403 = vmul.f32 %v2398, %v2402
    %v2404 = vpack.c.bf16 %v2403, %v2403
    %2405 = vrot.lane.b32.xlu0 %v1672, 64
    %v2406 = vpop.permute.xlu0 %2405
    %v2409 = vsel %vm1720, %v2404, 0
    %2411 = vmatprep.subr.bf16.mxu0 0
    %2412 = vmatpush1.bf16.msra.mxu0 %v2406
    %2413 = vmatprep.subr.bf16.mxu0 0
    %2414 = vmatpush1.bf16.msra.mxu0 0
    %2415 = vmatprep.subr.bf16.mxu0 0
    %2416 = vmatpush1.bf16.msra.mxu0 0
    %2417 = vmatprep.subr.bf16.mxu0 0
    %2418 = vmatpush1.bf16.msra.mxu0 0
    %2419 = vmatprep.subr.bf16.mxu0 0
    %2420 = vmatpush1.bf16.msra.mxu0 0
    %2421 = vmatprep.subr.bf16.mxu0 0
    %2422 = vmatpush1.bf16.msra.mxu0 0
    %2423 = vmatprep.subr.bf16.mxu0 0
    %2424 = vmatpush1.bf16.msra.mxu0 0
    %2425 = vmatprep.subr.bf16.mxu0 0
    %2426 = vmatpush1.bf16.msra.mxu0 0
    %2427 = vmatprep.subr.bf16.mxu0 0
    %2428 = vmatpush1.bf16.msra.mxu0 0
    %2429 = vmatprep.subr.bf16.mxu0 0
    %2430 = vmatpush1.bf16.msra.mxu0 0
    %2431 = vmatprep.subr.bf16.mxu0 0
    %2432 = vmatpush1.bf16.msra.mxu0 0
    %2433 = vmatprep.subr.bf16.mxu0 0
    %2434 = vmatpush1.bf16.msra.mxu0 0
    %2435 = vmatprep.subr.bf16.mxu0 0
    %2436 = vmatpush1.bf16.msra.mxu0 0
    %2437 = vmatprep.subr.bf16.mxu0 0
    %2438 = vmatpush1.bf16.msra.mxu0 0
    %2439 = vmatprep.subr.bf16.mxu0 0
    %2440 = vmatpush1.bf16.msra.mxu0 0
    %2441 = vmatprep.subr.bf16.mxu0 0
    %2442 = vmatpush1.bf16.msra.mxu0 0
    %2443 = vmatprep.mubr.bf16.mxu0 0
    %2444 = vmatmul.mubr.bf16.gmra.mrb[0].mxu0 %v2409
    %v2445 = vpop.f32.mrb[0].mxu0
    %v2446 = vadd.f32 0.0, %v2445
    %v2447 = vpop.f32.mrb[0].mxu0
    %v2448 = vpop.f32.mrb[0].mxu0
    %v2449 = vpop.f32.mrb[0].mxu0
    %2450 = vdwg.mxu0
    %2452 = vrot.lane.b32.xlu0 %v2446, 64
    %v2453 = vpop.permute.xlu0 %2452
    %2455 = vst.msk [vmem:[#allocation2 + $0x8] sm:$0xff] %vm660, %v2453
    %2456 = vrot.lane.b32.xlu0 %v2122, 32
    %v2457 = vpop.permute.xlu0 %2456
    %2458 = vrot.lane.b32.xlu0 %v1670, 32
    %v2459 = vpop.permute.xlu0 %2458
    %v2461 = vsel %vm316, %v2457, 0
    %v2464 = vsel %vm316, %v2459, 0
    %2466 = vmatprep.subr.bf16.mxu0 0
    %2467 = vmatpush1.bf16.xpose.msra.mxu0 %v2464
    %2468 = vmatprep.subr.bf16.mxu0 0
    %2469 = vmatpush1.bf16.xpose.msra.mxu0 0
    %2470 = vmatprep.subr.bf16.mxu0 0
    %2471 = vmatpush1.bf16.xpose.msra.mxu0 0
    %2472 = vmatprep.subr.bf16.mxu0 0
    %2473 = vmatpush1.bf16.xpose.msra.mxu0 0
    %2474 = vmatprep.subr.bf16.mxu0 0
    %2475 = vmatpush1.bf16.xpose.msra.mxu0 0
    %2476 = vmatprep.subr.bf16.mxu0 0
    %2477 = vmatpush1.bf16.xpose.msra.mxu0 0
    %2478 = vmatprep.subr.bf16.mxu0 0
    %2479 = vmatpush1.bf16.xpose.msra.mxu0 0
    %2480 = vmatprep.subr.bf16.mxu0 0
    %2481 = vmatpush1.bf16.xpose.msra.mxu0 0
    %2482 = vmatprep.subr.bf16.mxu0 0
    %2483 = vmatpush1.bf16.xpose.msra.mxu0 0
    %2484 = vmatprep.subr.bf16.mxu0 0
    %2485 = vmatpush1.bf16.xpose.msra.mxu0 0
    %2486 = vmatprep.subr.bf16.mxu0 0
    %2487 = vmatpush1.bf16.xpose.msra.mxu0 0
    %2488 = vmatprep.subr.bf16.mxu0 0
    %2489 = vmatpush1.bf16.xpose.msra.mxu0 0
    %2490 = vmatprep.subr.bf16.mxu0 0
    %2491 = vmatpush1.bf16.xpose.msra.mxu0 0
    %2492 = vmatprep.subr.bf16.mxu0 0
    %2493 = vmatpush1.bf16.xpose.msra.mxu0 0
    %2494 = vmatprep.subr.bf16.mxu0 0
    %2495 = vmatpush1.bf16.xpose.msra.mxu0 0
    %2496 = vmatprep.subr.bf16.mxu0 0
    %2497 = vmatpush1.bf16.xpose.msra.mxu0 0
    %2498 = vmatprep.mubr.bf16.mxu0 0
    %2499 = vmatmul.mubr.bf16.gmra.mrb[0].mxu0 %v2461
    %v2500 = vpop.f32.mrb[0].mxu0
    %v2501 = vadd.f32 0.0, %v2500
    %v2502 = vpop.f32.mrb[0].mxu0
    %v2503 = vpop.f32.mrb[0].mxu0
    %v2504 = vpop.f32.mrb[0].mxu0
    %2505 = vdwg.mxu0
    %v2506 = vmul.f32 %v2501, 0.17677669
    %v2507 = vsel %vm1720, %v2506, -inf
    %2508 = vmax.xlane.f32.xlu0 %v2507
    %v2509 = vpop.xlane.xlu0 %2508
    %v2510 = vsub.f32 %v2506, %v2509
    %v2511 = vmul.f32 %v2510, 1.442695
    %v2512 = vpow.pop %v2511
    %v2513 = vsel %vm1720, %v2512, 0.0
    %2514 = vadd.xlane.f32.xlu0 %v2513
    %v2515 = vpop.xlane.xlu0 %2514
    %v2516 = vrcp.pop %v2515
    %v2517 = vmul.f32 %v2512, %v2516
    %v2518 = vpack.c.bf16 %v2517, %v2517
    %2519 = vrot.lane.b32.xlu0 %v1672, 32
    %v2520 = vpop.permute.xlu0 %2519
    %v2523 = vsel %vm1720, %v2518, 0
    %2525 = vmatprep.subr.bf16.mxu0 0
    %2526 = vmatpush1.bf16.msra.mxu0 %v2520
    %2527 = vmatprep.subr.bf16.mxu0 0
    %2528 = vmatpush1.bf16.msra.mxu0 0
    %2529 = vmatprep.subr.bf16.mxu0 0
    %2530 = vmatpush1.bf16.msra.mxu0 0
    %2531 = vmatprep.subr.bf16.mxu0 0
    %2532 = vmatpush1.bf16.msra.mxu0 0
    %2533 = vmatprep.subr.bf16.mxu0 0
    %2534 = vmatpush1.bf16.msra.mxu0 0
    %2535 = vmatprep.subr.bf16.mxu0 0
    %2536 = vmatpush1.bf16.msra.mxu0 0
    %2537 = vmatprep.subr.bf16.mxu0 0
    %2538 = vmatpush1.bf16.msra.mxu0 0
    %2539 = vmatprep.subr.bf16.mxu0 0
    %2540 = vmatpush1.bf16.msra.mxu0 0
    %2541 = vmatprep.subr.bf16.mxu0 0
    %2542 = vmatpush1.bf16.msra.mxu0 0
    %2543 = vmatprep.subr.bf16.mxu0 0
    %2544 = vmatpush1.bf16.msra.mxu0 0
    %2545 = vmatprep.subr.bf16.mxu0 0
    %2546 = vmatpush1.bf16.msra.mxu0 0
    %2547 = vmatprep.subr.bf16.mxu0 0
    %2548 = vmatpush1.bf16.msra.mxu0 0
    %2549 = vmatprep.subr.bf16.mxu0 0
    %2550 = vmatpush1.bf16.msra.mxu0 0
    %2551 = vmatprep.subr.bf16.mxu0 0
    %2552 = vmatpush1.bf16.msra.mxu0 0
    %2553 = vmatprep.subr.bf16.mxu0 0
    %2554 = vmatpush1.bf16.msra.mxu0 0
    %2555 = vmatprep.subr.bf16.mxu0 0
    %2556 = vmatpush1.bf16.msra.mxu0 0
    %2557 = vmatprep.mubr.bf16.mxu0 0
    %2558 = vmatmul.mubr.bf16.gmra.mrb[0].mxu0 %v2523
    %v2559 = vpop.f32.mrb[0].mxu0
    %v2560 = vadd.f32 0.0, %v2559
    %v2561 = vpop.f32.mrb[0].mxu0
    %v2562 = vpop.f32.mrb[0].mxu0
    %v2563 = vpop.f32.mrb[0].mxu0
    %2564 = vdwg.mxu0
    %2566 = vrot.lane.b32.xlu0 %v2560, 96
    %v2567 = vpop.permute.xlu0 %2566
    %2569 = vst.msk [vmem:[#allocation2 + $0x8] sm:$0xff] %vm777, %v2567
    %v2570 = vld [vmem:[#allocation2] sm:$0xff]
    %v2571 = vld [vmem:[#allocation2 + $0x8] sm:$0xff]
    %v2572 = vpack.c.bf16 %v2571, %v2570
    %v2573 = vld [vmem:[%s6] sm:$0xf]
    %v2574 = vld [vmem:[%s6 + $0x4] sm:$0xf]
    %v2575 = vld [vmem:[%s6 + $0x8] sm:$0xf]
    %v2576 = vld [vmem:[%s6 + $0xc] sm:$0xf]
    %v2577 = vld [vmem:[%s6 + $0x10] sm:$0xf]
    %v2578 = vld [vmem:[%s6 + $0x14] sm:$0xf]
    %v2579 = vld [vmem:[%s6 + $0x18] sm:$0xf]
    %v2580 = vld [vmem:[%s6 + $0x1c] sm:$0xf]
    %v2581 = vld [vmem:[%s6 + $0x20] sm:$0xf]
    %v2582 = vld [vmem:[%s6 + $0x24] sm:$0xf]
    %v2583 = vld [vmem:[%s6 + $0x28] sm:$0xf]
    %v2584 = vld [vmem:[%s6 + $0x2c] sm:$0xf]
    %v2585 = vld [vmem:[%s6 + $0x30] sm:$0xf]
    %v2586 = vld [vmem:[%s6 + $0x34] sm:$0xf]
    %v2587 = vld [vmem:[%s6 + $0x38] sm:$0xf]
    %v2588 = vld [vmem:[%s6 + $0x3c] sm:$0xf]
    %v2589 = vlaneseq
    %v2590 = vshrl.u32 %v2589, 7
    %v2591 = vsub.s32 0, %v2590
    %v2592 = vrot.slane %v1667, %v2591
    %v2609 = vunpack.c.l.b16 %v2573
    %v2610 = vunpack.c.l.b16 %v2574
    %v2611 = vunpack.c.l.b16 %v2575
    %v2612 = vunpack.c.l.b16 %v2576
    %v2613 = vunpack.c.l.b16 %v2577
    %v2614 = vunpack.c.l.b16 %v2578
    %v2615 = vunpack.c.l.b16 %v2579
    %v2616 = vunpack.c.l.b16 %v2580
    %v2617 = vunpack.c.l.b16 %v2581
    %v2618 = vunpack.c.l.b16 %v2582
    %v2619 = vunpack.c.l.b16 %v2583
    %v2620 = vunpack.c.l.b16 %v2584
    %v2621 = vunpack.c.l.b16 %v2585
    %v2622 = vunpack.c.l.b16 %v2586
    %v2623 = vunpack.c.l.b16 %v2587
    %v2624 = vunpack.c.l.b16 %v2588
    %v2625 = vpack.c.b16 %v2610, %v2609
    %v2626 = vpack.c.b16 %v2612, %v2611
    %v2627 = vpack.c.b16 %v2614, %v2613
    %v2628 = vpack.c.b16 %v2616, %v2615
    %v2629 = vpack.c.b16 %v2618, %v2617
    %v2630 = vpack.c.b16 %v2620, %v2619
    %v2631 = vpack.c.b16 %v2622, %v2621
    %v2632 = vpack.c.b16 %v2624, %v2623
    %2641 = vmatprep.subr.bf16.mxu0 0
    %2642 = vmatpush1.bf16.msra.mxu0 %v2625
    %2643 = vmatprep.subr.bf16.mxu0 0
    %2644 = vmatpush1.bf16.msra.mxu0 %v2626
    %2645 = vmatprep.subr.bf16.mxu0 0
    %2646 = vmatpush1.bf16.msra.mxu0 %v2627
    %2647 = vmatprep.subr.bf16.mxu0 0
    %2648 = vmatpush1.bf16.msra.mxu0 %v2628
    %2649 = vmatprep.subr.bf16.mxu0 0
    %2650 = vmatpush1.bf16.msra.mxu0 %v2629
    %2651 = vmatprep.subr.bf16.mxu0 0
    %2652 = vmatpush1.bf16.msra.mxu0 %v2630
    %2653 = vmatprep.subr.bf16.mxu0 0
    %2654 = vmatpush1.bf16.msra.mxu0 %v2631
    %2655 = vmatprep.subr.bf16.mxu0 0
    %2656 = vmatpush1.bf16.msra.mxu0 %v2632
    %2657 = vmatprep.subr.bf16.mxu0 0
    %2658 = vmatpush1.bf16.msra.mxu0 0
    %2659 = vmatprep.subr.bf16.mxu0 0
    %2660 = vmatpush1.bf16.msra.mxu0 0
    %2661 = vmatprep.subr.bf16.mxu0 0
    %2662 = vmatpush1.bf16.msra.mxu0 0
    %2663 = vmatprep.subr.bf16.mxu0 0
    %2664 = vmatpush1.bf16.msra.mxu0 0
    %2665 = vmatprep.subr.bf16.mxu0 0
    %2666 = vmatpush1.bf16.msra.mxu0 0
    %2667 = vmatprep.subr.bf16.mxu0 0
    %2668 = vmatpush1.bf16.msra.mxu0 0
    %2669 = vmatprep.subr.bf16.mxu0 0
    %2670 = vmatpush1.bf16.msra.mxu0 0
    %2671 = vmatprep.subr.bf16.mxu0 0
    %2672 = vmatpush1.bf16.msra.mxu0 0
    %2673 = vmatprep.mubr.bf16.mxu0 0
    %2674 = vmatmul.mubr.bf16.gmra.mrb[0].mxu0 %v2572
    %v2675 = vpop.f32.mrb[0].mxu0
    %v2676 = vadd.f32 %v2592, %v2675
    %v2677 = vpop.f32.mrb[0].mxu0
    %v2678 = vpop.f32.mrb[0].mxu0
    %v2679 = vadd.f32 %v2592, %v2678
    %v2680 = vpop.f32.mrb[0].mxu0
    %2681 = vdwg.mxu0
    %v2682 = vld [vmem:[%s9 + $0xa] sm:$0x1]
    %v2683 = vld [vmem:[%s9 + $0xb] sm:$0x1]
    %v2684 = vadd.f32 %v1385, %v2676
    %v2685 = vadd.f32 %v1386, %v2679
    %2686 = vadd.xlane.f32.xlu0 %v2684
    %v2687 = vpop.xlane.xlu0 %2686
    %2688 = vadd.xlane.f32.xlu0 %v2685
    %v2689 = vpop.xlane.xlu0 %2688
    %v2690 = vmul.f32 %v2687, %v1356
    %v2691 = vmul.f32 %v2689, %v1356
    %v2692 = vsub.f32 %v2684, %v2690
    %v2693 = vsub.f32 %v2685, %v2691
    %v2694 = vmul.f32 %v2692, %v2692
    %v2695 = vmul.f32 %v2693, %v2693
    %2696 = vadd.xlane.f32.xlu0 %v2694
    %v2697 = vpop.xlane.xlu0 %2696
    %2698 = vadd.xlane.f32.xlu0 %v2695
    %v2699 = vpop.xlane.xlu0 %2698
    %v2700 = vmul.f32 %v2697, %v1356
    %v2701 = vmul.f32 %v2699, %v1356
    %v2702 = vadd.f32 %v2700, 1e-05
    %v2703 = vadd.f32 %v2701, 1e-05
    %v2704 = vrsqrt.pop %v2702
    %v2705 = vrsqrt.pop %v2703
    %v2706 = vmul.f32 %v2692, %v2704
    %v2707 = vmul.f32 %v2693, %v2705
    %v2708 = vlaneseq
    %v2709 = vshrl.u32 %v2708, 7
    %v2710 = vsub.s32 0, %v2709
    %v2711 = vrot.slane %v2682, %v2710
    %v2712 = vmul.f32 %v2706, %v2711
    %v2713 = vmul.f32 %v2707, %v2711
    %v2714 = vlaneseq
    %v2715 = vshrl.u32 %v2714, 7
    %v2716 = vsub.s32 0, %v2715
    %v2717 = vrot.slane %v2683, %v2716
    %v2718 = vadd.f32 %v2712, %v2717
    %v2719 = vadd.f32 %v2713, %v2717
    %v2720 = vpack.c.bf16 %v2719, %v2718
    %v2721 = vld [vmem:[%s7] sm:$0xff]
    %v2722 = vld [vmem:[%s7 + $0x8] sm:$0xff]
    %v2723 = vld [vmem:[%s7 + $0x10] sm:$0xff]
    %v2724 = vld [vmem:[%s7 + $0x18] sm:$0xff]
    %v2725 = vld [vmem:[%s7 + $0x20] sm:$0xff]
    %v2726 = vld [vmem:[%s7 + $0x28] sm:$0xff]
    %v2727 = vld [vmem:[%s7 + $0x30] sm:$0xff]
    %v2728 = vld [vmem:[%s7 + $0x38] sm:$0xff]
    %v2729 = vld [vmem:[%s7 + $0x40] sm:$0xff]
    %v2730 = vld [vmem:[%s7 + $0x48] sm:$0xff]
    %v2731 = vld [vmem:[%s7 + $0x50] sm:$0xff]
    %v2732 = vld [vmem:[%s7 + $0x58] sm:$0xff]
    %v2733 = vld [vmem:[%s7 + $0x60] sm:$0xff]
    %v2734 = vld [vmem:[%s7 + $0x68] sm:$0xff]
    %v2735 = vld [vmem:[%s7 + $0x70] sm:$0xff]
    %v2736 = vld [vmem:[%s7 + $0x78] sm:$0xff]
    %v2737 = vld [vmem:[%s10] sm:$0x3]
    %v2739 = vlaneseq
    %v2740 = vshrl.u32 %v2739, 7
    %v2741 = vsub.s32 0, %v2740
    %v2742 = vrot.slane %v2737, %v2741
    %v2743 = vlaneseq
    %v2744 = vshrl.u32 %v2743, 7
    %v2745 = vsub.s32 1, %v2744
    %v2746 = vrot.slane %v2737, %v2745
    %v2765 = vunpack.c.l.b16 %v2721
    %v2766 = vunpack.c.h.b16 %v2721
    %v2767 = vunpack.c.l.b16 %v2722
    %v2768 = vunpack.c.h.b16 %v2722
    %v2769 = vunpack.c.l.b16 %v2723
    %v2770 = vunpack.c.h.b16 %v2723
    %v2771 = vunpack.c.l.b16 %v2724
    %v2772 = vunpack.c.h.b16 %v2724
    %v2773 = vunpack.c.l.b16 %v2725
    %v2774 = vunpack.c.h.b16 %v2725
    %v2775 = vunpack.c.l.b16 %v2726
    %v2776 = vunpack.c.h.b16 %v2726
    %v2777 = vunpack.c.l.b16 %v2727
    %v2778 = vunpack.c.h.b16 %v2727
    %v2779 = vunpack.c.l.b16 %v2728
    %v2780 = vunpack.c.h.b16 %v2728
    %v2781 = vunpack.c.l.b16 %v2729
    %v2782 = vunpack.c.h.b16 %v2729
    %v2783 = vunpack.c.l.b16 %v2730
    %v2784 = vunpack.c.h.b16 %v2730
    %v2785 = vunpack.c.l.b16 %v2731
    %v2786 = vunpack.c.h.b16 %v2731
    %v2787 = vunpack.c.l.b16 %v2732
    %v2788 = vunpack.c.h.b16 %v2732
    %v2789 = vunpack.c.l.b16 %v2733
    %v2790 = vunpack.c.h.b16 %v2733
    %v2791 = vunpack.c.l.b16 %v2734
    %v2792 = vunpack.c.h.b16 %v2734
    %v2793 = vunpack.c.l.b16 %v2735
    %v2794 = vunpack.c.h.b16 %v2735
    %v2795 = vunpack.c.l.b16 %v2736
    %v2796 = vunpack.c.h.b16 %v2736
    %v2797 = vpack.c.b16 %v2767, %v2765
    %v2798 = vpack.c.b16 %v2768, %v2766
    %v2799 = vpack.c.b16 %v2771, %v2769
    %v2800 = vpack.c.b16 %v2772, %v2770
    %v2801 = vpack.c.b16 %v2775, %v2773
    %v2802 = vpack.c.b16 %v2776, %v2774
    %v2803 = vpack.c.b16 %v2779, %v2777
    %v2804 = vpack.c.b16 %v2780, %v2778
    %v2805 = vpack.c.b16 %v2783, %v2781
    %v2806 = vpack.c.b16 %v2784, %v2782
    %v2807 = vpack.c.b16 %v2787, %v2785
    %v2808 = vpack.c.b16 %v2788, %v2786
    %v2809 = vpack.c.b16 %v2791, %v2789
    %v2810 = vpack.c.b16 %v2792, %v2790
    %v2811 = vpack.c.b16 %v2795, %v2793
    %v2812 = vpack.c.b16 %v2796, %v2794
    %2829 = vmatprep.subr.bf16.mxu0 %v2798
    %2830 = vmatpush1.bf16.msra.mxu0 %v2797
    %2831 = vmatprep.subr.bf16.mxu0 %v2800
    %2832 = vmatpush1.bf16.msra.mxu0 %v2799
    %2833 = vmatprep.subr.bf16.mxu0 %v2802
    %2834 = vmatpush1.bf16.msra.mxu0 %v2801
    %2835 = vmatprep.subr.bf16.mxu0 %v2804
    %2836 = vmatpush1.bf16.msra.mxu0 %v2803
    %2837 = vmatprep.subr.bf16.mxu0 %v2806
    %2838 = vmatpush1.bf16.msra.mxu0 %v2805
    %2839 = vmatprep.subr.bf16.mxu0 %v2808
    %2840 = vmatpush1.bf16.msra.mxu0 %v2807
    %2841 = vmatprep.subr.bf16.mxu0 %v2810
    %2842 = vmatpush1.bf16.msra.mxu0 %v2809
    %2843 = vmatprep.subr.bf16.mxu0 %v2812
    %2844 = vmatpush1.bf16.msra.mxu0 %v2811
    %2845 = vmatprep.subr.bf16.mxu0 0
    %2846 = vmatpush1.bf16.msra.mxu0 0
    %2847 = vmatprep.subr.bf16.mxu0 0
    %2848 = vmatpush1.bf16.msra.mxu0 0
    %2849 = vmatprep.subr.bf16.mxu0 0
    %2850 = vmatpush1.bf16.msra.mxu0 0
    %2851 = vmatprep.subr.bf16.mxu0 0
    %2852 = vmatpush1.bf16.msra.mxu0 0
    %2853 = vmatprep.subr.bf16.mxu0 0
    %2854 = vmatpush1.bf16.msra.mxu0 0
    %2855 = vmatprep.subr.bf16.mxu0 0
    %2856 = vmatpush1.bf16.msra.mxu0 0
    %2857 = vmatprep.subr.bf16.mxu0 0
    %2858 = vmatpush1.bf16.msra.mxu0 0
    %2859 = vmatprep.subr.bf16.mxu0 0
    %2860 = vmatpush1.bf16.msra.mxu0 0
    %2861 = vmatprep.mubr.bf16.mxu0 0
    %2862 = vmatmul.mubr.bf16.gmra.mrb[0].mxu0 %v2720
    %v2863 = vpop.f32.mrb[0].mxu0
    %v2864 = vadd.f32 %v2742, %v2863
    %v2865 = vpop.f32.mrb[0].mxu0
    %v2866 = vadd.f32 %v2746, %v2865
    %v2867 = vpop.f32.mrb[0].mxu0
    %v2868 = vadd.f32 %v2742, %v2867
    %v2869 = vpop.f32.mrb[0].mxu0
    %v2870 = vadd.f32 %v2746, %v2869
    %2871 = vdwg.mxu0
    %v2872 = vmax.f32 %v2864, 0.0
    %v2873 = vmax.f32 %v2866, 0.0
    %v2874 = vmax.f32 %v2868, 0.0
    %v2875 = vmax.f32 %v2870, 0.0
    %v2876 = vpack.c.bf16 %v2874, %v2872
    %v2877 = vpack.c.bf16 %v2875, %v2873
    %v2878 = vld [vmem:[%s8] sm:$0xf]
    %v2879 = vld [vmem:[%s8 + $0x4] sm:$0xf]
    %v2880 = vld [vmem:[%s8 + $0x8] sm:$0xf]
    %v2881 = vld [vmem:[%s8 + $0xc] sm:$0xf]
    %v2882 = vld [vmem:[%s8 + $0x10] sm:$0xf]
    %v2883 = vld [vmem:[%s8 + $0x14] sm:$0xf]
    %v2884 = vld [vmem:[%s8 + $0x18] sm:$0xf]
    %v2885 = vld [vmem:[%s8 + $0x1c] sm:$0xf]
    %v2886 = vld [vmem:[%s8 + $0x20] sm:$0xf]
    %v2887 = vld [vmem:[%s8 + $0x24] sm:$0xf]
    %v2888 = vld [vmem:[%s8 + $0x28] sm:$0xf]
    %v2889 = vld [vmem:[%s8 + $0x2c] sm:$0xf]
    %v2890 = vld [vmem:[%s8 + $0x30] sm:$0xf]
    %v2891 = vld [vmem:[%s8 + $0x34] sm:$0xf]
    %v2892 = vld [vmem:[%s8 + $0x38] sm:$0xf]
    %v2893 = vld [vmem:[%s8 + $0x3c] sm:$0xf]
    %v2894 = vld [vmem:[%s8 + $0x40] sm:$0xf]
    %v2895 = vld [vmem:[%s8 + $0x44] sm:$0xf]
    %v2896 = vld [vmem:[%s8 + $0x48] sm:$0xf]
    %v2897 = vld [vmem:[%s8 + $0x4c] sm:$0xf]
    %v2898 = vld [vmem:[%s8 + $0x50] sm:$0xf]
    %v2899 = vld [vmem:[%s8 + $0x54] sm:$0xf]
    %v2900 = vld [vmem:[%s8 + $0x58] sm:$0xf]
    %v2901 = vld [vmem:[%s8 + $0x5c] sm:$0xf]
    %v2902 = vld [vmem:[%s8 + $0x60] sm:$0xf]
    %v2903 = vld [vmem:[%s8 + $0x64] sm:$0xf]
    %v2904 = vld [vmem:[%s8 + $0x68] sm:$0xf]
    %v2905 = vld [vmem:[%s8 + $0x6c] sm:$0xf]
    %v2906 = vld [vmem:[%s8 + $0x70] sm:$0xf]
    %v2907 = vld [vmem:[%s8 + $0x74] sm:$0xf]
    %v2908 = vld [vmem:[%s8 + $0x78] sm:$0xf]
    %v2909 = vld [vmem:[%s8 + $0x7c] sm:$0xf]
    %v2910 = vld [vmem:[%s9 + $0xc] sm:$0x1]
    %v2911 = vlaneseq
    %v2912 = vshrl.u32 %v2911, 7
    %v2913 = vsub.s32 0, %v2912
    %v2914 = vrot.slane %v2910, %v2913
    %v2947 = vunpack.c.l.b16 %v2878
    %v2948 = vunpack.c.l.b16 %v2879
    %v2949 = vunpack.c.l.b16 %v2880
    %v2950 = vunpack.c.l.b16 %v2881
    %v2951 = vunpack.c.l.b16 %v2882
    %v2952 = vunpack.c.l.b16 %v2883
    %v2953 = vunpack.c.l.b16 %v2884
    %v2954 = vunpack.c.l.b16 %v2885
    %v2955 = vunpack.c.l.b16 %v2886
    %v2956 = vunpack.c.l.b16 %v2887
    %v2957 = vunpack.c.l.b16 %v2888
    %v2958 = vunpack.c.l.b16 %v2889
    %v2959 = vunpack.c.l.b16 %v2890
    %v2960 = vunpack.c.l.b16 %v2891
    %v2961 = vunpack.c.l.b16 %v2892
    %v2962 = vunpack.c.l.b16 %v2893
    %v2963 = vunpack.c.l.b16 %v2894
    %v2964 = vunpack.c.l.b16 %v2895
    %v2965 = vunpack.c.l.b16 %v2896
    %v2966 = vunpack.c.l.b16 %v2897
    %v2967 = vunpack.c.l.b16 %v2898
    %v2968 = vunpack.c.l.b16 %v2899
    %v2969 = vunpack.c.l.b16 %v2900
    %v2970 = vunpack.c.l.b16 %v2901
    %v2971 = vunpack.c.l.b16 %v2902
    %v2972 = vunpack.c.l.b16 %v2903
    %v2973 = vunpack.c.l.b16 %v2904
    %v2974 = vunpack.c.l.b16 %v2905
    %v2975 = vunpack.c.l.b16 %v2906
    %v2976 = vunpack.c.l.b16 %v2907
    %v2977 = vunpack.c.l.b16 %v2908
    %v2978 = vunpack.c.l.b16 %v2909
    %v2979 = vpack.c.b16 %v2948, %v2947
    %v2980 = vpack.c.b16 %v2950, %v2949
    %v2981 = vpack.c.b16 %v2952, %v2951
    %v2982 = vpack.c.b16 %v2954, %v2953
    %v2983 = vpack.c.b16 %v2956, %v2955
    %v2984 = vpack.c.b16 %v2958, %v2957
    %v2985 = vpack.c.b16 %v2960, %v2959
    %v2986 = vpack.c.b16 %v2962, %v2961
    %v2987 = vpack.c.b16 %v2964, %v2963
    %v2988 = vpack.c.b16 %v2966, %v2965
    %v2989 = vpack.c.b16 %v2968, %v2967
    %v2990 = vpack.c.b16 %v2970, %v2969
    %v2991 = vpack.c.b16 %v2972, %v2971
    %v2992 = vpack.c.b16 %v2974, %v2973
    %v2993 = vpack.c.b16 %v2976, %v2975
    %v2994 = vpack.c.b16 %v2978, %v2977
    %3011 = vmatprep.subr.bf16.mxu0 0
    %3012 = vmatpush1.bf16.msra.mxu0 %v2979
    %3013 = vmatprep.subr.bf16.mxu0 0
    %3014 = vmatpush1.bf16.msra.mxu0 %v2980
    %3015 = vmatprep.subr.bf16.mxu0 0
    %3016 = vmatpush1.bf16.msra.mxu0 %v2981
    %3017 = vmatprep.subr.bf16.mxu0 0
    %3018 = vmatpush1.bf16.msra.mxu0 %v2982
    %3019 = vmatprep.subr.bf16.mxu0 0
    %3020 = vmatpush1.bf16.msra.mxu0 %v2983
    %3021 = vmatprep.subr.bf16.mxu0 0
    %3022 = vmatpush1.bf16.msra.mxu0 %v2984
    %3023 = vmatprep.subr.bf16.mxu0 0
    %3024 = vmatpush1.bf16.msra.mxu0 %v2985
    %3025 = vmatprep.subr.bf16.mxu0 0
    %3026 = vmatpush1.bf16.msra.mxu0 %v2986
    %3027 = vmatprep.subr.bf16.mxu0 0
    %3028 = vmatpush1.bf16.msra.mxu0 %v2987
    %3029 = vmatprep.subr.bf16.mxu0 0
    %3030 = vmatpush1.bf16.msra.mxu0 %v2988
    %3031 = vmatprep.subr.bf16.mxu0 0
    %3032 = vmatpush1.bf16.msra.mxu0 %v2989
    %3033 = vmatprep.subr.bf16.mxu0 0
    %3034 = vmatpush1.bf16.msra.mxu0 %v2990
    %3035 = vmatprep.subr.bf16.mxu0 0
    %3036 = vmatpush1.bf16.msra.mxu0 %v2991
    %3037 = vmatprep.subr.bf16.mxu0 0
    %3038 = vmatpush1.bf16.msra.mxu0 %v2992
    %3039 = vmatprep.subr.bf16.mxu0 0
    %3040 = vmatpush1.bf16.msra.mxu0 %v2993
    %3041 = vmatprep.subr.bf16.mxu0 0
    %3042 = vmatpush1.bf16.msra.mxu0 %v2994
    %3043 = vmatprep.mubr.bf16.mxu0 %v2877
    %3044 = vmatmul.mubr.bf16.gmra.mrb[0].mxu0 %v2876
    %v3045 = vpop.f32.mrb[0].mxu0
    %v3046 = vadd.f32 %v2914, %v3045
    %v3047 = vpop.f32.mrb[0].mxu0
    %v3048 = vpop.f32.mrb[0].mxu0
    %v3049 = vadd.f32 %v2914, %v3048
    %v3050 = vpop.f32.mrb[0].mxu0
    %3051 = vdwg.mxu0
    %v3052 = vld [vmem:[%s9 + $0xd] sm:$0x1]
    %v3053 = vld [vmem:[%s9 + $0xe] sm:$0x1]
    %v3054 = vadd.f32 %v2718, %v3046
    %v3055 = vadd.f32 %v2719, %v3049
    %3056 = vadd.xlane.f32.xlu0 %v3054
    %v3057 = vpop.xlane.xlu0 %3056
    %3058 = vadd.xlane.f32.xlu0 %v3055
    %v3059 = vpop.xlane.xlu0 %3058
    %v3060 = vmul.f32 %v3057, %v1356
    %v3061 = vmul.f32 %v3059, %v1356
    %v3062 = vsub.f32 %v3054, %v3060
    %v3063 = vsub.f32 %v3055, %v3061
    %v3064 = vmul.f32 %v3062, %v3062
    %v3065 = vmul.f32 %v3063, %v3063
    %3066 = vadd.xlane.f32.xlu0 %v3064
    %v3067 = vpop.xlane.xlu0 %3066
    %3068 = vadd.xlane.f32.xlu0 %v3065
    %v3069 = vpop.xlane.xlu0 %3068
    %v3070 = vmul.f32 %v3067, %v1356
    %v3071 = vmul.f32 %v3069, %v1356
    %v3072 = vadd.f32 %v3070, 1e-05
    %v3073 = vadd.f32 %v3071, 1e-05
    %v3074 = vrsqrt.pop %v3072
    %v3075 = vrsqrt.pop %v3073
    %v3076 = vmul.f32 %v3062, %v3074
    %v3077 = vmul.f32 %v3063, %v3075
    %v3078 = vlaneseq
    %v3079 = vshrl.u32 %v3078, 7
    %v3080 = vsub.s32 0, %v3079
    %v3081 = vrot.slane %v3052, %v3080
    %v3082 = vmul.f32 %v3076, %v3081
    %v3083 = vmul.f32 %v3077, %v3081
    %v3084 = vlaneseq
    %v3085 = vshrl.u32 %v3084, 7
    %v3086 = vsub.s32 0, %v3085
    %v3087 = vrot.slane %v3053, %v3086
    %v3088 = vadd.f32 %v3082, %v3087
    %v3089 = vadd.f32 %v3083, %v3087
    %3090 = vst [vmem:[#allocation3] sm:$0xff] %v3088
    %3091 = vst [vmem:[#allocation3 + $0x8] sm:$0xff] %v3089
    // Predicated region
    $region46: #{_lambda_.1} parent=1 // pred_check
      _
    $region47: #{_lambda_.1} parent=1 // pred_check_branch
      %3093 = sbr.rel (0) target = $region49
    $region48: #{_lambda_.1} parent=1 // pred_region
      %s3095 = ssub.s32 256, 256
      %3096 = vsyncadd [#allocation4], %s3095
      %s3097 = sshll.u32 [#allocation3], 4
      %s3098 = int_to_ptr.vmem [resolvable:$true] %s3097
      %3103 = dma.vmem_to_hbm [thread:$0]  %s3098, 256, %s11, [#allocation4], 128, 128, 8
    $region49: #{_lambda_.1} parent=1 // pred_fallthru
      _
    // Predicated region
    $region50: #{_lambda_.1} parent=1 // pred_check
      _
    $region51: #{_lambda_.1} parent=1 // pred_check_branch
      %3105 = sbr.rel (0) target = $region53
    $region52: #{_lambda_.1} parent=1 // pred_region
      %3106 = dma.done [#allocation4], 256
    $region53: #{_lambda_.1} parent=1 // pred_fallthru
      _
    %3107 = vsyncpa [#allocation4], 1

</llo_original>
